<compile_context>
chip_gen: v7x
topology: tpu7x:2x2x1
jax: 0.10.0
libtpu: 0.0.40
codegen_flags: <defaults>
</compile_context>

<pallas_src>
import functools

import jax
import jax.numpy as jnp
from jax import lax
from jax.experimental import pallas as pl
from jax.experimental.pallas import tpu as pltpu


def _double_conv_relu_kernel(x_ref, w1_ref, w2_ref, b1_ref, b2_ref, o_ref,
                             xpad_ref, hpad0_ref, hpad1_ref, *,
                             H, W, Cin, Cmid, Cout, cdt, lane_dense):
    # x_ref:   (1, H, W, Cin)   one batch element, NHWC (channels on lanes)
    # w1_ref:  (9, Cin, Cmid)   conv1 weights, BN1 scale folded, tap-major (kh*3+kw)
    # w2_ref:  (9, Cmid, Cout)  conv2 weights, BN2 scale folded
    # b1/b2:   (1, Cmid)/(1, Cout)  folded BN biases (f32)
    # o_ref:   (1, Ho, Wo*Cout) if lane_dense else (1, Ho*Wo, Cout)
    # xpad_ref:  VMEM (H+2, W+2, Cin)  f32   padded ReLU(x)
    # hpad{p}:   VMEM (Ho+1, W+2, Cmid) f32  padded h, row parity p (2*i+p)
    Ho, Wo = H // 2, W // 2
    f32 = jnp.float32

    # ---- stage 0: ReLU(x) + SAME zero padding into VMEM (halo-only zeroing).
    # The interior is fully overwritten each grid step, so only the border
    # rows/columns are re-zeroed (per-iteration, megacore-safe).
    xpad_ref[pl.ds(0, 1), :, :] = jnp.zeros((1, W + 2, Cin), f32)
    xpad_ref[pl.ds(H + 1, 1), :, :] = jnp.zeros((1, W + 2, Cin), f32)
    xpad_ref[:, pl.ds(0, 1), :] = jnp.zeros((H + 2, 1, Cin), f32)
    xpad_ref[:, pl.ds(W + 1, 1), :] = jnp.zeros((H + 2, 1, Cin), f32)
    xpad_ref[pl.ds(1, H), pl.ds(1, W), :] = jnp.maximum(x_ref[0], 0.0)

    # ---- stage 1: conv1 3x3 / stride 1 (BN1 scale already in w1) + bias + ReLU.
    # 9 per-tap MXU matmuls fed straight from static ref slices (no concat,
    # no whole-buffer materialisation).
    acc1 = jnp.zeros((H * W, Cmid), f32)
    for kh in range(3):
        for kw in range(3):
            tap = xpad_ref[pl.ds(kh, H), pl.ds(kw, W), :]          # (H, W, Cin)
            acc1 = acc1 + jnp.dot(tap.reshape(H * W, Cin).astype(cdt),
                                  w1_ref[kh * 3 + kw],
                                  preferred_element_type=f32)
    h = jnp.maximum(acc1 + b1_ref[...], 0.0)                       # (H*W, Cmid)
    h = h.astype(cdt).astype(f32)      # round once to the MXU input dtype

    # ---- stage 1.5: scatter h (never leaves VMEM) into two row-parity padded
    # scratches: hpad{p}[i] holds padded row 2*i + p, so the stride-2 conv's
    # row accesses below are plain contiguous static slices.
    zrow = jnp.zeros((1, W + 2, Cmid), f32)
    zcol = jnp.zeros((Ho + 1, 1, Cmid), f32)
    hpad0_ref[pl.ds(0, 1), :, :] = zrow            # padded row 0   (top halo)
    hpad1_ref[pl.ds(Ho, 1), :, :] = zrow           # padded row H+1 (bottom halo)
    hpad0_ref[:, pl.ds(0, 1), :] = zcol
    hpad0_ref[:, pl.ds(W + 1, 1), :] = zcol
    hpad1_ref[:, pl.ds(0, 1), :] = zcol
    hpad1_ref[:, pl.ds(W + 1, 1), :] = zcol
    h4 = h.reshape(Ho, 2, W, Cmid)                 # free outer split (W % 8 == 0)
    hpad1_ref[pl.ds(0, Ho), pl.ds(1, W), :] = h4[:, 0]   # even h rows -> odd padded rows
    hpad0_ref[pl.ds(1, Ho), pl.ds(1, W), :] = h4[:, 1]   # odd  h rows -> even padded rows

    # ---- stage 2: conv2 3x3 / stride 2 (BN2 scale in w2) + bias, even output
    # positions only.  Rows: static slices of the parity-split scratch.
    # Columns: hardware strided sublane loads -- no value repack, no 4x
    # redundant stride-1 compute.
    acc2 = jnp.zeros((Ho * Wo, Cout), f32)
    for kh in range(3):
        row_ref = (hpad0_ref, hpad1_ref)[kh % 2]
        a = kh // 2                                # padded row 2*(oh+a) + kh%2 = 2*oh + kh
        for kw in range(3):
            tap = row_ref[pl.ds(a, Ho), pl.ds(kw, Wo, stride=2), :]   # (Ho, Wo, Cmid)
            acc2 = acc2 + jnp.dot(tap.reshape(Ho * Wo, Cmid).astype(cdt),
                                  w2_ref[kh * 3 + kw],
                                  preferred_element_type=f32)
    y = acc2 + b2_ref[...]                         # BN2 affine; module has no final ReLU

    if lane_dense:
        # Cout < 128: merge (Wo, Cout) into the lane dim so the HBM store is a
        # single wide vst per row instead of per-row masked vst.msk.
        y3 = y.reshape(Ho, Wo, Cout)               # free outer split (Wo % 8 == 0)
        y = jnp.concatenate([y3[:, j, :] for j in range(Wo)], axis=-1)  # (Ho, Wo*Cout)
    o_ref[0] = y.astype(o_ref.dtype)


def fold_bn(gamma, beta, mean, var, eps=1e-5):
    """Inference-mode BatchNorm folded to per-channel scale/bias."""
    scale = gamma / jnp.sqrt(var + eps)
    bias = beta - mean * scale
    return (scale.reshape(1, -1).astype(jnp.float32),
            bias.reshape(1, -1).astype(jnp.float32))


def double_conv_relu_nhwc(x, params, *, compute_dtype=jnp.bfloat16,
                          lane_dense_out=None):
    """NHWC core (use this end-to-end to avoid NCHW<->NHWC HBM round trips)."""
    N, H, W, Cin = x.shape
    # TODO(synk): odd SSD map sizes (19x19, 5x5) need ceil-division outputs and
    # relaxed reshape alignment; the toy/early even-sized maps satisfy these.
    assert H % 2 == 0 and W % 16 == 0
    w1, w2 = params["w1"], params["w2"]                # HWIO
    Cmid, Cout = w1.shape[-1], w2.shape[-1]
    Ho, Wo = H // 2, W // 2

    s1, b1 = fold_bn(*params["bn1"])
    s2, b2 = fold_bn(*params["bn2"])
    # BN scales folded into the conv weights at trace time (free); tap-major
    # layout (kh*3+kw, cin, cout); cast once to the MXU input dtype.
    w1p = (w1 * s1.reshape(1, 1, 1, -1)).reshape(9, Cin, Cmid).astype(compute_dtype)
    w2p = (w2 * s2.reshape(1, 1, 1, -1)).reshape(9, Cmid, Cout).astype(compute_dtype)

    if lane_dense_out is None:
        lane_dense_out = Cout < 128

    if lane_dense_out:
        out_shape = jax.ShapeDtypeStruct((N, Ho, Wo * Cout), x.dtype)
        out_spec = pl.BlockSpec((1, Ho, Wo * Cout), lambda n: (n, 0, 0))
    else:
        out_shape = jax.ShapeDtypeStruct((N, Ho * Wo, Cout), x.dtype)
        out_spec = pl.BlockSpec((1, Ho * Wo, Cout), lambda n: (n, 0, 0))

    # Explicit VMEM budget (scratches + double-buffered blocks + weights) and
    # a FLOP/bytes cost hint for the XLA scheduler.
    f32b = 4
    wbytes = 9 * (Cin * Cmid + Cmid * Cout) * jnp.dtype(compute_dtype).itemsize
    scratch_bytes = ((H + 2) * (W + 2) * Cin + 2 * (Ho + 1) * (W + 2) * Cmid) * f32b
    io_bytes = 2 * (H * W * Cin + Ho * Wo * Cout) * f32b
    vmem_limit = int(min(2 * (scratch_bytes + io_bytes + wbytes) + (8 << 20), 64 << 20))
    flops = 2 * N * 9 * (H * W * Cin * Cmid + Ho * Wo * Cmid * Cout)
    bytes_accessed = f32b * N * (H * W * Cin + Ho * Wo * Cout) + wbytes + f32b * (Cmid + Cout)

    kernel = functools.partial(
        _double_conv_relu_kernel, H=H, W=W, Cin=Cin, Cmid=Cmid, Cout=Cout,
        cdt=compute_dtype, lane_dense=lane_dense_out)

    out = pl.pallas_call(
        kernel,
        out_shape=out_shape,
        grid_spec=pltpu.PrefetchScalarGridSpec(
            num_scalar_prefetch=0,
            grid=(N,),                       # one image per step; "parallel" so
            in_specs=[                       # v7x's two TensorCores split the batch
                pl.BlockSpec((1, H, W, Cin), lambda n: (n, 0, 0, 0)),
                pl.BlockSpec((9, Cin, Cmid), lambda n: (0, 0, 0)),
                pl.BlockSpec((9, Cmid, Cout), lambda n: (0, 0, 0)),
                pl.BlockSpec((1, Cmid), lambda n: (0, 0)),
                pl.BlockSpec((1, Cout), lambda n: (0, 0)),
            ],
            out_specs=out_spec,
            scratch_shapes=[
                pltpu.VMEM((H + 2, W + 2, Cin), jnp.float32),     # padded ReLU(x)
                pltpu.VMEM((Ho + 1, W + 2, Cmid), jnp.float32),   # padded h, even rows
                pltpu.VMEM((Ho + 1, W + 2, Cmid), jnp.float32),   # padded h, odd rows
            ],
        ),
        compiler_params=pltpu.CompilerParams(
            dimension_semantics=("parallel",),
            vmem_limit_bytes=vmem_limit),
        cost_estimate=pl.CostEstimate(flops=flops, transcendentals=0,
                                      bytes_accessed=bytes_accessed),
    )(x, w1p, w2p, b1, b2)

    return out.reshape(N, Ho, Wo, Cout)     # metadata-only reshape in HBM


def double_conv_relu(x_nchw, params, *, compute_dtype=jnp.bfloat16,
                     lane_dense_out=None):
    """PyTorch-layout wrapper (NCHW in / NCHW out) around the NHWC core."""
    x = jnp.transpose(x_nchw, (0, 2, 3, 1))
    y = double_conv_relu_nhwc(x, params, compute_dtype=compute_dtype,
                              lane_dense_out=lane_dense_out)
    return jnp.transpose(y, (0, 3, 1, 2))


def _reference(x_nchw, params, *, compute_dtype=jnp.float32):
    """Pure-JAX reference applying the same BN folding / rounding points."""
    cdt = compute_dtype
    x = jnp.transpose(x_nchw, (0, 2, 3, 1))
    dn = ("NHWC", "HWIO", "NHWC")
    s1, b1 = fold_bn(*params["bn1"])
    s2, b2 = fold_bn(*params["bn2"])
    w1f = (params["w1"] * s1.reshape(1, 1, 1, -1)).astype(cdt)
    w2f = (params["w2"] * s2.reshape(1, 1, 1, -1)).astype(cdt)
    h = lax.conv_general_dilated(
        jnp.maximum(x, 0.0).astype(cdt), w1f, (1, 1), ((1, 1), (1, 1)),
        dimension_numbers=dn, preferred_element_type=jnp.float32)
    h = jnp.maximum(h + b1.reshape(1, 1, 1, -1), 0.0)
    y = lax.conv_general_dilated(
        h.astype(cdt), w2f, (2, 2), ((1, 1), (1, 1)),
        dimension_numbers=dn, preferred_element_type=jnp.float32)
    y = y + b2.reshape(1, 1, 1, -1)
    return jnp.transpose(y, (0, 3, 1, 2))


if __name__ == "__main__":
    N, Cin, H, W = 2, 4, 16, 16
    Cmid, Cout = 8, 8

    key = jax.random.PRNGKey(0)
    ks = jax.random.split(key, 11)

    # PyTorch Conv2d weight is (Cout, Cin, 3, 3); stored here directly as HWIO.
    params = {
        "w1": jax.random.normal(ks[1], (3, 3, Cin, Cmid), jnp.float32) * 0.1,
        "w2": jax.random.normal(ks[2], (3, 3, Cmid, Cout), jnp.float32) * 0.1,
        # (gamma, beta, running_mean, running_var)
        "bn1": (jax.random.uniform(ks[3], (Cmid,), minval=0.5, maxval=1.5),
                jax.random.normal(ks[4], (Cmid,)) * 0.1,
                jax.random.normal(ks[5], (Cmid,)) * 0.1,
                jax.random.uniform(ks[6], (Cmid,), minval=0.5, maxval=1.5)),
        "bn2": (jax.random.uniform(ks[7], (Cout,), minval=0.5, maxval=1.5),
                jax.random.normal(ks[8], (Cout,)) * 0.1,
                jax.random.normal(ks[9], (Cout,)) * 0.1,
                jax.random.uniform(ks[10], (Cout,), minval=0.5, maxval=1.5)),
    }
    x = jax.random.normal(ks[0], (N, Cin, H, W), jnp.float32)

    # Strict f32 MXU path vs f32 XLA reference.
    f32_fn = jax.jit(functools.partial(double_conv_relu, compute_dtype=jnp.float32))
    out_f32 = jax.block_until_ready(f32_fn(x, params))
    assert out_f32.shape == (N, Cout, H // 2, W // 2), out_f32.shape
    ref_f32 = jax.block_until_ready(_reference(x, params, compute_dtype=jnp.float32))
    assert jnp.allclose(out_f32, ref_f32, atol=1e-4, rtol=1e-4), \
        float(jnp.max(jnp.abs(out_f32 - ref_f32)))

    # bf16 MXU path (performance default); reference rounds at the same points.
    bf16_fn = jax.jit(double_conv_relu)
    out_bf16 = jax.block_until_ready(bf16_fn(x, params))
    ref_bf16 = jax.block_until_ready(_reference(x, params, compute_dtype=jnp.bfloat16))
    assert jnp.allclose(out_bf16, ref_bf16, atol=2e-2, rtol=2e-2), \
        float(jnp.max(jnp.abs(out_bf16 - ref_bf16)))

    # Channel-minor output path (the one used for real Cout >= 128) also checked.
    cm_fn = jax.jit(functools.partial(double_conv_relu, lane_dense_out=False))
    out_cm = jax.block_until_ready(cm_fn(x, params))
    assert jnp.allclose(out_cm, ref_bf16, atol=2e-2, rtol=2e-2), \
        float(jnp.max(jnp.abs(out_cm - ref_bf16)))

    # TODO(synk): training-mode BatchNorm (batch statistics + running-stat
    # updates) is not implemented; BN here is inference-mode folded affine.
    print("KERNEL_OK")
</pallas_src>

<mosaic_0001>
module attributes {stable_mosaic.version = 11 : i64} {
  func.func @_double_conv_relu_kernel(%arg0: i32, %arg1: memref<1x16x16x4xf32, #tpu.memory_space<vmem>>, %arg2: memref<9x4x8xf32, #tpu.memory_space<vmem>>, %arg3: memref<9x8x8xf32, #tpu.memory_space<vmem>>, %arg4: memref<1x8xf32, #tpu.memory_space<vmem>>, %arg5: memref<1x8xf32, #tpu.memory_space<vmem>>, %arg6: memref<1x8x64xf32, #tpu.memory_space<vmem>>, %arg7: memref<18x18x4xf32, #tpu.memory_space<vmem>>, %arg8: memref<9x18x8xf32, #tpu.memory_space<vmem>>, %arg9: memref<9x18x8xf32, #tpu.memory_space<vmem>>) attributes {dimension_semantics = [#tpu.dimension_semantics<parallel>], iteration_bounds = array<i64: 2>, scalar_prefetch = 0 : i64, scratch_operands = 3 : i64, tpu.core_type = #tpu.core_type<tc>, window_params = [{transform_indices = @transform_0, window_bounds = array<i64: 1, 16, 16, 4>}, {pipeline_mode = #tpu.pipeline_mode<synchronous>, transform_indices = @transform_1, window_bounds = array<i64: 9, 4, 8>}, {pipeline_mode = #tpu.pipeline_mode<synchronous>, transform_indices = @transform_2, window_bounds = array<i64: 9, 8, 8>}, {pipeline_mode = #tpu.pipeline_mode<synchronous>, transform_indices = @transform_3, window_bounds = array<i64: 1, 8>}, {pipeline_mode = #tpu.pipeline_mode<synchronous>, transform_indices = @transform_4, window_bounds = array<i64: 1, 8>}, {transform_indices = @transform_5, window_bounds = array<i64: 1, 8, 64>}]} {
    %cst = arith.constant 0.000000e+00 : f32
    %0 = vector.broadcast %cst : f32 to vector<1x18x4xf32>
    %c0 = arith.constant 0 : index
    %c0_0 = arith.constant 0 : index
    %c0_1 = arith.constant 0 : index
    %1 = vector.load %arg7[%c0, %c0_0, %c0_1] : memref<18x18x4xf32, #tpu.memory_space<vmem>>, vector<1x18x4xf32>
    tpu.vector_store %arg7[%c0, %c0_0, %c0_1], %0 {strides = array<i32>} : memref<18x18x4xf32, #tpu.memory_space<vmem>>, vector<1x18x4xf32>,
    %cst_2 = arith.constant 0.000000e+00 : f32
    %2 = vector.broadcast %cst_2 : f32 to vector<1x18x4xf32>
    %c17 = arith.constant 17 : index
    %c0_3 = arith.constant 0 : index
    %c0_4 = arith.constant 0 : index
    %3 = vector.load %arg7[%c17, %c0_3, %c0_4] : memref<18x18x4xf32, #tpu.memory_space<vmem>>, vector<1x18x4xf32>
    tpu.vector_store %arg7[%c17, %c0_3, %c0_4], %2 {strides = array<i32>} : memref<18x18x4xf32, #tpu.memory_space<vmem>>, vector<1x18x4xf32>,
    %cst_5 = arith.constant 0.000000e+00 : f32
    %4 = vector.broadcast %cst_5 : f32 to vector<18x1x4xf32>
    %c0_6 = arith.constant 0 : index
    %c0_7 = arith.constant 0 : index
    %c0_8 = arith.constant 0 : index
    %5 = vector.load %arg7[%c0_6, %c0_7, %c0_8] : memref<18x18x4xf32, #tpu.memory_space<vmem>>, vector<18x1x4xf32>
    tpu.vector_store %arg7[%c0_6, %c0_7, %c0_8], %4 {strides = array<i32>} : memref<18x18x4xf32, #tpu.memory_space<vmem>>, vector<18x1x4xf32>,
    %cst_9 = arith.constant 0.000000e+00 : f32
    %6 = vector.broadcast %cst_9 : f32 to vector<18x1x4xf32>
    %c0_10 = arith.constant 0 : index
    %c17_11 = arith.constant 17 : index
    %c0_12 = arith.constant 0 : index
    %7 = vector.load %arg7[%c0_10, %c17_11, %c0_12] : memref<18x18x4xf32, #tpu.memory_space<vmem>>, vector<18x1x4xf32>
    tpu.vector_store %arg7[%c0_10, %c17_11, %c0_12], %6 {strides = array<i32>} : memref<18x18x4xf32, #tpu.memory_space<vmem>>, vector<18x1x4xf32>,
    %c0_13 = arith.constant 0 : index
    %c0_14 = arith.constant 0 : index
    %c0_15 = arith.constant 0 : index
    %c0_16 = arith.constant 0 : index
    %8 = vector.load %arg1[%c0_13, %c0_14, %c0_15, %c0_16] : memref<1x16x16x4xf32, #tpu.memory_space<vmem>>, vector<1x16x16x4xf32>
    %9 = vector.shape_cast %8 : vector<1x16x16x4xf32> to vector<16x16x4xf32>
    %cst_17 = arith.constant 0.000000e+00 : f32
    %10 = vector.broadcast %cst_17 : f32 to vector<16x16x4xf32>
    %11 = arith.maximumf %9, %10 : vector<16x16x4xf32>
    %c1 = arith.constant 1 : index
    %c1_18 = arith.constant 1 : index
    %c0_19 = arith.constant 0 : index
    %12 = vector.load %arg7[%c1, %c1_18, %c0_19] : memref<18x18x4xf32, #tpu.memory_space<vmem>>, vector<16x16x4xf32>
    tpu.vector_store %arg7[%c1, %c1_18, %c0_19], %11 {strides = array<i32>} : memref<18x18x4xf32, #tpu.memory_space<vmem>>, vector<16x16x4xf32>,
    %cst_20 = arith.constant 0.000000e+00 : f32
    %13 = vector.broadcast %cst_20 : f32 to vector<256x8xf32>
    %c0_21 = arith.constant 0 : index
    %c0_22 = arith.constant 0 : index
    %c0_23 = arith.constant 0 : index
    %14 = vector.load %arg7[%c0_21, %c0_22, %c0_23] : memref<18x18x4xf32, #tpu.memory_space<vmem>>, vector<16x16x4xf32>
    %15 = vector.shape_cast %14 : vector<16x16x4xf32> to vector<256x4xf32>
    %c0_24 = arith.constant 0 : index
    %c0_25 = arith.constant 0 : index
    %c0_26 = arith.constant 0 : index
    %16 = vector.load %arg2[%c0_24, %c0_25, %c0_26] : memref<9x4x8xf32, #tpu.memory_space<vmem>>, vector<1x4x8xf32>
    %17 = vector.shape_cast %16 : vector<1x4x8xf32> to vector<4x8xf32>
    %cst_27 = arith.constant dense<0.000000e+00> : vector<256x8xf32>
    %18 = tpu.matmul %15, %17, %cst_27 {dimension_numbers = #tpu.dot_dimension_numbers<[1], [0], [0], [1], [0, 0, 1, 1], [], []>} : vector<256x4xf32>, vector<4x8xf32>, vector<256x8xf32> -> vector<256x8xf32>
    %19 = arith.addf %13, %18 : vector<256x8xf32>
    %c0_28 = arith.constant 0 : index
    %c1_29 = arith.constant 1 : index
    %c0_30 = arith.constant 0 : index
    %20 = vector.load %arg7[%c0_28, %c1_29, %c0_30] : memref<18x18x4xf32, #tpu.memory_space<vmem>>, vector<16x16x4xf32>
    %21 = vector.shape_cast %20 : vector<16x16x4xf32> to vector<256x4xf32>
    %c1_31 = arith.constant 1 : index
    %c0_32 = arith.constant 0 : index
    %c0_33 = arith.constant 0 : index
    %22 = vector.load %arg2[%c1_31, %c0_32, %c0_33] : memref<9x4x8xf32, #tpu.memory_space<vmem>>, vector<1x4x8xf32>
    %23 = vector.shape_cast %22 : vector<1x4x8xf32> to vector<4x8xf32>
    %cst_34 = arith.constant dense<0.000000e+00> : vector<256x8xf32>
    %24 = tpu.matmul %21, %23, %cst_34 {dimension_numbers = #tpu.dot_dimension_numbers<[1], [0], [0], [1], [0, 0, 1, 1], [], []>} : vector<256x4xf32>, vector<4x8xf32>, vector<256x8xf32> -> vector<256x8xf32>
    %25 = arith.addf %19, %24 : vector<256x8xf32>
    %c0_35 = arith.constant 0 : index
    %c2 = arith.constant 2 : index
    %c0_36 = arith.constant 0 : index
    %26 = vector.load %arg7[%c0_35, %c2, %c0_36] : memref<18x18x4xf32, #tpu.memory_space<vmem>>, vector<16x16x4xf32>
    %27 = vector.shape_cast %26 : vector<16x16x4xf32> to vector<256x4xf32>
    %c2_37 = arith.constant 2 : index
    %c0_38 = arith.constant 0 : index
    %c0_39 = arith.constant 0 : index
    %28 = vector.load %arg2[%c2_37, %c0_38, %c0_39] : memref<9x4x8xf32, #tpu.memory_space<vmem>>, vector<1x4x8xf32>
    %29 = vector.shape_cast %28 : vector<1x4x8xf32> to vector<4x8xf32>
    %cst_40 = arith.constant dense<0.000000e+00> : vector<256x8xf32>
    %30 = tpu.matmul %27, %29, %cst_40 {dimension_numbers = #tpu.dot_dimension_numbers<[1], [0], [0], [1], [0, 0, 1, 1], [], []>} : vector<256x4xf32>, vector<4x8xf32>, vector<256x8xf32> -> vector<256x8xf32>
    %31 = arith.addf %25, %30 : vector<256x8xf32>
    %c1_41 = arith.constant 1 : index
    %c0_42 = arith.constant 0 : index
    %c0_43 = arith.constant 0 : index
    %32 = vector.load %arg7[%c1_41, %c0_42, %c0_43] : memref<18x18x4xf32, #tpu.memory_space<vmem>>, vector<16x16x4xf32>
    %33 = vector.shape_cast %32 : vector<16x16x4xf32> to vector<256x4xf32>
    %c3 = arith.constant 3 : index
    %c0_44 = arith.constant 0 : index
    %c0_45 = arith.constant 0 : index
    %34 = vector.load %arg2[%c3, %c0_44, %c0_45] : memref<9x4x8xf32, #tpu.memory_space<vmem>>, vector<1x4x8xf32>
    %35 = vector.shape_cast %34 : vector<1x4x8xf32> to vector<4x8xf32>
    %cst_46 = arith.constant dense<0.000000e+00> : vector<256x8xf32>
    %36 = tpu.matmul %33, %35, %cst_46 {dimension_numbers = #tpu.dot_dimension_numbers<[1], [0], [0], [1], [0, 0, 1, 1], [], []>} : vector<256x4xf32>, vector<4x8xf32>, vector<256x8xf32> -> vector<256x8xf32>
    %37 = arith.addf %31, %36 : vector<256x8xf32>
    %c1_47 = arith.constant 1 : index
    %c1_48 = arith.constant 1 : index
    %c0_49 = arith.constant 0 : index
    %38 = vector.load %arg7[%c1_47, %c1_48, %c0_49] : memref<18x18x4xf32, #tpu.memory_space<vmem>>, vector<16x16x4xf32>
    %39 = vector.shape_cast %38 : vector<16x16x4xf32> to vector<256x4xf32>
    %c4 = arith.constant 4 : index
    %c0_50 = arith.constant 0 : index
    %c0_51 = arith.constant 0 : index
    %40 = vector.load %arg2[%c4, %c0_50, %c0_51] : memref<9x4x8xf32, #tpu.memory_space<vmem>>, vector<1x4x8xf32>
    %41 = vector.shape_cast %40 : vector<1x4x8xf32> to vector<4x8xf32>
    %cst_52 = arith.constant dense<0.000000e+00> : vector<256x8xf32>
    %42 = tpu.matmul %39, %41, %cst_52 {dimension_numbers = #tpu.dot_dimension_numbers<[1], [0], [0], [1], [0, 0, 1, 1], [], []>} : vector<256x4xf32>, vector<4x8xf32>, vector<256x8xf32> -> vector<256x8xf32>
    %43 = arith.addf %37, %42 : vector<256x8xf32>
    %c1_53 = arith.constant 1 : index
    %c2_54 = arith.constant 2 : index
    %c0_55 = arith.constant 0 : index
    %44 = vector.load %arg7[%c1_53, %c2_54, %c0_55] : memref<18x18x4xf32, #tpu.memory_space<vmem>>, vector<16x16x4xf32>
    %45 = vector.shape_cast %44 : vector<16x16x4xf32> to vector<256x4xf32>
    %c5 = arith.constant 5 : index
    %c0_56 = arith.constant 0 : index
    %c0_57 = arith.constant 0 : index
    %46 = vector.load %arg2[%c5, %c0_56, %c0_57] : memref<9x4x8xf32, #tpu.memory_space<vmem>>, vector<1x4x8xf32>
    %47 = vector.shape_cast %46 : vector<1x4x8xf32> to vector<4x8xf32>
    %cst_58 = arith.constant dense<0.000000e+00> : vector<256x8xf32>
    %48 = tpu.matmul %45, %47, %cst_58 {dimension_numbers = #tpu.dot_dimension_numbers<[1], [0], [0], [1], [0, 0, 1, 1], [], []>} : vector<256x4xf32>, vector<4x8xf32>, vector<256x8xf32> -> vector<256x8xf32>
    %49 = arith.addf %43, %48 : vector<256x8xf32>
    %c2_59 = arith.constant 2 : index
    %c0_60 = arith.constant 0 : index
    %c0_61 = arith.constant 0 : index
    %50 = vector.load %arg7[%c2_59, %c0_60, %c0_61] : memref<18x18x4xf32, #tpu.memory_space<vmem>>, vector<16x16x4xf32>
    %51 = vector.shape_cast %50 : vector<16x16x4xf32> to vector<256x4xf32>
    %c6 = arith.constant 6 : index
    %c0_62 = arith.constant 0 : index
    %c0_63 = arith.constant 0 : index
    %52 = vector.load %arg2[%c6, %c0_62, %c0_63] : memref<9x4x8xf32, #tpu.memory_space<vmem>>, vector<1x4x8xf32>
    %53 = vector.shape_cast %52 : vector<1x4x8xf32> to vector<4x8xf32>
    %cst_64 = arith.constant dense<0.000000e+00> : vector<256x8xf32>
    %54 = tpu.matmul %51, %53, %cst_64 {dimension_numbers = #tpu.dot_dimension_numbers<[1], [0], [0], [1], [0, 0, 1, 1], [], []>} : vector<256x4xf32>, vector<4x8xf32>, vector<256x8xf32> -> vector<256x8xf32>
    %55 = arith.addf %49, %54 : vector<256x8xf32>
    %c2_65 = arith.constant 2 : index
    %c1_66 = arith.constant 1 : index
    %c0_67 = arith.constant 0 : index
    %56 = vector.load %arg7[%c2_65, %c1_66, %c0_67] : memref<18x18x4xf32, #tpu.memory_space<vmem>>, vector<16x16x4xf32>
    %57 = vector.shape_cast %56 : vector<16x16x4xf32> to vector<256x4xf32>
    %c7 = arith.constant 7 : index
    %c0_68 = arith.constant 0 : index
    %c0_69 = arith.constant 0 : index
    %58 = vector.load %arg2[%c7, %c0_68, %c0_69] : memref<9x4x8xf32, #tpu.memory_space<vmem>>, vector<1x4x8xf32>
    %59 = vector.shape_cast %58 : vector<1x4x8xf32> to vector<4x8xf32>
    %cst_70 = arith.constant dense<0.000000e+00> : vector<256x8xf32>
    %60 = tpu.matmul %57, %59, %cst_70 {dimension_numbers = #tpu.dot_dimension_numbers<[1], [0], [0], [1], [0, 0, 1, 1], [], []>} : vector<256x4xf32>, vector<4x8xf32>, vector<256x8xf32> -> vector<256x8xf32>
    %61 = arith.addf %55, %60 : vector<256x8xf32>
    %c2_71 = arith.constant 2 : index
    %c2_72 = arith.constant 2 : index
    %c0_73 = arith.constant 0 : index
    %62 = vector.load %arg7[%c2_71, %c2_72, %c0_73] : memref<18x18x4xf32, #tpu.memory_space<vmem>>, vector<16x16x4xf32>
    %63 = vector.shape_cast %62 : vector<16x16x4xf32> to vector<256x4xf32>
    %c8 = arith.constant 8 : index
    %c0_74 = arith.constant 0 : index
    %c0_75 = arith.constant 0 : index
    %64 = vector.load %arg2[%c8, %c0_74, %c0_75] : memref<9x4x8xf32, #tpu.memory_space<vmem>>, vector<1x4x8xf32>
    %65 = vector.shape_cast %64 : vector<1x4x8xf32> to vector<4x8xf32>
    %cst_76 = arith.constant dense<0.000000e+00> : vector<256x8xf32>
    %66 = tpu.matmul %63, %65, %cst_76 {dimension_numbers = #tpu.dot_dimension_numbers<[1], [0], [0], [1], [0, 0, 1, 1], [], []>} : vector<256x4xf32>, vector<4x8xf32>, vector<256x8xf32> -> vector<256x8xf32>
    %67 = arith.addf %61, %66 : vector<256x8xf32>
    %c0_77 = arith.constant 0 : index
    %c0_78 = arith.constant 0 : index
    %68 = vector.load %arg4[%c0_77, %c0_78] : memref<1x8xf32, #tpu.memory_space<vmem>>, vector<1x8xf32>
    %69 = vector.broadcast %68 : vector<1x8xf32> to vector<256x8xf32>
    %70 = arith.addf %67, %69 : vector<256x8xf32>
    %cst_79 = arith.constant 0.000000e+00 : f32
    %71 = vector.broadcast %cst_79 : f32 to vector<256x8xf32>
    %72 = arith.maximumf %70, %71 : vector<256x8xf32>
    %cst_80 = arith.constant 0.000000e+00 : f32
    %73 = vector.broadcast %cst_80 : f32 to vector<1x18x8xf32>
    %cst_81 = arith.constant 0.000000e+00 : f32
    %74 = vector.broadcast %cst_81 : f32 to vector<9x1x8xf32>
    %c0_82 = arith.constant 0 : index
    %c0_83 = arith.constant 0 : index
    %c0_84 = arith.constant 0 : index
    %75 = vector.load %arg8[%c0_82, %c0_83, %c0_84] : memref<9x18x8xf32, #tpu.memory_space<vmem>>, vector<1x18x8xf32>
    tpu.vector_store %arg8[%c0_82, %c0_83, %c0_84], %73 {strides = array<i32>} : memref<9x18x8xf32, #tpu.memory_space<vmem>>, vector<1x18x8xf32>,
    %c8_85 = arith.constant 8 : index
    %c0_86 = arith.constant 0 : index
    %c0_87 = arith.constant 0 : index
    %76 = vector.load %arg9[%c8_85, %c0_86, %c0_87] : memref<9x18x8xf32, #tpu.memory_space<vmem>>, vector<1x18x8xf32>
    tpu.vector_store %arg9[%c8_85, %c0_86, %c0_87], %73 {strides = array<i32>} : memref<9x18x8xf32, #tpu.memory_space<vmem>>, vector<1x18x8xf32>,
    %c0_88 = arith.constant 0 : index
    %c0_89 = arith.constant 0 : index
    %c0_90 = arith.constant 0 : index
    %77 = vector.load %arg8[%c0_88, %c0_89, %c0_90] : memref<9x18x8xf32, #tpu.memory_space<vmem>>, vector<9x1x8xf32>
    tpu.vector_store %arg8[%c0_88, %c0_89, %c0_90], %74 {strides = array<i32>} : memref<9x18x8xf32, #tpu.memory_space<vmem>>, vector<9x1x8xf32>,
    %c0_91 = arith.constant 0 : index
    %c17_92 = arith.constant 17 : index
    %c0_93 = arith.constant 0 : index
    %78 = vector.load %arg8[%c0_91, %c17_92, %c0_93] : memref<9x18x8xf32, #tpu.memory_space<vmem>>, vector<9x1x8xf32>
    tpu.vector_store %arg8[%c0_91, %c17_92, %c0_93], %74 {strides = array<i32>} : memref<9x18x8xf32, #tpu.memory_space<vmem>>, vector<9x1x8xf32>,
    %c0_94 = arith.constant 0 : index
    %c0_95 = arith.constant 0 : index
    %c0_96 = arith.constant 0 : index
    %79 = vector.load %arg9[%c0_94, %c0_95, %c0_96] : memref<9x18x8xf32, #tpu.memory_space<vmem>>, vector<9x1x8xf32>
    tpu.vector_store %arg9[%c0_94, %c0_95, %c0_96], %74 {strides = array<i32>} : memref<9x18x8xf32, #tpu.memory_space<vmem>>, vector<9x1x8xf32>,
    %c0_97 = arith.constant 0 : index
    %c17_98 = arith.constant 17 : index
    %c0_99 = arith.constant 0 : index
    %80 = vector.load %arg9[%c0_97, %c17_98, %c0_99] : memref<9x18x8xf32, #tpu.memory_space<vmem>>, vector<9x1x8xf32>
    tpu.vector_store %arg9[%c0_97, %c17_98, %c0_99], %74 {strides = array<i32>} : memref<9x18x8xf32, #tpu.memory_space<vmem>>, vector<9x1x8xf32>,
    %81 = vector.shape_cast %72 : vector<256x8xf32> to vector<8x2x16x8xf32>
    %82 = vector.extract_strided_slice %81 {offsets = [0, 0, 0, 0], sizes = [8, 1, 16, 8], strides = [1, 1, 1, 1]} : vector<8x2x16x8xf32> to vector<8x1x16x8xf32>
    %83 = vector.shape_cast %82 : vector<8x1x16x8xf32> to vector<8x16x8xf32>
    %c0_100 = arith.constant 0 : index
    %c1_101 = arith.constant 1 : index
    %c0_102 = arith.constant 0 : index
    %84 = vector.load %arg9[%c0_100, %c1_101, %c0_102] : memref<9x18x8xf32, #tpu.memory_space<vmem>>, vector<8x16x8xf32>
    tpu.vector_store %arg9[%c0_100, %c1_101, %c0_102], %83 {strides = array<i32>} : memref<9x18x8xf32, #tpu.memory_space<vmem>>, vector<8x16x8xf32>,
    %85 = vector.extract_strided_slice %81 {offsets = [0, 1, 0, 0], sizes = [8, 1, 16, 8], strides = [1, 1, 1, 1]} : vector<8x2x16x8xf32> to vector<8x1x16x8xf32>
    %86 = vector.shape_cast %85 : vector<8x1x16x8xf32> to vector<8x16x8xf32>
    %c1_103 = arith.constant 1 : index
    %c1_104 = arith.constant 1 : index
    %c0_105 = arith.constant 0 : index
    %87 = vector.load %arg8[%c1_103, %c1_104, %c0_105] : memref<9x18x8xf32, #tpu.memory_space<vmem>>, vector<8x16x8xf32>
    tpu.vector_store %arg8[%c1_103, %c1_104, %c0_105], %86 {strides = array<i32>} : memref<9x18x8xf32, #tpu.memory_space<vmem>>, vector<8x16x8xf32>,
    %cst_106 = arith.constant 0.000000e+00 : f32
    %88 = vector.broadcast %cst_106 : f32 to vector<64x8xf32>
    %c0_107 = arith.constant 0 : index
    %c0_108 = arith.constant 0 : index
    %c0_109 = arith.constant 0 : index
    %89 = tpu.strided_load %arg8[%c0_107, %c0_108, %c0_109] {strides = array<i32: 1, 2, 1>} : memref<9x18x8xf32, #tpu.memory_space<vmem>>, vector<8x8x8xf32>
    %90 = vector.shape_cast %89 : vector<8x8x8xf32> to vector<64x8xf32>
    %c0_110 = arith.constant 0 : index
    %c0_111 = arith.constant 0 : index
    %c0_112 = arith.constant 0 : index
    %91 = vector.load %arg3[%c0_110, %c0_111, %c0_112] : memref<9x8x8xf32, #tpu.memory_space<vmem>>, vector<1x8x8xf32>
    %92 = vector.shape_cast %91 : vector<1x8x8xf32> to vector<8x8xf32>
    %cst_113 = arith.constant dense<0.000000e+00> : vector<64x8xf32>
    %93 = tpu.matmul %90, %92, %cst_113 {dimension_numbers = #tpu.dot_dimension_numbers<[1], [0], [0], [1], [0, 0, 1, 1], [], []>} : vector<64x8xf32>, vector<8x8xf32>, vector<64x8xf32> -> vector<64x8xf32>
    %94 = arith.addf %88, %93 : vector<64x8xf32>
    %c0_114 = arith.constant 0 : index
    %c1_115 = arith.constant 1 : index
    %c0_116 = arith.constant 0 : index
    %95 = tpu.strided_load %arg8[%c0_114, %c1_115, %c0_116] {strides = array<i32: 1, 2, 1>} : memref<9x18x8xf32, #tpu.memory_space<vmem>>, vector<8x8x8xf32>
    %96 = vector.shape_cast %95 : vector<8x8x8xf32> to vector<64x8xf32>
    %c1_117 = arith.constant 1 : index
    %c0_118 = arith.constant 0 : index
    %c0_119 = arith.constant 0 : index
    %97 = vector.load %arg3[%c1_117, %c0_118, %c0_119] : memref<9x8x8xf32, #tpu.memory_space<vmem>>, vector<1x8x8xf32>
    %98 = vector.shape_cast %97 : vector<1x8x8xf32> to vector<8x8xf32>
    %cst_120 = arith.constant dense<0.000000e+00> : vector<64x8xf32>
    %99 = tpu.matmul %96, %98, %cst_120 {dimension_numbers = #tpu.dot_dimension_numbers<[1], [0], [0], [1], [0, 0, 1, 1], [], []>} : vector<64x8xf32>, vector<8x8xf32>, vector<64x8xf32> -> vector<64x8xf32>
    %100 = arith.addf %94, %99 : vector<64x8xf32>
    %c0_121 = arith.constant 0 : index
    %c2_122 = arith.constant 2 : index
    %c0_123 = arith.constant 0 : index
    %101 = tpu.strided_load %arg8[%c0_121, %c2_122, %c0_123] {strides = array<i32: 1, 2, 1>} : memref<9x18x8xf32, #tpu.memory_space<vmem>>, vector<8x8x8xf32>
    %102 = vector.shape_cast %101 : vector<8x8x8xf32> to vector<64x8xf32>
    %c2_124 = arith.constant 2 : index
    %c0_125 = arith.constant 0 : index
    %c0_126 = arith.constant 0 : index
    %103 = vector.load %arg3[%c2_124, %c0_125, %c0_126] : memref<9x8x8xf32, #tpu.memory_space<vmem>>, vector<1x8x8xf32>
    %104 = vector.shape_cast %103 : vector<1x8x8xf32> to vector<8x8xf32>
    %cst_127 = arith.constant dense<0.000000e+00> : vector<64x8xf32>
    %105 = tpu.matmul %102, %104, %cst_127 {dimension_numbers = #tpu.dot_dimension_numbers<[1], [0], [0], [1], [0, 0, 1, 1], [], []>} : vector<64x8xf32>, vector<8x8xf32>, vector<64x8xf32> -> vector<64x8xf32>
    %106 = arith.addf %100, %105 : vector<64x8xf32>
    %c0_128 = arith.constant 0 : index
    %c0_129 = arith.constant 0 : index
    %c0_130 = arith.constant 0 : index
    %107 = tpu.strided_load %arg9[%c0_128, %c0_129, %c0_130] {strides = array<i32: 1, 2, 1>} : memref<9x18x8xf32, #tpu.memory_space<vmem>>, vector<8x8x8xf32>
    %108 = vector.shape_cast %107 : vector<8x8x8xf32> to vector<64x8xf32>
    %c3_131 = arith.constant 3 : index
    %c0_132 = arith.constant 0 : index
    %c0_133 = arith.constant 0 : index
    %109 = vector.load %arg3[%c3_131, %c0_132, %c0_133] : memref<9x8x8xf32, #tpu.memory_space<vmem>>, vector<1x8x8xf32>
    %110 = vector.shape_cast %109 : vector<1x8x8xf32> to vector<8x8xf32>
    %cst_134 = arith.constant dense<0.000000e+00> : vector<64x8xf32>
    %111 = tpu.matmul %108, %110, %cst_134 {dimension_numbers = #tpu.dot_dimension_numbers<[1], [0], [0], [1], [0, 0, 1, 1], [], []>} : vector<64x8xf32>, vector<8x8xf32>, vector<64x8xf32> -> vector<64x8xf32>
    %112 = arith.addf %106, %111 : vector<64x8xf32>
    %c0_135 = arith.constant 0 : index
    %c1_136 = arith.constant 1 : index
    %c0_137 = arith.constant 0 : index
    %113 = tpu.strided_load %arg9[%c0_135, %c1_136, %c0_137] {strides = array<i32: 1, 2, 1>} : memref<9x18x8xf32, #tpu.memory_space<vmem>>, vector<8x8x8xf32>
    %114 = vector.shape_cast %113 : vector<8x8x8xf32> to vector<64x8xf32>
    %c4_138 = arith.constant 4 : index
    %c0_139 = arith.constant 0 : index
    %c0_140 = arith.constant 0 : index
    %115 = vector.load %arg3[%c4_138, %c0_139, %c0_140] : memref<9x8x8xf32, #tpu.memory_space<vmem>>, vector<1x8x8xf32>
    %116 = vector.shape_cast %115 : vector<1x8x8xf32> to vector<8x8xf32>
    %cst_141 = arith.constant dense<0.000000e+00> : vector<64x8xf32>
    %117 = tpu.matmul %114, %116, %cst_141 {dimension_numbers = #tpu.dot_dimension_numbers<[1], [0], [0], [1], [0, 0, 1, 1], [], []>} : vector<64x8xf32>, vector<8x8xf32>, vector<64x8xf32> -> vector<64x8xf32>
    %118 = arith.addf %112, %117 : vector<64x8xf32>
    %c0_142 = arith.constant 0 : index
    %c2_143 = arith.constant 2 : index
    %c0_144 = arith.constant 0 : index
    %119 = tpu.strided_load %arg9[%c0_142, %c2_143, %c0_144] {strides = array<i32: 1, 2, 1>} : memref<9x18x8xf32, #tpu.memory_space<vmem>>, vector<8x8x8xf32>
    %120 = vector.shape_cast %119 : vector<8x8x8xf32> to vector<64x8xf32>
    %c5_145 = arith.constant 5 : index
    %c0_146 = arith.constant 0 : index
    %c0_147 = arith.constant 0 : index
    %121 = vector.load %arg3[%c5_145, %c0_146, %c0_147] : memref<9x8x8xf32, #tpu.memory_space<vmem>>, vector<1x8x8xf32>
    %122 = vector.shape_cast %121 : vector<1x8x8xf32> to vector<8x8xf32>
    %cst_148 = arith.constant dense<0.000000e+00> : vector<64x8xf32>
    %123 = tpu.matmul %120, %122, %cst_148 {dimension_numbers = #tpu.dot_dimension_numbers<[1], [0], [0], [1], [0, 0, 1, 1], [], []>} : vector<64x8xf32>, vector<8x8xf32>, vector<64x8xf32> -> vector<64x8xf32>
    %124 = arith.addf %118, %123 : vector<64x8xf32>
    %c1_149 = arith.constant 1 : index
    %c0_150 = arith.constant 0 : index
    %c0_151 = arith.constant 0 : index
    %125 = tpu.strided_load %arg8[%c1_149, %c0_150, %c0_151] {strides = array<i32: 1, 2, 1>} : memref<9x18x8xf32, #tpu.memory_space<vmem>>, vector<8x8x8xf32>
    %126 = vector.shape_cast %125 : vector<8x8x8xf32> to vector<64x8xf32>
    %c6_152 = arith.constant 6 : index
    %c0_153 = arith.constant 0 : index
    %c0_154 = arith.constant 0 : index
    %127 = vector.load %arg3[%c6_152, %c0_153, %c0_154] : memref<9x8x8xf32, #tpu.memory_space<vmem>>, vector<1x8x8xf32>
    %128 = vector.shape_cast %127 : vector<1x8x8xf32> to vector<8x8xf32>
    %cst_155 = arith.constant dense<0.000000e+00> : vector<64x8xf32>
    %129 = tpu.matmul %126, %128, %cst_155 {dimension_numbers = #tpu.dot_dimension_numbers<[1], [0], [0], [1], [0, 0, 1, 1], [], []>} : vector<64x8xf32>, vector<8x8xf32>, vector<64x8xf32> -> vector<64x8xf32>
    %130 = arith.addf %124, %129 : vector<64x8xf32>
    %c1_156 = arith.constant 1 : index
    %c1_157 = arith.constant 1 : index
    %c0_158 = arith.constant 0 : index
    %131 = tpu.strided_load %arg8[%c1_156, %c1_157, %c0_158] {strides = array<i32: 1, 2, 1>} : memref<9x18x8xf32, #tpu.memory_space<vmem>>, vector<8x8x8xf32>
    %132 = vector.shape_cast %131 : vector<8x8x8xf32> to vector<64x8xf32>
    %c7_159 = arith.constant 7 : index
    %c0_160 = arith.constant 0 : index
    %c0_161 = arith.constant 0 : index
    %133 = vector.load %arg3[%c7_159, %c0_160, %c0_161] : memref<9x8x8xf32, #tpu.memory_space<vmem>>, vector<1x8x8xf32>
    %134 = vector.shape_cast %133 : vector<1x8x8xf32> to vector<8x8xf32>
    %cst_162 = arith.constant dense<0.000000e+00> : vector<64x8xf32>
    %135 = tpu.matmul %132, %134, %cst_162 {dimension_numbers = #tpu.dot_dimension_numbers<[1], [0], [0], [1], [0, 0, 1, 1], [], []>} : vector<64x8xf32>, vector<8x8xf32>, vector<64x8xf32> -> vector<64x8xf32>
    %136 = arith.addf %130, %135 : vector<64x8xf32>
    %c1_163 = arith.constant 1 : index
    %c2_164 = arith.constant 2 : index
    %c0_165 = arith.constant 0 : index
    %137 = tpu.strided_load %arg8[%c1_163, %c2_164, %c0_165] {strides = array<i32: 1, 2, 1>} : memref<9x18x8xf32, #tpu.memory_space<vmem>>, vector<8x8x8xf32>
    %138 = vector.shape_cast %137 : vector<8x8x8xf32> to vector<64x8xf32>
    %c8_166 = arith.constant 8 : index
    %c0_167 = arith.constant 0 : index
    %c0_168 = arith.constant 0 : index
    %139 = vector.load %arg3[%c8_166, %c0_167, %c0_168] : memref<9x8x8xf32, #tpu.memory_space<vmem>>, vector<1x8x8xf32>
    %140 = vector.shape_cast %139 : vector<1x8x8xf32> to vector<8x8xf32>
    %cst_169 = arith.constant dense<0.000000e+00> : vector<64x8xf32>
    %141 = tpu.matmul %138, %140, %cst_169 {dimension_numbers = #tpu.dot_dimension_numbers<[1], [0], [0], [1], [0, 0, 1, 1], [], []>} : vector<64x8xf32>, vector<8x8xf32>, vector<64x8xf32> -> vector<64x8xf32>
    %142 = arith.addf %136, %141 : vector<64x8xf32>
    %c0_170 = arith.constant 0 : index
    %c0_171 = arith.constant 0 : index
    %143 = vector.load %arg5[%c0_170, %c0_171] : memref<1x8xf32, #tpu.memory_space<vmem>>, vector<1x8xf32>
    %144 = vector.broadcast %143 : vector<1x8xf32> to vector<64x8xf32>
    %145 = arith.addf %142, %144 : vector<64x8xf32>
    %146 = vector.shape_cast %145 : vector<64x8xf32> to vector<8x8x8xf32>
    %147 = vector.extract_strided_slice %146 {offsets = [0, 0, 0], sizes = [8, 1, 8], strides = [1, 1, 1]} : vector<8x8x8xf32> to vector<8x1x8xf32>
    %148 = vector.shape_cast %147 : vector<8x1x8xf32> to vector<8x8xf32>
    %149 = vector.extract_strided_slice %146 {offsets = [0, 1, 0], sizes = [8, 1, 8], strides = [1, 1, 1]} : vector<8x8x8xf32> to vector<8x1x8xf32>
    %150 = vector.shape_cast %149 : vector<8x1x8xf32> to vector<8x8xf32>
    %151 = vector.extract_strided_slice %146 {offsets = [0, 2, 0], sizes = [8, 1, 8], strides = [1, 1, 1]} : vector<8x8x8xf32> to vector<8x1x8xf32>
    %152 = vector.shape_cast %151 : vector<8x1x8xf32> to vector<8x8xf32>
    %153 = vector.extract_strided_slice %146 {offsets = [0, 3, 0], sizes = [8, 1, 8], strides = [1, 1, 1]} : vector<8x8x8xf32> to vector<8x1x8xf32>
    %154 = vector.shape_cast %153 : vector<8x1x8xf32> to vector<8x8xf32>
    %155 = vector.extract_strided_slice %146 {offsets = [0, 4, 0], sizes = [8, 1, 8], strides = [1, 1, 1]} : vector<8x8x8xf32> to vector<8x1x8xf32>
    %156 = vector.shape_cast %155 : vector<8x1x8xf32> to vector<8x8xf32>
    %157 = vector.extract_strided_slice %146 {offsets = [0, 5, 0], sizes = [8, 1, 8], strides = [1, 1, 1]} : vector<8x8x8xf32> to vector<8x1x8xf32>
    %158 = vector.shape_cast %157 : vector<8x1x8xf32> to vector<8x8xf32>
    %159 = vector.extract_strided_slice %146 {offsets = [0, 6, 0], sizes = [8, 1, 8], strides = [1, 1, 1]} : vector<8x8x8xf32> to vector<8x1x8xf32>
    %160 = vector.shape_cast %159 : vector<8x1x8xf32> to vector<8x8xf32>
    %161 = vector.extract_strided_slice %146 {offsets = [0, 7, 0], sizes = [8, 1, 8], strides = [1, 1, 1]} : vector<8x8x8xf32> to vector<8x1x8xf32>
    %162 = vector.shape_cast %161 : vector<8x1x8xf32> to vector<8x8xf32>
    %163 = tpu.concatenate %148, %150, %152, %154, %156, %158, %160, %162 in 1 : vector<8x8xf32>, vector<8x8xf32>, vector<8x8xf32>, vector<8x8xf32>, vector<8x8xf32>, vector<8x8xf32>, vector<8x8xf32>, vector<8x8xf32> -> vector<8x64xf32>
    %c0_172 = arith.constant 0 : index
    %c0_173 = arith.constant 0 : index
    %c0_174 = arith.constant 0 : index
    %164 = vector.load %arg6[%c0_172, %c0_173, %c0_174] : memref<1x8x64xf32, #tpu.memory_space<vmem>>, vector<1x8x64xf32>
    %165 = vector.shape_cast %164 : vector<1x8x64xf32> to vector<8x64xf32>
    %166 = vector.shape_cast %163 : vector<8x64xf32> to vector<1x8x64xf32>
    tpu.vector_store %arg6[%c0_172, %c0_173, %c0_174], %166 {strides = array<i32>} : memref<1x8x64xf32, #tpu.memory_space<vmem>>, vector<1x8x64xf32>,
    return
  }
  func.func @transform_0(%arg0: i32) -> (i32, i32, i32, i32) {
    %c0_i32 = arith.constant 0 : i32
    %c0_i32_0 = arith.constant 0 : i32
    %c0_i32_1 = arith.constant 0 : i32
    %c0_i32_2 = arith.constant 0 : i32
    return %arg0, %c0_i32, %c0_i32_0, %c0_i32_1 : i32, i32, i32, i32
  }
  func.func @transform_1(%arg0: i32) -> (i32, i32, i32) {
    %c0_i32 = arith.constant 0 : i32
    %c0_i32_0 = arith.constant 0 : i32
    %c0_i32_1 = arith.constant 0 : i32
    %c0_i32_2 = arith.constant 0 : i32
    return %c0_i32, %c0_i32_0, %c0_i32_1 : i32, i32, i32
  }
  func.func @transform_2(%arg0: i32) -> (i32, i32, i32) {
    %c0_i32 = arith.constant 0 : i32
    %c0_i32_0 = arith.constant 0 : i32
    %c0_i32_1 = arith.constant 0 : i32
    %c0_i32_2 = arith.constant 0 : i32
    return %c0_i32, %c0_i32_0, %c0_i32_1 : i32, i32, i32
  }
  func.func @transform_3(%arg0: i32) -> (i32, i32) {
    %c0_i32 = arith.constant 0 : i32
    %c0_i32_0 = arith.constant 0 : i32
    %c0_i32_1 = arith.constant 0 : i32
    return %c0_i32, %c0_i32_0 : i32, i32
  }
  func.func @transform_4(%arg0: i32) -> (i32, i32) {
    %c0_i32 = arith.constant 0 : i32
    %c0_i32_0 = arith.constant 0 : i32
    %c0_i32_1 = arith.constant 0 : i32
    return %c0_i32, %c0_i32_0 : i32, i32
  }
  func.func @transform_5(%arg0: i32) -> (i32, i32, i32) {
    %c0_i32 = arith.constant 0 : i32
    %c0_i32_0 = arith.constant 0 : i32
    %c0_i32_1 = arith.constant 0 : i32
    return %arg0, %c0_i32, %c0_i32_0 : i32, i32, i32
  }
}

</mosaic_0001>

<llo_original>
// kernel: double_conv_relu.1
$region0: #{double_conv_relu.1}
  #allocation0 [shape = 'u32[]', space=smem, size = 0x4, offset = 0x4, fixed_abs, tag = 'smem constant byte address 0x4 - core index']
  #allocation1 [shape = 'u32[144,128]{1,0:T(1,128)}', space=vmem, size = 0x12000, scoped, tag = 'internal scratch']
  #allocation2 [shape = 'f32[18,18,4]{2,1,0:T(8,128)}', space=vmem, size = 0x36000, scoped, tag = 'scratch operand']
  #allocation3 [shape = 'f32[9,18,8]{2,1,0:T(8,128)}', space=vmem, size = 0x1b000, scoped, tag = 'scratch operand']
  #allocation4 [shape = 'f32[9,18,8]{2,1,0:T(8,128)}', space=vmem, size = 0x1b000, scoped, tag = 'scratch operand']
  %s0 = inlined_call_operand.vmem [shape: f32[2,16,16,4], index: 0, kind: input, shape index: {}]
  %s1 = inlined_call_operand.vmem [shape: f32[9,4,8], index: 1, kind: input, shape index: {}]
  %s2 = inlined_call_operand.vmem [shape: f32[9,8,8], index: 2, kind: input, shape index: {}]
  %s3 = inlined_call_operand.vmem [shape: f32[1,8], index: 3, kind: input, shape index: {}]
  %s4 = inlined_call_operand.vmem [shape: f32[1,8], index: 4, kind: input, shape index: {}]
  %s5 = inlined_call_operand.vmem [shape: f32[2,8,64], index: 5, kind: output, shape index: {}]
  %s6 = sld [smem:[#allocation0]]
  $region53: #{double_conv_relu.1} parent=0
    _
  %s8 = ssub.s32 1, %s6
  %s9 = scalar_select 0, %s8, %s6
  loop: start=0, step=1, limit=4
  $region2: #{double_conv_relu.1} parent=0 // loop_pre_header
    _
  $region3: #{double_conv_relu.1} parent=0 // loop_header
    %s11 = sphi 0, %s15
    %p12 = scmp.ge.s32.totalorder %s11, 4
    %s21 = sphi 0, %s23
    %s24 = sphi 0, %s21
    %s25 = sphi 0, %s24
    %s41 = sphi 0, %s25
    %s45 = sphi 0, %s45
    %s47 = sphi 0, %s45
    %s48 = sphi 0, %s47
    %s62 = sphi 0, %s48
    %s66 = sphi 0, %s66
    %s68 = sphi 0, %s66
    %s69 = sphi 0, %s68
    %s83 = sphi 0, %s69
    %s87 = sphi 0, %s87
    %s89 = sphi 0, %s87
    %s90 = sphi 0, %s89
    %s104 = sphi 0, %s90
    %s108 = sphi 0, %s108
    %s110 = sphi 0, %s108
    %s111 = sphi 0, %s110
    %s125 = sphi 0, %s111
    %s131 = sphi 0, %s133
    %s134 = sphi 0, %s131
    %s135 = sphi 0, %s134
    %s151 = sphi 0, %s135
  $region4: #{double_conv_relu.1} parent=0 // loop_header_branch
    %14 = sbr.rel (%p12) target = $region8
  $region5: #{double_conv_relu.1} parent=0 // loop_body
    %s16 = ssub.s32 %s11, 1
    %s17 = ssub.s32 %s11, 2
    %s18 = sadd.s32 %s11, 1
    %s19 = ssub.s32 %s11, %s18
    %p20 = scmp.eq.s32.totalorder %s19, 0
    %s22 = sadd.s32 %s21, 1
    %s23 = scalar_select %p20, %s21, %s22
    %p26 = pneg %p20
    %p27 = scmp.eq.s32.totalorder %s11, 1
    %p28 = por %p26, %p27
    %p29 = scmp.ne.s32.totalorder %s21, %s24
    %p30 = scmp.eq.s32.totalorder %s11, 0
    %p31 = por %p29, %p30
    %p32 = scmp.ne.s32.totalorder %s21, %s24
    %p33 = scmp.eq.s32.totalorder %s16, 1
    %p34 = por %p32, %p33
    %p35 = scmp.ne.s32.totalorder %s24, %s25
    %p36 = scmp.eq.s32.totalorder %s16, 0
    %p37 = por %p35, %p36
    %p38 = scmp.ne.s32.totalorder %s24, %s25
    %p39 = scmp.eq.s32.totalorder %s17, 1
    %p40 = por %p38, %p39
    %p42 = scmp.ne.s32.totalorder %s25, %s41
    %p43 = scmp.eq.s32.totalorder %s17, 0
    %p44 = por %p42, %p43
    %s46 = sadd.s32 %s45, 1
    %p49 = scmp.eq.s32.totalorder %s11, 1
    %p50 = scmp.ne.s32.totalorder %s45, %s47
    %p51 = scmp.eq.s32.totalorder %s11, 0
    %p52 = por %p50, %p51
    %p53 = scmp.ne.s32.totalorder %s45, %s47
    %p54 = scmp.eq.s32.totalorder %s16, 1
    %p55 = por %p53, %p54
    %p56 = scmp.ne.s32.totalorder %s47, %s48
    %p57 = scmp.eq.s32.totalorder %s16, 0
    %p58 = por %p56, %p57
    %p59 = scmp.ne.s32.totalorder %s47, %s48
    %p60 = scmp.eq.s32.totalorder %s17, 1
    %p61 = por %p59, %p60
    %p63 = scmp.ne.s32.totalorder %s48, %s62
    %p64 = scmp.eq.s32.totalorder %s17, 0
    %p65 = por %p63, %p64
    %s67 = sadd.s32 %s66, 1
    %p70 = scmp.eq.s32.totalorder %s11, 1
    %p71 = scmp.ne.s32.totalorder %s66, %s68
    %p72 = scmp.eq.s32.totalorder %s11, 0
    %p73 = por %p71, %p72
    %p74 = scmp.ne.s32.totalorder %s66, %s68
    %p75 = scmp.eq.s32.totalorder %s16, 1
    %p76 = por %p74, %p75
    %p77 = scmp.ne.s32.totalorder %s68, %s69
    %p78 = scmp.eq.s32.totalorder %s16, 0
    %p79 = por %p77, %p78
    %p80 = scmp.ne.s32.totalorder %s68, %s69
    %p81 = scmp.eq.s32.totalorder %s17, 1
    %p82 = por %p80, %p81
    %p84 = scmp.ne.s32.totalorder %s69, %s83
    %p85 = scmp.eq.s32.totalorder %s17, 0
    %p86 = por %p84, %p85
    %s88 = sadd.s32 %s87, 1
    %p91 = scmp.eq.s32.totalorder %s11, 1
    %p92 = scmp.ne.s32.totalorder %s87, %s89
    %p93 = scmp.eq.s32.totalorder %s11, 0
    %p94 = por %p92, %p93
    %p95 = scmp.ne.s32.totalorder %s87, %s89
    %p96 = scmp.eq.s32.totalorder %s16, 1
    %p97 = por %p95, %p96
    %p98 = scmp.ne.s32.totalorder %s89, %s90
    %p99 = scmp.eq.s32.totalorder %s16, 0
    %p100 = por %p98, %p99
    %p101 = scmp.ne.s32.totalorder %s89, %s90
    %p102 = scmp.eq.s32.totalorder %s17, 1
    %p103 = por %p101, %p102
    %p105 = scmp.ne.s32.totalorder %s90, %s104
    %p106 = scmp.eq.s32.totalorder %s17, 0
    %p107 = por %p105, %p106
    %s109 = sadd.s32 %s108, 1
    %p112 = scmp.eq.s32.totalorder %s11, 1
    %p113 = scmp.ne.s32.totalorder %s108, %s110
    %p114 = scmp.eq.s32.totalorder %s11, 0
    %p115 = por %p113, %p114
    %p116 = scmp.ne.s32.totalorder %s108, %s110
    %p117 = scmp.eq.s32.totalorder %s16, 1
    %p118 = por %p116, %p117
    %p119 = scmp.ne.s32.totalorder %s110, %s111
    %p120 = scmp.eq.s32.totalorder %s16, 0
    %p121 = por %p119, %p120
    %p122 = scmp.ne.s32.totalorder %s110, %s111
    %p123 = scmp.eq.s32.totalorder %s17, 1
    %p124 = por %p122, %p123
    %p126 = scmp.ne.s32.totalorder %s111, %s125
    %p127 = scmp.eq.s32.totalorder %s17, 0
    %p128 = por %p126, %p127
    %s129 = ssub.s32 %s11, %s18
    %p130 = scmp.eq.s32.totalorder %s129, 0
    %s132 = sadd.s32 %s131, 1
    %s133 = scalar_select %p130, %s131, %s132
    %p136 = pneg %p130
    %p137 = scmp.eq.s32.totalorder %s11, 1
    %p138 = por %p136, %p137
    %p139 = scmp.ne.s32.totalorder %s131, %s134
    %p140 = scmp.eq.s32.totalorder %s11, 0
    %p141 = por %p139, %p140
    %p142 = scmp.ne.s32.totalorder %s131, %s134
    %p143 = scmp.eq.s32.totalorder %s16, 1
    %p144 = por %p142, %p143
    %p145 = scmp.ne.s32.totalorder %s134, %s135
    %p146 = scmp.eq.s32.totalorder %s16, 0
    %p147 = por %p145, %p146
    %p148 = scmp.ne.s32.totalorder %s134, %s135
    %p149 = scmp.eq.s32.totalorder %s17, 1
    %p150 = por %p148, %p149
    %p152 = scmp.ne.s32.totalorder %s135, %s151
    %p153 = scmp.eq.s32.totalorder %s17, 0
    %p154 = por %p152, %p153
    %p155 = scmp.le.s32.totalorder 1, %s11
    %p156 = scmp.lt.s32.totalorder %s11, 3
    %p157 = pnand %p155, %p156
    %p158 = pneg %p157
    // Predicated region
    $region9: #{double_conv_relu.1} parent=5 // pred_check
      _
    $region10: #{double_conv_relu.1} parent=5 // pred_check_branch
      %160 = sbr.rel (%p157) target = $region12
    $region11: #{double_conv_relu.1} parent=5 // pred_region
      %s161 = ssub.s32 %s11, 1
      // Predicated region
      $region13: #{double_conv_relu.1} parent=11 // pred_check
        %p162 = pneg %p58
      $region14: #{double_conv_relu.1} parent=11 // pred_check_branch
        %164 = sbr.rel (%p162) target = $region16
      $region15: #{double_conv_relu.1} parent=11 // pred_region
        _
      $region16: #{double_conv_relu.1} parent=11 // pred_fallthru
        _
      // Predicated region
      $region17: #{double_conv_relu.1} parent=11 // pred_check
        %p165 = pneg %p79
      $region18: #{double_conv_relu.1} parent=11 // pred_check_branch
        %167 = sbr.rel (%p165) target = $region20
      $region19: #{double_conv_relu.1} parent=11 // pred_region
        _
      $region20: #{double_conv_relu.1} parent=11 // pred_fallthru
        _
      // Predicated region
      $region21: #{double_conv_relu.1} parent=11 // pred_check
        %p168 = pneg %p100
      $region22: #{double_conv_relu.1} parent=11 // pred_check_branch
        %170 = sbr.rel (%p168) target = $region24
      $region23: #{double_conv_relu.1} parent=11 // pred_region
        _
      $region24: #{double_conv_relu.1} parent=11 // pred_fallthru
        _
      // Predicated region
      $region25: #{double_conv_relu.1} parent=11 // pred_check
        %p171 = pneg %p121
      $region26: #{double_conv_relu.1} parent=11 // pred_check_branch
        %173 = sbr.rel (%p171) target = $region28
      $region27: #{double_conv_relu.1} parent=11 // pred_region
        _
      $region28: #{double_conv_relu.1} parent=11 // pred_fallthru
        _
    $region12: #{double_conv_relu.1} parent=5 // pred_fallthru
      _
    %p174 = scmp.lt.s32.totalorder %s11, 2
    // Predicated region
    $region29: #{double_conv_relu.1} parent=5 // pred_check
      %p175 = pneg %p174
    $region30: #{double_conv_relu.1} parent=5 // pred_check_branch
      %177 = sbr.rel (%p175) target = $region32
    $region31: #{double_conv_relu.1} parent=5 // pred_region
      // Predicated region
      $region33: #{double_conv_relu.1} parent=31 // pred_check
        %p178 = pneg %p31
      $region34: #{double_conv_relu.1} parent=31 // pred_check_branch
        %180 = sbr.rel (%p178) target = $region36
      $region35: #{double_conv_relu.1} parent=31 // pred_region
        %p181 = scmp.lt.s32.totalorder %s11, 1
        %s182 = scalar_select %p181, %s11, 1
        %s183 = smul.addr %s182, 32
        %s184 = smul.addr %s183, 8
        %s185 = scalar_lea.vmem %s0, %s184
      $region36: #{double_conv_relu.1} parent=31 // pred_fallthru
        _
    $region32: #{double_conv_relu.1} parent=5 // pred_fallthru
      _
    %p186 = scmp.le.s32.totalorder 1, %s11
    %p187 = scmp.lt.s32.totalorder %s11, 3
    %p188 = pnand %p186, %p187
    %p189 = pneg %p188
    // Predicated region
    $region37: #{double_conv_relu.1} parent=5 // pred_check
      _
    $region38: #{double_conv_relu.1} parent=5 // pred_check_branch
      %191 = sbr.rel (%p188) target = $region40
    $region39: #{double_conv_relu.1} parent=5 // pred_region
      %s192 = ssub.s32 %s11, 1
      %p193 = scmp.lt.s32.totalorder %s16, 1
      %s194 = scalar_select %p193, %s16, 1
      %s195 = smul.addr %s194, 32
      %s196 = smul.addr %s195, 8
      %s197 = scalar_lea.vmem %s0, %s196
      %p198 = pneg %p37
      %p199 = pneg %p34
      %p200 = pneg %p58
      %p201 = pneg %p55
      %p202 = pneg %p79
      %p203 = pneg %p76
      %p204 = pneg %p100
      %p205 = pneg %p97
      %p206 = pneg %p121
      %p207 = pneg %p118
      %p208 = pneg %p147
      %p209 = pneg %p144
      %p210 = scmp.lt.s32.totalorder %s16, 1
      %s211 = scalar_select %p210, %s16, 1
      %s212 = smul.addr %s211, 8
      %s213 = scalar_lea.vmem %s5, %s212
      %p214 = scmp.lt.s32.totalorder %s16, 1
      %s215 = scalar_select %p214, %s16, 1
      %s216 = smul.addr %s215, 32
      %s217 = smul.addr %s216, 8
      %s218 = scalar_lea.vmem %s0, %s217
      %p219 = scmp.lt.s32.totalorder %s16, 1
      %s220 = scalar_select %p219, %s16, 1
      %s221 = smul.addr %s220, 8
      %s222 = scalar_lea.vmem %s5, %s221
      %vm223 = vcmask 31744
      %224 = vst.msk [vmem:[#allocation2] sm:$0xff] %vm223, 0.0
      %225 = vst.msk [vmem:[#allocation2 + $0x8] sm:$0xff] %vm223, 0.0
      %vm226 = vcmask 25600
      %227 = vst.msk [vmem:[#allocation2 + $0x10] sm:$0x3] %vm226, 0.0
      %s228 = scalar_lea.vmem [#allocation2], 408
      %229 = vst.msk [vmem:[%s228] sm:$0xff] %vm223, 0.0
      %230 = vst.msk [vmem:[%s228 + $0x8] sm:$0xff] %vm223, 0.0
      %231 = vst.msk [vmem:[%s228 + $0x10] sm:$0x3] %vm226, 0.0
      %vm232 = vcmask 24576
      %233 = vst.msk [vmem:[#allocation2] sm:$0x1] %vm232, 0.0
      %234 = vst.msk [vmem:[#allocation2 + $0x18] sm:$0x1] %vm232, 0.0
      %235 = vst.msk [vmem:[#allocation2 + $0x30] sm:$0x1] %vm232, 0.0
      %236 = vst.msk [vmem:[#allocation2 + $0x48] sm:$0x1] %vm232, 0.0
      %237 = vst.msk [vmem:[#allocation2 + $0x60] sm:$0x1] %vm232, 0.0
      %238 = vst.msk [vmem:[#allocation2 + $0x78] sm:$0x1] %vm232, 0.0
      %239 = vst.msk [vmem:[#allocation2 + $0x90] sm:$0x1] %vm232, 0.0
      %240 = vst.msk [vmem:[#allocation2 + $0xa8] sm:$0x1] %vm232, 0.0
      %241 = vst.msk [vmem:[#allocation2 + $0xc0] sm:$0x1] %vm232, 0.0
      %242 = vst.msk [vmem:[#allocation2 + $0xd8] sm:$0x1] %vm232, 0.0
      %243 = vst.msk [vmem:[#allocation2 + $0xf0] sm:$0x1] %vm232, 0.0
      %244 = vst.msk [vmem:[#allocation2 + $0x108] sm:$0x1] %vm232, 0.0
      %245 = vst.msk [vmem:[#allocation2 + $0x120] sm:$0x1] %vm232, 0.0
      %246 = vst.msk [vmem:[#allocation2 + $0x138] sm:$0x1] %vm232, 0.0
      %247 = vst.msk [vmem:[#allocation2 + $0x150] sm:$0x1] %vm232, 0.0
      %248 = vst.msk [vmem:[#allocation2 + $0x168] sm:$0x1] %vm232, 0.0
      %249 = vst.msk [vmem:[#allocation2 + $0x180] sm:$0x1] %vm232, 0.0
      %250 = vst.msk [vmem:[#allocation2 + $0x198] sm:$0x1] %vm232, 0.0
      %251 = vst.msk [vmem:[#allocation2 + $0x11] sm:$0x1] %vm232, 0.0
      %252 = vst.msk [vmem:[#allocation2 + $0x29] sm:$0x1] %vm232, 0.0
      %253 = vst.msk [vmem:[#allocation2 + $0x41] sm:$0x1] %vm232, 0.0
      %254 = vst.msk [vmem:[#allocation2 + $0x59] sm:$0x1] %vm232, 0.0
      %255 = vst.msk [vmem:[#allocation2 + $0x71] sm:$0x1] %vm232, 0.0
      %256 = vst.msk [vmem:[#allocation2 + $0x89] sm:$0x1] %vm232, 0.0
      %257 = vst.msk [vmem:[#allocation2 + $0xa1] sm:$0x1] %vm232, 0.0
      %258 = vst.msk [vmem:[#allocation2 + $0xb9] sm:$0x1] %vm232, 0.0
      %259 = vst.msk [vmem:[#allocation2 + $0xd1] sm:$0x1] %vm232, 0.0
      %260 = vst.msk [vmem:[#allocation2 + $0xe9] sm:$0x1] %vm232, 0.0
      %261 = vst.msk [vmem:[#allocation2 + $0x101] sm:$0x1] %vm232, 0.0
      %262 = vst.msk [vmem:[#allocation2 + $0x119] sm:$0x1] %vm232, 0.0
      %263 = vst.msk [vmem:[#allocation2 + $0x131] sm:$0x1] %vm232, 0.0
      %264 = vst.msk [vmem:[#allocation2 + $0x149] sm:$0x1] %vm232, 0.0
      %265 = vst.msk [vmem:[#allocation2 + $0x161] sm:$0x1] %vm232, 0.0
      %266 = vst.msk [vmem:[#allocation2 + $0x179] sm:$0x1] %vm232, 0.0
      %267 = vst.msk [vmem:[#allocation2 + $0x191] sm:$0x1] %vm232, 0.0
      %268 = vst.msk [vmem:[#allocation2 + $0x1a9] sm:$0x1] %vm232, 0.0
      %v269 = vld [vmem:[%s218] sm:$0xff]
      %v270 = vld [vmem:[%s218 + $0x8] sm:$0xff]
      %v271 = vld [vmem:[%s218 + $0x10] sm:$0xff]
      %v272 = vld [vmem:[%s218 + $0x18] sm:$0xff]
      %v273 = vld [vmem:[%s218 + $0x20] sm:$0xff]
      %v274 = vld [vmem:[%s218 + $0x28] sm:$0xff]
      %v275 = vld [vmem:[%s218 + $0x30] sm:$0xff]
      %v276 = vld [vmem:[%s218 + $0x38] sm:$0xff]
      %v277 = vld [vmem:[%s218 + $0x40] sm:$0xff]
      %v278 = vld [vmem:[%s218 + $0x48] sm:$0xff]
      %v279 = vld [vmem:[%s218 + $0x50] sm:$0xff]
      %v280 = vld [vmem:[%s218 + $0x58] sm:$0xff]
      %v281 = vld [vmem:[%s218 + $0x60] sm:$0xff]
      %v282 = vld [vmem:[%s218 + $0x68] sm:$0xff]
      %v283 = vld [vmem:[%s218 + $0x70] sm:$0xff]
      %v284 = vld [vmem:[%s218 + $0x78] sm:$0xff]
      %v285 = vld [vmem:[%s218 + $0x80] sm:$0xff]
      %v286 = vld [vmem:[%s218 + $0x88] sm:$0xff]
      %v287 = vld [vmem:[%s218 + $0x90] sm:$0xff]
      %v288 = vld [vmem:[%s218 + $0x98] sm:$0xff]
      %v289 = vld [vmem:[%s218 + $0xa0] sm:$0xff]
      %v290 = vld [vmem:[%s218 + $0xa8] sm:$0xff]
      %v291 = vld [vmem:[%s218 + $0xb0] sm:$0xff]
      %v292 = vld [vmem:[%s218 + $0xb8] sm:$0xff]
      %v293 = vld [vmem:[%s218 + $0xc0] sm:$0xff]
      %v294 = vld [vmem:[%s218 + $0xc8] sm:$0xff]
      %v295 = vld [vmem:[%s218 + $0xd0] sm:$0xff]
      %v296 = vld [vmem:[%s218 + $0xd8] sm:$0xff]
      %v297 = vld [vmem:[%s218 + $0xe0] sm:$0xff]
      %v298 = vld [vmem:[%s218 + $0xe8] sm:$0xff]
      %v299 = vld [vmem:[%s218 + $0xf0] sm:$0xff]
      %v300 = vld [vmem:[%s218 + $0xf8] sm:$0xff]
      %v301 = vmax.f32 %v269, 0.0
      %v302 = vmax.f32 %v270, 0.0
      %v303 = vmax.f32 %v271, 0.0
      %v304 = vmax.f32 %v272, 0.0
      %v305 = vmax.f32 %v273, 0.0
      %v306 = vmax.f32 %v274, 0.0
      %v307 = vmax.f32 %v275, 0.0
      %v308 = vmax.f32 %v276, 0.0
      %v309 = vmax.f32 %v277, 0.0
      %v310 = vmax.f32 %v278, 0.0
      %v311 = vmax.f32 %v279, 0.0
      %v312 = vmax.f32 %v280, 0.0
      %v313 = vmax.f32 %v281, 0.0
      %v314 = vmax.f32 %v282, 0.0
      %v315 = vmax.f32 %v283, 0.0
      %v316 = vmax.f32 %v284, 0.0
      %v317 = vmax.f32 %v285, 0.0
      %v318 = vmax.f32 %v286, 0.0
      %v319 = vmax.f32 %v287, 0.0
      %v320 = vmax.f32 %v288, 0.0
      %v321 = vmax.f32 %v289, 0.0
      %v322 = vmax.f32 %v290, 0.0
      %v323 = vmax.f32 %v291, 0.0
      %v324 = vmax.f32 %v292, 0.0
      %v325 = vmax.f32 %v293, 0.0
      %v326 = vmax.f32 %v294, 0.0
      %v327 = vmax.f32 %v295, 0.0
      %v328 = vmax.f32 %v296, 0.0
      %v329 = vmax.f32 %v297, 0.0
      %v330 = vmax.f32 %v298, 0.0
      %v331 = vmax.f32 %v299, 0.0
      %v332 = vmax.f32 %v300, 0.0
      %s333 = scalar_lea.vmem [#allocation2], 24
      %334 = vst.msk [vmem:[%s333 + $0x1] sm:$0xff] %vm223, %v301
      %335 = vst.msk [vmem:[%s333 + $0x9] sm:$0xff] %vm223, %v302
      %336 = vst.msk [vmem:[%s333 + $0x19] sm:$0xff] %vm223, %v303
      %337 = vst.msk [vmem:[%s333 + $0x21] sm:$0xff] %vm223, %v304
      %338 = vst.msk [vmem:[%s333 + $0x31] sm:$0xff] %vm223, %v305
      %339 = vst.msk [vmem:[%s333 + $0x39] sm:$0xff] %vm223, %v306
      %340 = vst.msk [vmem:[%s333 + $0x49] sm:$0xff] %vm223, %v307
      %341 = vst.msk [vmem:[%s333 + $0x51] sm:$0xff] %vm223, %v308
      %342 = vst.msk [vmem:[%s333 + $0x61] sm:$0xff] %vm223, %v309
      %343 = vst.msk [vmem:[%s333 + $0x69] sm:$0xff] %vm223, %v310
      %344 = vst.msk [vmem:[%s333 + $0x79] sm:$0xff] %vm223, %v311
      %345 = vst.msk [vmem:[%s333 + $0x81] sm:$0xff] %vm223, %v312
      %346 = vst.msk [vmem:[%s333 + $0x91] sm:$0xff] %vm223, %v313
      %347 = vst.msk [vmem:[%s333 + $0x99] sm:$0xff] %vm223, %v314
      %348 = vst.msk [vmem:[%s333 + $0xa9] sm:$0xff] %vm223, %v315
      %349 = vst.msk [vmem:[%s333 + $0xb1] sm:$0xff] %vm223, %v316
      %350 = vst.msk [vmem:[%s333 + $0xc1] sm:$0xff] %vm223, %v317
      %351 = vst.msk [vmem:[%s333 + $0xc9] sm:$0xff] %vm223, %v318
      %352 = vst.msk [vmem:[%s333 + $0xd9] sm:$0xff] %vm223, %v319
      %353 = vst.msk [vmem:[%s333 + $0xe1] sm:$0xff] %vm223, %v320
      %354 = vst.msk [vmem:[%s333 + $0xf1] sm:$0xff] %vm223, %v321
      %355 = vst.msk [vmem:[%s333 + $0xf9] sm:$0xff] %vm223, %v322
      %356 = vst.msk [vmem:[%s333 + $0x109] sm:$0xff] %vm223, %v323
      %357 = vst.msk [vmem:[%s333 + $0x111] sm:$0xff] %vm223, %v324
      %358 = vst.msk [vmem:[%s333 + $0x121] sm:$0xff] %vm223, %v325
      %359 = vst.msk [vmem:[%s333 + $0x129] sm:$0xff] %vm223, %v326
      %360 = vst.msk [vmem:[%s333 + $0x139] sm:$0xff] %vm223, %v327
      %361 = vst.msk [vmem:[%s333 + $0x141] sm:$0xff] %vm223, %v328
      %362 = vst.msk [vmem:[%s333 + $0x151] sm:$0xff] %vm223, %v329
      %363 = vst.msk [vmem:[%s333 + $0x159] sm:$0xff] %vm223, %v330
      %364 = vst.msk [vmem:[%s333 + $0x169] sm:$0xff] %vm223, %v331
      %365 = vst.msk [vmem:[%s333 + $0x171] sm:$0xff] %vm223, %v332
      %v366 = vld [vmem:[#allocation2] sm:$0xff]
      %v367 = vld [vmem:[#allocation2 + $0x8] sm:$0xff]
      %v368 = vld [vmem:[#allocation2 + $0x18] sm:$0xff]
      %v369 = vld [vmem:[#allocation2 + $0x20] sm:$0xff]
      %v370 = vld [vmem:[#allocation2 + $0x30] sm:$0xff]
      %v371 = vld [vmem:[#allocation2 + $0x38] sm:$0xff]
      %v372 = vld [vmem:[#allocation2 + $0x48] sm:$0xff]
      %v373 = vld [vmem:[#allocation2 + $0x50] sm:$0xff]
      %v374 = vld [vmem:[#allocation2 + $0x60] sm:$0xff]
      %v375 = vld [vmem:[#allocation2 + $0x68] sm:$0xff]
      %v376 = vld [vmem:[#allocation2 + $0x78] sm:$0xff]
      %v377 = vld [vmem:[#allocation2 + $0x80] sm:$0xff]
      %v378 = vld [vmem:[#allocation2 + $0x90] sm:$0xff]
      %v379 = vld [vmem:[#allocation2 + $0x98] sm:$0xff]
      %v380 = vld [vmem:[#allocation2 + $0xa8] sm:$0xff]
      %v381 = vld [vmem:[#allocation2 + $0xb0] sm:$0xff]
      %v382 = vld [vmem:[#allocation2 + $0xc0] sm:$0xff]
      %v383 = vld [vmem:[#allocation2 + $0xc8] sm:$0xff]
      %v384 = vld [vmem:[#allocation2 + $0xd8] sm:$0xff]
      %v385 = vld [vmem:[#allocation2 + $0xe0] sm:$0xff]
      %v386 = vld [vmem:[#allocation2 + $0xf0] sm:$0xff]
      %v387 = vld [vmem:[#allocation2 + $0xf8] sm:$0xff]
      %v388 = vld [vmem:[#allocation2 + $0x108] sm:$0xff]
      %v389 = vld [vmem:[#allocation2 + $0x110] sm:$0xff]
      %v390 = vld [vmem:[#allocation2 + $0x120] sm:$0xff]
      %v391 = vld [vmem:[#allocation2 + $0x128] sm:$0xff]
      %v392 = vld [vmem:[#allocation2 + $0x138] sm:$0xff]
      %v393 = vld [vmem:[#allocation2 + $0x140] sm:$0xff]
      %v394 = vld [vmem:[#allocation2 + $0x150] sm:$0xff]
      %v395 = vld [vmem:[#allocation2 + $0x158] sm:$0xff]
      %v396 = vld [vmem:[#allocation2 + $0x168] sm:$0xff]
      %v397 = vld [vmem:[#allocation2 + $0x170] sm:$0xff]
      %v398 = vld [vmem:[%s1] sm:$0xf]
      %v399 = vld [vmem:[#allocation2 + $0x1] sm:$0xff]
      %v400 = vld [vmem:[#allocation2 + $0x9] sm:$0xff]
      %v401 = vld [vmem:[#allocation2 + $0x19] sm:$0xff]
      %v402 = vld [vmem:[#allocation2 + $0x21] sm:$0xff]
      %v403 = vld [vmem:[#allocation2 + $0x31] sm:$0xff]
      %v404 = vld [vmem:[#allocation2 + $0x39] sm:$0xff]
      %v405 = vld [vmem:[#allocation2 + $0x49] sm:$0xff]
      %v406 = vld [vmem:[#allocation2 + $0x51] sm:$0xff]
      %v407 = vld [vmem:[#allocation2 + $0x61] sm:$0xff]
      %v408 = vld [vmem:[#allocation2 + $0x69] sm:$0xff]
      %v409 = vld [vmem:[#allocation2 + $0x79] sm:$0xff]
      %v410 = vld [vmem:[#allocation2 + $0x81] sm:$0xff]
      %v411 = vld [vmem:[#allocation2 + $0x91] sm:$0xff]
      %v412 = vld [vmem:[#allocation2 + $0x99] sm:$0xff]
      %v413 = vld [vmem:[#allocation2 + $0xa9] sm:$0xff]
      %v414 = vld [vmem:[#allocation2 + $0xb1] sm:$0xff]
      %v415 = vld [vmem:[#allocation2 + $0xc1] sm:$0xff]
      %v416 = vld [vmem:[#allocation2 + $0xc9] sm:$0xff]
      %v417 = vld [vmem:[#allocation2 + $0xd9] sm:$0xff]
      %v418 = vld [vmem:[#allocation2 + $0xe1] sm:$0xff]
      %v419 = vld [vmem:[#allocation2 + $0xf1] sm:$0xff]
      %v420 = vld [vmem:[#allocation2 + $0xf9] sm:$0xff]
      %v421 = vld [vmem:[#allocation2 + $0x109] sm:$0xff]
      %v422 = vld [vmem:[#allocation2 + $0x111] sm:$0xff]
      %v423 = vld [vmem:[#allocation2 + $0x121] sm:$0xff]
      %v424 = vld [vmem:[#allocation2 + $0x129] sm:$0xff]
      %v425 = vld [vmem:[#allocation2 + $0x139] sm:$0xff]
      %v426 = vld [vmem:[#allocation2 + $0x141] sm:$0xff]
      %v427 = vld [vmem:[#allocation2 + $0x151] sm:$0xff]
      %v428 = vld [vmem:[#allocation2 + $0x159] sm:$0xff]
      %v429 = vld [vmem:[#allocation2 + $0x169] sm:$0xff]
      %v430 = vld [vmem:[#allocation2 + $0x171] sm:$0xff]
      %s431 = scalar_lea.vmem %s1, 4
      %v432 = vld [vmem:[%s431] sm:$0xf]
      %v434 = vsel %vm223, %v399, 0
      %v437 = vsel %vm223, %v400, 0
      %v440 = vsel %vm223, %v401, 0
      %v443 = vsel %vm223, %v402, 0
      %v446 = vsel %vm223, %v403, 0
      %v449 = vsel %vm223, %v404, 0
      %v452 = vsel %vm223, %v405, 0
      %v455 = vsel %vm223, %v406, 0
      %v458 = vsel %vm223, %v407, 0
      %v461 = vsel %vm223, %v408, 0
      %v464 = vsel %vm223, %v409, 0
      %v467 = vsel %vm223, %v410, 0
      %v470 = vsel %vm223, %v411, 0
      %v473 = vsel %vm223, %v412, 0
      %v476 = vsel %vm223, %v413, 0
      %v479 = vsel %vm223, %v414, 0
      %v482 = vsel %vm223, %v415, 0
      %v485 = vsel %vm223, %v416, 0
      %v488 = vsel %vm223, %v417, 0
      %v491 = vsel %vm223, %v418, 0
      %v494 = vsel %vm223, %v419, 0
      %v497 = vsel %vm223, %v420, 0
      %v500 = vsel %vm223, %v421, 0
      %v503 = vsel %vm223, %v422, 0
      %v506 = vsel %vm223, %v423, 0
      %v509 = vsel %vm223, %v424, 0
      %v512 = vsel %vm223, %v425, 0
      %v515 = vsel %vm223, %v426, 0
      %v518 = vsel %vm223, %v427, 0
      %v521 = vsel %vm223, %v428, 0
      %v524 = vsel %vm223, %v429, 0
      %v527 = vsel %vm223, %v430, 0
      %vm529 = vcmask 1043456
      %v531 = vsel %vm529, %v432, 0
      %533 = vmatprep.subr.mxu0 0.0
      %534 = vmatpush1.msra.mxu0 %v531
      %535 = vmatprep.subr.mxu0 0.0
      %536 = vmatpush1.msra.mxu0 0.0
      %537 = vmatprep.subr.mxu0 0.0
      %538 = vmatpush1.msra.mxu0 0.0
      %539 = vmatprep.subr.mxu0 0.0
      %540 = vmatpush1.msra.mxu0 0.0
      %541 = vmatprep.subr.mxu0 0.0
      %542 = vmatpush1.msra.mxu0 0.0
      %543 = vmatprep.subr.mxu0 0.0
      %544 = vmatpush1.msra.mxu0 0.0
      %545 = vmatprep.subr.mxu0 0.0
      %546 = vmatpush1.msra.mxu0 0.0
      %547 = vmatprep.subr.mxu0 0.0
      %548 = vmatpush1.msra.mxu0 0.0
      %549 = vmatprep.subr.mxu0 0.0
      %550 = vmatpush1.msra.mxu0 0.0
      %551 = vmatprep.subr.mxu0 0.0
      %552 = vmatpush1.msra.mxu0 0.0
      %553 = vmatprep.subr.mxu0 0.0
      %554 = vmatpush1.msra.mxu0 0.0
      %555 = vmatprep.subr.mxu0 0.0
      %556 = vmatpush1.msra.mxu0 0.0
      %557 = vmatprep.subr.mxu0 0.0
      %558 = vmatpush1.msra.mxu0 0.0
      %559 = vmatprep.subr.mxu0 0.0
      %560 = vmatpush1.msra.mxu0 0.0
      %561 = vmatprep.subr.mxu0 0.0
      %562 = vmatpush1.msra.mxu0 0.0
      %563 = vmatprep.subr.mxu0 0.0
      %564 = vmatpush1.msra.mxu0 0.0
      %565 = vmatprep.subr.mxu0 0.0
      %566 = vmatpush1.msra.mxu0 0.0
      %567 = vmatprep.subr.mxu0 0.0
      %568 = vmatpush1.msra.mxu0 0.0
      %569 = vmatprep.subr.mxu0 0.0
      %570 = vmatpush1.msra.mxu0 0.0
      %571 = vmatprep.subr.mxu0 0.0
      %572 = vmatpush1.msra.mxu0 0.0
      %573 = vmatprep.subr.mxu0 0.0
      %574 = vmatpush1.msra.mxu0 0.0
      %575 = vmatprep.subr.mxu0 0.0
      %576 = vmatpush1.msra.mxu0 0.0
      %577 = vmatprep.subr.mxu0 0.0
      %578 = vmatpush1.msra.mxu0 0.0
      %579 = vmatprep.subr.mxu0 0.0
      %580 = vmatpush1.msra.mxu0 0.0
      %581 = vmatprep.subr.mxu0 0.0
      %582 = vmatpush1.msra.mxu0 0.0
      %583 = vmatprep.subr.mxu0 0.0
      %584 = vmatpush1.msra.mxu0 0.0
      %585 = vmatprep.subr.mxu0 0.0
      %586 = vmatpush1.msra.mxu0 0.0
      %587 = vmatprep.subr.mxu0 0.0
      %588 = vmatpush1.msra.mxu0 0.0
      %589 = vmatprep.subr.mxu0 0.0
      %590 = vmatpush1.msra.mxu0 0.0
      %591 = vmatprep.subr.mxu0 0.0
      %592 = vmatpush1.msra.mxu0 0.0
      %593 = vmatprep.subr.mxu0 0.0
      %594 = vmatpush1.msra.mxu0 0.0
      %595 = vmatprep.subr.mxu0 0.0
      %596 = vmatpush1.msra.mxu0 0.0
      %597 = vmatprep.mubr.f32.mxu0 0.0
      %598 = vmatmul.mubr.f32.gmra.mrb[0].mxu0 %v434
      %v599 = vpop.f32.mrb[0].mxu0
      %v600 = vadd.f32 0.0, %v599
      %v601 = vpop.f32.mrb[0].mxu0
      %602 = vmatprep.mubr.f32.mxu0 0.0
      %603 = vmatmul.mubr.f32.gmra.mrb[0].mxu0 %v437
      %v604 = vpop.f32.mrb[0].mxu0
      %v605 = vadd.f32 0.0, %v604
      %v606 = vpop.f32.mrb[0].mxu0
      %607 = vmatprep.mubr.f32.mxu0 0.0
      %608 = vmatmul.mubr.f32.gmra.mrb[0].mxu0 %v440
      %v609 = vpop.f32.mrb[0].mxu0
      %v610 = vadd.f32 0.0, %v609
      %v611 = vpop.f32.mrb[0].mxu0
      %612 = vmatprep.mubr.f32.mxu0 0.0
      %613 = vmatmul.mubr.f32.gmra.mrb[0].mxu0 %v443
      %v614 = vpop.f32.mrb[0].mxu0
      %v615 = vadd.f32 0.0, %v614
      %v616 = vpop.f32.mrb[0].mxu0
      %617 = vmatprep.mubr.f32.mxu0 0.0
      %618 = vmatmul.mubr.f32.gmra.mrb[0].mxu0 %v446
      %v619 = vpop.f32.mrb[0].mxu0
      %v620 = vadd.f32 0.0, %v619
      %v621 = vpop.f32.mrb[0].mxu0
      %622 = vmatprep.mubr.f32.mxu0 0.0
      %623 = vmatmul.mubr.f32.gmra.mrb[0].mxu0 %v449
      %v624 = vpop.f32.mrb[0].mxu0
      %v625 = vadd.f32 0.0, %v624
      %v626 = vpop.f32.mrb[0].mxu0
      %627 = vmatprep.mubr.f32.mxu0 0.0
      %628 = vmatmul.mubr.f32.gmra.mrb[0].mxu0 %v452
      %v629 = vpop.f32.mrb[0].mxu0
      %v630 = vadd.f32 0.0, %v629
      %v631 = vpop.f32.mrb[0].mxu0
      %632 = vmatprep.mubr.f32.mxu0 0.0
      %633 = vmatmul.mubr.f32.gmra.mrb[0].mxu0 %v455
      %v634 = vpop.f32.mrb[0].mxu0
      %v635 = vadd.f32 0.0, %v634
      %v636 = vpop.f32.mrb[0].mxu0
      %637 = vmatprep.mubr.f32.mxu0 0.0
      %638 = vmatmul.mubr.f32.gmra.mrb[0].mxu0 %v458
      %v639 = vpop.f32.mrb[0].mxu0
      %v640 = vadd.f32 0.0, %v639
      %v641 = vpop.f32.mrb[0].mxu0
      %642 = vmatprep.mubr.f32.mxu0 0.0
      %643 = vmatmul.mubr.f32.gmra.mrb[0].mxu0 %v461
      %v644 = vpop.f32.mrb[0].mxu0
      %v645 = vadd.f32 0.0, %v644
      %v646 = vpop.f32.mrb[0].mxu0
      %647 = vmatprep.mubr.f32.mxu0 0.0
      %648 = vmatmul.mubr.f32.gmra.mrb[0].mxu0 %v464
      %v649 = vpop.f32.mrb[0].mxu0
      %v650 = vadd.f32 0.0, %v649
      %v651 = vpop.f32.mrb[0].mxu0
      %652 = vmatprep.mubr.f32.mxu0 0.0
      %653 = vmatmul.mubr.f32.gmra.mrb[0].mxu0 %v467
      %v654 = vpop.f32.mrb[0].mxu0
      %v655 = vadd.f32 0.0, %v654
      %v656 = vpop.f32.mrb[0].mxu0
      %657 = vmatprep.mubr.f32.mxu0 0.0
      %658 = vmatmul.mubr.f32.gmra.mrb[0].mxu0 %v470
      %v659 = vpop.f32.mrb[0].mxu0
      %v660 = vadd.f32 0.0, %v659
      %v661 = vpop.f32.mrb[0].mxu0
      %662 = vmatprep.mubr.f32.mxu0 0.0
      %663 = vmatmul.mubr.f32.gmra.mrb[0].mxu0 %v473
      %v664 = vpop.f32.mrb[0].mxu0
      %v665 = vadd.f32 0.0, %v664
      %v666 = vpop.f32.mrb[0].mxu0
      %667 = vmatprep.mubr.f32.mxu0 0.0
      %668 = vmatmul.mubr.f32.gmra.mrb[0].mxu0 %v476
      %v669 = vpop.f32.mrb[0].mxu0
      %v670 = vadd.f32 0.0, %v669
      %v671 = vpop.f32.mrb[0].mxu0
      %672 = vmatprep.mubr.f32.mxu0 0.0
      %673 = vmatmul.mubr.f32.gmra.mrb[0].mxu0 %v479
      %v674 = vpop.f32.mrb[0].mxu0
      %v675 = vadd.f32 0.0, %v674
      %v676 = vpop.f32.mrb[0].mxu0
      %677 = vmatprep.mubr.f32.mxu0 0.0
      %678 = vmatmul.mubr.f32.gmra.mrb[0].mxu0 %v482
      %v679 = vpop.f32.mrb[0].mxu0
      %v680 = vadd.f32 0.0, %v679
      %v681 = vpop.f32.mrb[0].mxu0
      %682 = vmatprep.mubr.f32.mxu0 0.0
      %683 = vmatmul.mubr.f32.gmra.mrb[0].mxu0 %v485
      %v684 = vpop.f32.mrb[0].mxu0
      %v685 = vadd.f32 0.0, %v684
      %v686 = vpop.f32.mrb[0].mxu0
      %687 = vmatprep.mubr.f32.mxu0 0.0
      %688 = vmatmul.mubr.f32.gmra.mrb[0].mxu0 %v488
      %v689 = vpop.f32.mrb[0].mxu0
      %v690 = vadd.f32 0.0, %v689
      %v691 = vpop.f32.mrb[0].mxu0
      %692 = vmatprep.mubr.f32.mxu0 0.0
      %693 = vmatmul.mubr.f32.gmra.mrb[0].mxu0 %v491
      %v694 = vpop.f32.mrb[0].mxu0
      %v695 = vadd.f32 0.0, %v694
      %v696 = vpop.f32.mrb[0].mxu0
      %697 = vmatprep.mubr.f32.mxu0 0.0
      %698 = vmatmul.mubr.f32.gmra.mrb[0].mxu0 %v494
      %v699 = vpop.f32.mrb[0].mxu0
      %v700 = vadd.f32 0.0, %v699
      %v701 = vpop.f32.mrb[0].mxu0
      %702 = vmatprep.mubr.f32.mxu0 0.0
      %703 = vmatmul.mubr.f32.gmra.mrb[0].mxu0 %v497
      %v704 = vpop.f32.mrb[0].mxu0
      %v705 = vadd.f32 0.0, %v704
      %v706 = vpop.f32.mrb[0].mxu0
      %707 = vmatprep.mubr.f32.mxu0 0.0
      %708 = vmatmul.mubr.f32.gmra.mrb[0].mxu0 %v500
      %v709 = vpop.f32.mrb[0].mxu0
      %v710 = vadd.f32 0.0, %v709
      %v711 = vpop.f32.mrb[0].mxu0
      %712 = vmatprep.mubr.f32.mxu0 0.0
      %713 = vmatmul.mubr.f32.gmra.mrb[0].mxu0 %v503
      %v714 = vpop.f32.mrb[0].mxu0
      %v715 = vadd.f32 0.0, %v714
      %v716 = vpop.f32.mrb[0].mxu0
      %717 = vmatprep.mubr.f32.mxu0 0.0
      %718 = vmatmul.mubr.f32.gmra.mrb[0].mxu0 %v506
      %v719 = vpop.f32.mrb[0].mxu0
      %v720 = vadd.f32 0.0, %v719
      %v721 = vpop.f32.mrb[0].mxu0
      %722 = vmatprep.mubr.f32.mxu0 0.0
      %723 = vmatmul.mubr.f32.gmra.mrb[0].mxu0 %v509
      %v724 = vpop.f32.mrb[0].mxu0
      %v725 = vadd.f32 0.0, %v724
      %v726 = vpop.f32.mrb[0].mxu0
      %727 = vmatprep.mubr.f32.mxu0 0.0
      %728 = vmatmul.mubr.f32.gmra.mrb[0].mxu0 %v512
      %v729 = vpop.f32.mrb[0].mxu0
      %v730 = vadd.f32 0.0, %v729
      %v731 = vpop.f32.mrb[0].mxu0
      %732 = vmatprep.mubr.f32.mxu0 0.0
      %733 = vmatmul.mubr.f32.gmra.mrb[0].mxu0 %v515
      %v734 = vpop.f32.mrb[0].mxu0
      %v735 = vadd.f32 0.0, %v734
      %v736 = vpop.f32.mrb[0].mxu0
      %737 = vmatprep.mubr.f32.mxu0 0.0
      %738 = vmatmul.mubr.f32.gmra.mrb[0].mxu0 %v518
      %v739 = vpop.f32.mrb[0].mxu0
      %v740 = vadd.f32 0.0, %v739
      %v741 = vpop.f32.mrb[0].mxu0
      %742 = vmatprep.mubr.f32.mxu0 0.0
      %743 = vmatmul.mubr.f32.gmra.mrb[0].mxu0 %v521
      %v744 = vpop.f32.mrb[0].mxu0
      %v745 = vadd.f32 0.0, %v744
      %v746 = vpop.f32.mrb[0].mxu0
      %747 = vmatprep.mubr.f32.mxu0 0.0
      %748 = vmatmul.mubr.f32.gmra.mrb[0].mxu0 %v524
      %v749 = vpop.f32.mrb[0].mxu0
      %v750 = vadd.f32 0.0, %v749
      %v751 = vpop.f32.mrb[0].mxu0
      %752 = vmatprep.mubr.f32.mxu0 0.0
      %753 = vmatmul.mubr.f32.gmra.mrb[0].mxu0 %v527
      %v754 = vpop.f32.mrb[0].mxu0
      %v755 = vadd.f32 0.0, %v754
      %v756 = vpop.f32.mrb[0].mxu0
      %757 = vdwg.mxu0
      %v759 = vsel %vm223, %v366, 0
      %v762 = vsel %vm223, %v367, 0
      %v765 = vsel %vm223, %v368, 0
      %v768 = vsel %vm223, %v369, 0
      %v771 = vsel %vm223, %v370, 0
      %v774 = vsel %vm223, %v371, 0
      %v777 = vsel %vm223, %v372, 0
      %v780 = vsel %vm223, %v373, 0
      %v783 = vsel %vm223, %v374, 0
      %v786 = vsel %vm223, %v375, 0
      %v789 = vsel %vm223, %v376, 0
      %v792 = vsel %vm223, %v377, 0
      %v795 = vsel %vm223, %v378, 0
      %v798 = vsel %vm223, %v379, 0
      %v801 = vsel %vm223, %v380, 0
      %v804 = vsel %vm223, %v381, 0
      %v807 = vsel %vm223, %v382, 0
      %v810 = vsel %vm223, %v383, 0
      %v813 = vsel %vm223, %v384, 0
      %v816 = vsel %vm223, %v385, 0
      %v819 = vsel %vm223, %v386, 0
      %v822 = vsel %vm223, %v387, 0
      %v825 = vsel %vm223, %v388, 0
      %v828 = vsel %vm223, %v389, 0
      %v831 = vsel %vm223, %v390, 0
      %v834 = vsel %vm223, %v391, 0
      %v837 = vsel %vm223, %v392, 0
      %v840 = vsel %vm223, %v393, 0
      %v843 = vsel %vm223, %v394, 0
      %v846 = vsel %vm223, %v395, 0
      %v849 = vsel %vm223, %v396, 0
      %v852 = vsel %vm223, %v397, 0
      %v855 = vsel %vm529, %v398, 0
      %857 = vmatprep.subr.mxu0 0.0
      %858 = vmatpush1.msra.mxu0 %v855
      %859 = vmatprep.subr.mxu0 0.0
      %860 = vmatpush1.msra.mxu0 0.0
      %861 = vmatprep.subr.mxu0 0.0
      %862 = vmatpush1.msra.mxu0 0.0
      %863 = vmatprep.subr.mxu0 0.0
      %864 = vmatpush1.msra.mxu0 0.0
      %865 = vmatprep.subr.mxu0 0.0
      %866 = vmatpush1.msra.mxu0 0.0
      %867 = vmatprep.subr.mxu0 0.0
      %868 = vmatpush1.msra.mxu0 0.0
      %869 = vmatprep.subr.mxu0 0.0
      %870 = vmatpush1.msra.mxu0 0.0
      %871 = vmatprep.subr.mxu0 0.0
      %872 = vmatpush1.msra.mxu0 0.0
      %873 = vmatprep.subr.mxu0 0.0
      %874 = vmatpush1.msra.mxu0 0.0
      %875 = vmatprep.subr.mxu0 0.0
      %876 = vmatpush1.msra.mxu0 0.0
      %877 = vmatprep.subr.mxu0 0.0
      %878 = vmatpush1.msra.mxu0 0.0
      %879 = vmatprep.subr.mxu0 0.0
      %880 = vmatpush1.msra.mxu0 0.0
      %881 = vmatprep.subr.mxu0 0.0
      %882 = vmatpush1.msra.mxu0 0.0
      %883 = vmatprep.subr.mxu0 0.0
      %884 = vmatpush1.msra.mxu0 0.0
      %885 = vmatprep.subr.mxu0 0.0
      %886 = vmatpush1.msra.mxu0 0.0
      %887 = vmatprep.subr.mxu0 0.0
      %888 = vmatpush1.msra.mxu0 0.0
      %889 = vmatprep.subr.mxu0 0.0
      %890 = vmatpush1.msra.mxu0 0.0
      %891 = vmatprep.subr.mxu0 0.0
      %892 = vmatpush1.msra.mxu0 0.0
      %893 = vmatprep.subr.mxu0 0.0
      %894 = vmatpush1.msra.mxu0 0.0
      %895 = vmatprep.subr.mxu0 0.0
      %896 = vmatpush1.msra.mxu0 0.0
      %897 = vmatprep.subr.mxu0 0.0
      %898 = vmatpush1.msra.mxu0 0.0
      %899 = vmatprep.subr.mxu0 0.0
      %900 = vmatpush1.msra.mxu0 0.0
      %901 = vmatprep.subr.mxu0 0.0
      %902 = vmatpush1.msra.mxu0 0.0
      %903 = vmatprep.subr.mxu0 0.0
      %904 = vmatpush1.msra.mxu0 0.0
      %905 = vmatprep.subr.mxu0 0.0
      %906 = vmatpush1.msra.mxu0 0.0
      %907 = vmatprep.subr.mxu0 0.0
      %908 = vmatpush1.msra.mxu0 0.0
      %909 = vmatprep.subr.mxu0 0.0
      %910 = vmatpush1.msra.mxu0 0.0
      %911 = vmatprep.subr.mxu0 0.0
      %912 = vmatpush1.msra.mxu0 0.0
      %913 = vmatprep.subr.mxu0 0.0
      %914 = vmatpush1.msra.mxu0 0.0
      %915 = vmatprep.subr.mxu0 0.0
      %916 = vmatpush1.msra.mxu0 0.0
      %917 = vmatprep.subr.mxu0 0.0
      %918 = vmatpush1.msra.mxu0 0.0
      %919 = vmatprep.subr.mxu0 0.0
      %920 = vmatpush1.msra.mxu0 0.0
      %921 = vmatprep.mubr.f32.mxu0 0.0
      %922 = vmatmul.mubr.f32.gmra.mrb[0].mxu0 %v759
      %v923 = vpop.f32.mrb[0].mxu0
      %v924 = vadd.f32 %v600, %v923
      %v925 = vpop.f32.mrb[0].mxu0
      %926 = vmatprep.mubr.f32.mxu0 0.0
      %927 = vmatmul.mubr.f32.gmra.mrb[0].mxu0 %v762
      %v928 = vpop.f32.mrb[0].mxu0
      %v929 = vadd.f32 %v605, %v928
      %v930 = vpop.f32.mrb[0].mxu0
      %931 = vmatprep.mubr.f32.mxu0 0.0
      %932 = vmatmul.mubr.f32.gmra.mrb[0].mxu0 %v765
      %v933 = vpop.f32.mrb[0].mxu0
      %v934 = vadd.f32 %v610, %v933
      %v935 = vpop.f32.mrb[0].mxu0
      %936 = vmatprep.mubr.f32.mxu0 0.0
      %937 = vmatmul.mubr.f32.gmra.mrb[0].mxu0 %v768
      %v938 = vpop.f32.mrb[0].mxu0
      %v939 = vadd.f32 %v615, %v938
      %v940 = vpop.f32.mrb[0].mxu0
      %941 = vmatprep.mubr.f32.mxu0 0.0
      %942 = vmatmul.mubr.f32.gmra.mrb[0].mxu0 %v771
      %v943 = vpop.f32.mrb[0].mxu0
      %v944 = vadd.f32 %v620, %v943
      %v945 = vpop.f32.mrb[0].mxu0
      %946 = vmatprep.mubr.f32.mxu0 0.0
      %947 = vmatmul.mubr.f32.gmra.mrb[0].mxu0 %v774
      %v948 = vpop.f32.mrb[0].mxu0
      %v949 = vadd.f32 %v625, %v948
      %v950 = vpop.f32.mrb[0].mxu0
      %951 = vmatprep.mubr.f32.mxu0 0.0
      %952 = vmatmul.mubr.f32.gmra.mrb[0].mxu0 %v777
      %v953 = vpop.f32.mrb[0].mxu0
      %v954 = vadd.f32 %v630, %v953
      %v955 = vpop.f32.mrb[0].mxu0
      %956 = vmatprep.mubr.f32.mxu0 0.0
      %957 = vmatmul.mubr.f32.gmra.mrb[0].mxu0 %v780
      %v958 = vpop.f32.mrb[0].mxu0
      %v959 = vadd.f32 %v635, %v958
      %v960 = vpop.f32.mrb[0].mxu0
      %961 = vmatprep.mubr.f32.mxu0 0.0
      %962 = vmatmul.mubr.f32.gmra.mrb[0].mxu0 %v783
      %v963 = vpop.f32.mrb[0].mxu0
      %v964 = vadd.f32 %v640, %v963
      %v965 = vpop.f32.mrb[0].mxu0
      %966 = vmatprep.mubr.f32.mxu0 0.0
      %967 = vmatmul.mubr.f32.gmra.mrb[0].mxu0 %v786
      %v968 = vpop.f32.mrb[0].mxu0
      %v969 = vadd.f32 %v645, %v968
      %v970 = vpop.f32.mrb[0].mxu0
      %971 = vmatprep.mubr.f32.mxu0 0.0
      %972 = vmatmul.mubr.f32.gmra.mrb[0].mxu0 %v789
      %v973 = vpop.f32.mrb[0].mxu0
      %v974 = vadd.f32 %v650, %v973
      %v975 = vpop.f32.mrb[0].mxu0
      %976 = vmatprep.mubr.f32.mxu0 0.0
      %977 = vmatmul.mubr.f32.gmra.mrb[0].mxu0 %v792
      %v978 = vpop.f32.mrb[0].mxu0
      %v979 = vadd.f32 %v655, %v978
      %v980 = vpop.f32.mrb[0].mxu0
      %981 = vmatprep.mubr.f32.mxu0 0.0
      %982 = vmatmul.mubr.f32.gmra.mrb[0].mxu0 %v795
      %v983 = vpop.f32.mrb[0].mxu0
      %v984 = vadd.f32 %v660, %v983
      %v985 = vpop.f32.mrb[0].mxu0
      %986 = vmatprep.mubr.f32.mxu0 0.0
      %987 = vmatmul.mubr.f32.gmra.mrb[0].mxu0 %v798
      %v988 = vpop.f32.mrb[0].mxu0
      %v989 = vadd.f32 %v665, %v988
      %v990 = vpop.f32.mrb[0].mxu0
      %991 = vmatprep.mubr.f32.mxu0 0.0
      %992 = vmatmul.mubr.f32.gmra.mrb[0].mxu0 %v801
      %v993 = vpop.f32.mrb[0].mxu0
      %v994 = vadd.f32 %v670, %v993
      %v995 = vpop.f32.mrb[0].mxu0
      %996 = vmatprep.mubr.f32.mxu0 0.0
      %997 = vmatmul.mubr.f32.gmra.mrb[0].mxu0 %v804
      %v998 = vpop.f32.mrb[0].mxu0
      %v999 = vadd.f32 %v675, %v998
      %v1000 = vpop.f32.mrb[0].mxu0
      %1001 = vmatprep.mubr.f32.mxu0 0.0
      %1002 = vmatmul.mubr.f32.gmra.mrb[0].mxu0 %v807
      %v1003 = vpop.f32.mrb[0].mxu0
      %v1004 = vadd.f32 %v680, %v1003
      %v1005 = vpop.f32.mrb[0].mxu0
      %1006 = vmatprep.mubr.f32.mxu0 0.0
      %1007 = vmatmul.mubr.f32.gmra.mrb[0].mxu0 %v810
      %v1008 = vpop.f32.mrb[0].mxu0
      %v1009 = vadd.f32 %v685, %v1008
      %v1010 = vpop.f32.mrb[0].mxu0
      %1011 = vmatprep.mubr.f32.mxu0 0.0
      %1012 = vmatmul.mubr.f32.gmra.mrb[0].mxu0 %v813
      %v1013 = vpop.f32.mrb[0].mxu0
      %v1014 = vadd.f32 %v690, %v1013
      %v1015 = vpop.f32.mrb[0].mxu0
      %1016 = vmatprep.mubr.f32.mxu0 0.0
      %1017 = vmatmul.mubr.f32.gmra.mrb[0].mxu0 %v816
      %v1018 = vpop.f32.mrb[0].mxu0
      %v1019 = vadd.f32 %v695, %v1018
      %v1020 = vpop.f32.mrb[0].mxu0
      %1021 = vmatprep.mubr.f32.mxu0 0.0
      %1022 = vmatmul.mubr.f32.gmra.mrb[0].mxu0 %v819
      %v1023 = vpop.f32.mrb[0].mxu0
      %v1024 = vadd.f32 %v700, %v1023
      %v1025 = vpop.f32.mrb[0].mxu0
      %1026 = vmatprep.mubr.f32.mxu0 0.0
      %1027 = vmatmul.mubr.f32.gmra.mrb[0].mxu0 %v822
      %v1028 = vpop.f32.mrb[0].mxu0
      %v1029 = vadd.f32 %v705, %v1028
      %v1030 = vpop.f32.mrb[0].mxu0
      %1031 = vmatprep.mubr.f32.mxu0 0.0
      %1032 = vmatmul.mubr.f32.gmra.mrb[0].mxu0 %v825
      %v1033 = vpop.f32.mrb[0].mxu0
      %v1034 = vadd.f32 %v710, %v1033
      %v1035 = vpop.f32.mrb[0].mxu0
      %1036 = vmatprep.mubr.f32.mxu0 0.0
      %1037 = vmatmul.mubr.f32.gmra.mrb[0].mxu0 %v828
      %v1038 = vpop.f32.mrb[0].mxu0
      %v1039 = vadd.f32 %v715, %v1038
      %v1040 = vpop.f32.mrb[0].mxu0
      %1041 = vmatprep.mubr.f32.mxu0 0.0
      %1042 = vmatmul.mubr.f32.gmra.mrb[0].mxu0 %v831
      %v1043 = vpop.f32.mrb[0].mxu0
      %v1044 = vadd.f32 %v720, %v1043
      %v1045 = vpop.f32.mrb[0].mxu0
      %1046 = vmatprep.mubr.f32.mxu0 0.0
      %1047 = vmatmul.mubr.f32.gmra.mrb[0].mxu0 %v834
      %v1048 = vpop.f32.mrb[0].mxu0
      %v1049 = vadd.f32 %v725, %v1048
      %v1050 = vpop.f32.mrb[0].mxu0
      %1051 = vmatprep.mubr.f32.mxu0 0.0
      %1052 = vmatmul.mubr.f32.gmra.mrb[0].mxu0 %v837
      %v1053 = vpop.f32.mrb[0].mxu0
      %v1054 = vadd.f32 %v730, %v1053
      %v1055 = vpop.f32.mrb[0].mxu0
      %1056 = vmatprep.mubr.f32.mxu0 0.0
      %1057 = vmatmul.mubr.f32.gmra.mrb[0].mxu0 %v840
      %v1058 = vpop.f32.mrb[0].mxu0
      %v1059 = vadd.f32 %v735, %v1058
      %v1060 = vpop.f32.mrb[0].mxu0
      %1061 = vmatprep.mubr.f32.mxu0 0.0
      %1062 = vmatmul.mubr.f32.gmra.mrb[0].mxu0 %v843
      %v1063 = vpop.f32.mrb[0].mxu0
      %v1064 = vadd.f32 %v740, %v1063
      %v1065 = vpop.f32.mrb[0].mxu0
      %1066 = vmatprep.mubr.f32.mxu0 0.0
      %1067 = vmatmul.mubr.f32.gmra.mrb[0].mxu0 %v846
      %v1068 = vpop.f32.mrb[0].mxu0
      %v1069 = vadd.f32 %v745, %v1068
      %v1070 = vpop.f32.mrb[0].mxu0
      %1071 = vmatprep.mubr.f32.mxu0 0.0
      %1072 = vmatmul.mubr.f32.gmra.mrb[0].mxu0 %v849
      %v1073 = vpop.f32.mrb[0].mxu0
      %v1074 = vadd.f32 %v750, %v1073
      %v1075 = vpop.f32.mrb[0].mxu0
      %1076 = vmatprep.mubr.f32.mxu0 0.0
      %1077 = vmatmul.mubr.f32.gmra.mrb[0].mxu0 %v852
      %v1078 = vpop.f32.mrb[0].mxu0
      %v1079 = vadd.f32 %v755, %v1078
      %v1080 = vpop.f32.mrb[0].mxu0
      %1081 = vdwg.mxu0
      %v1082 = vld [vmem:[#allocation2 + $0x2] sm:$0xff]
      %v1083 = vld [vmem:[#allocation2 + $0xa] sm:$0xff]
      %v1084 = vld [vmem:[#allocation2 + $0x1a] sm:$0xff]
      %v1085 = vld [vmem:[#allocation2 + $0x22] sm:$0xff]
      %v1086 = vld [vmem:[#allocation2 + $0x32] sm:$0xff]
      %v1087 = vld [vmem:[#allocation2 + $0x3a] sm:$0xff]
      %v1088 = vld [vmem:[#allocation2 + $0x4a] sm:$0xff]
      %v1089 = vld [vmem:[#allocation2 + $0x52] sm:$0xff]
      %v1090 = vld [vmem:[#allocation2 + $0x62] sm:$0xff]
      %v1091 = vld [vmem:[#allocation2 + $0x6a] sm:$0xff]
      %v1092 = vld [vmem:[#allocation2 + $0x7a] sm:$0xff]
      %v1093 = vld [vmem:[#allocation2 + $0x82] sm:$0xff]
      %v1094 = vld [vmem:[#allocation2 + $0x92] sm:$0xff]
      %v1095 = vld [vmem:[#allocation2 + $0x9a] sm:$0xff]
      %v1096 = vld [vmem:[#allocation2 + $0xaa] sm:$0xff]
      %v1097 = vld [vmem:[#allocation2 + $0xb2] sm:$0xff]
      %v1098 = vld [vmem:[#allocation2 + $0xc2] sm:$0xff]
      %v1099 = vld [vmem:[#allocation2 + $0xca] sm:$0xff]
      %v1100 = vld [vmem:[#allocation2 + $0xda] sm:$0xff]
      %v1101 = vld [vmem:[#allocation2 + $0xe2] sm:$0xff]
      %v1102 = vld [vmem:[#allocation2 + $0xf2] sm:$0xff]
      %v1103 = vld [vmem:[#allocation2 + $0xfa] sm:$0xff]
      %v1104 = vld [vmem:[#allocation2 + $0x10a] sm:$0xff]
      %v1105 = vld [vmem:[#allocation2 + $0x112] sm:$0xff]
      %v1106 = vld [vmem:[#allocation2 + $0x122] sm:$0xff]
      %v1107 = vld [vmem:[#allocation2 + $0x12a] sm:$0xff]
      %v1108 = vld [vmem:[#allocation2 + $0x13a] sm:$0xff]
      %v1109 = vld [vmem:[#allocation2 + $0x142] sm:$0xff]
      %v1110 = vld [vmem:[#allocation2 + $0x152] sm:$0xff]
      %v1111 = vld [vmem:[#allocation2 + $0x15a] sm:$0xff]
      %v1112 = vld [vmem:[#allocation2 + $0x16a] sm:$0xff]
      %v1113 = vld [vmem:[#allocation2 + $0x172] sm:$0xff]
      %s1114 = scalar_lea.vmem %s1, 8
      %v1115 = vld [vmem:[%s1114] sm:$0xf]
      %v1117 = vsel %vm223, %v1082, 0
      %v1120 = vsel %vm223, %v1083, 0
      %v1123 = vsel %vm223, %v1084, 0
      %v1126 = vsel %vm223, %v1085, 0
      %v1129 = vsel %vm223, %v1086, 0
      %v1132 = vsel %vm223, %v1087, 0
      %v1135 = vsel %vm223, %v1088, 0
      %v1138 = vsel %vm223, %v1089, 0
      %v1141 = vsel %vm223, %v1090, 0
      %v1144 = vsel %vm223, %v1091, 0
      %v1147 = vsel %vm223, %v1092, 0
      %v1150 = vsel %vm223, %v1093, 0
      %v1153 = vsel %vm223, %v1094, 0
      %v1156 = vsel %vm223, %v1095, 0
      %v1159 = vsel %vm223, %v1096, 0
      %v1162 = vsel %vm223, %v1097, 0
      %v1165 = vsel %vm223, %v1098, 0
      %v1168 = vsel %vm223, %v1099, 0
      %v1171 = vsel %vm223, %v1100, 0
      %v1174 = vsel %vm223, %v1101, 0
      %v1177 = vsel %vm223, %v1102, 0
      %v1180 = vsel %vm223, %v1103, 0
      %v1183 = vsel %vm223, %v1104, 0
      %v1186 = vsel %vm223, %v1105, 0
      %v1189 = vsel %vm223, %v1106, 0
      %v1192 = vsel %vm223, %v1107, 0
      %v1195 = vsel %vm223, %v1108, 0
      %v1198 = vsel %vm223, %v1109, 0
      %v1201 = vsel %vm223, %v1110, 0
      %v1204 = vsel %vm223, %v1111, 0
      %v1207 = vsel %vm223, %v1112, 0
      %v1210 = vsel %vm223, %v1113, 0
      %v1213 = vsel %vm529, %v1115, 0
      %1215 = vmatprep.subr.mxu0 0.0
      %1216 = vmatpush1.msra.mxu0 %v1213
      %1217 = vmatprep.subr.mxu0 0.0
      %1218 = vmatpush1.msra.mxu0 0.0
      %1219 = vmatprep.subr.mxu0 0.0
      %1220 = vmatpush1.msra.mxu0 0.0
      %1221 = vmatprep.subr.mxu0 0.0
      %1222 = vmatpush1.msra.mxu0 0.0
      %1223 = vmatprep.subr.mxu0 0.0
      %1224 = vmatpush1.msra.mxu0 0.0
      %1225 = vmatprep.subr.mxu0 0.0
      %1226 = vmatpush1.msra.mxu0 0.0
      %1227 = vmatprep.subr.mxu0 0.0
      %1228 = vmatpush1.msra.mxu0 0.0
      %1229 = vmatprep.subr.mxu0 0.0
      %1230 = vmatpush1.msra.mxu0 0.0
      %1231 = vmatprep.subr.mxu0 0.0
      %1232 = vmatpush1.msra.mxu0 0.0
      %1233 = vmatprep.subr.mxu0 0.0
      %1234 = vmatpush1.msra.mxu0 0.0
      %1235 = vmatprep.subr.mxu0 0.0
      %1236 = vmatpush1.msra.mxu0 0.0
      %1237 = vmatprep.subr.mxu0 0.0
      %1238 = vmatpush1.msra.mxu0 0.0
      %1239 = vmatprep.subr.mxu0 0.0
      %1240 = vmatpush1.msra.mxu0 0.0
      %1241 = vmatprep.subr.mxu0 0.0
      %1242 = vmatpush1.msra.mxu0 0.0
      %1243 = vmatprep.subr.mxu0 0.0
      %1244 = vmatpush1.msra.mxu0 0.0
      %1245 = vmatprep.subr.mxu0 0.0
      %1246 = vmatpush1.msra.mxu0 0.0
      %1247 = vmatprep.subr.mxu0 0.0
      %1248 = vmatpush1.msra.mxu0 0.0
      %1249 = vmatprep.subr.mxu0 0.0
      %1250 = vmatpush1.msra.mxu0 0.0
      %1251 = vmatprep.subr.mxu0 0.0
      %1252 = vmatpush1.msra.mxu0 0.0
      %1253 = vmatprep.subr.mxu0 0.0
      %1254 = vmatpush1.msra.mxu0 0.0
      %1255 = vmatprep.subr.mxu0 0.0
      %1256 = vmatpush1.msra.mxu0 0.0
      %1257 = vmatprep.subr.mxu0 0.0
      %1258 = vmatpush1.msra.mxu0 0.0
      %1259 = vmatprep.subr.mxu0 0.0
      %1260 = vmatpush1.msra.mxu0 0.0
      %1261 = vmatprep.subr.mxu0 0.0
      %1262 = vmatpush1.msra.mxu0 0.0
      %1263 = vmatprep.subr.mxu0 0.0
      %1264 = vmatpush1.msra.mxu0 0.0
      %1265 = vmatprep.subr.mxu0 0.0
      %1266 = vmatpush1.msra.mxu0 0.0
      %1267 = vmatprep.subr.mxu0 0.0
      %1268 = vmatpush1.msra.mxu0 0.0
      %1269 = vmatprep.subr.mxu0 0.0
      %1270 = vmatpush1.msra.mxu0 0.0
      %1271 = vmatprep.subr.mxu0 0.0
      %1272 = vmatpush1.msra.mxu0 0.0
      %1273 = vmatprep.subr.mxu0 0.0
      %1274 = vmatpush1.msra.mxu0 0.0
      %1275 = vmatprep.subr.mxu0 0.0
      %1276 = vmatpush1.msra.mxu0 0.0
      %1277 = vmatprep.subr.mxu0 0.0
      %1278 = vmatpush1.msra.mxu0 0.0
      %1279 = vmatprep.mubr.f32.mxu0 0.0
      %1280 = vmatmul.mubr.f32.gmra.mrb[0].mxu0 %v1117
      %v1281 = vpop.f32.mrb[0].mxu0
      %v1282 = vadd.f32 0.0, %v1281
      %v1283 = vpop.f32.mrb[0].mxu0
      %1284 = vmatprep.mubr.f32.mxu0 0.0
      %1285 = vmatmul.mubr.f32.gmra.mrb[0].mxu0 %v1120
      %v1286 = vpop.f32.mrb[0].mxu0
      %v1287 = vadd.f32 0.0, %v1286
      %v1288 = vpop.f32.mrb[0].mxu0
      %1289 = vmatprep.mubr.f32.mxu0 0.0
      %1290 = vmatmul.mubr.f32.gmra.mrb[0].mxu0 %v1123
      %v1291 = vpop.f32.mrb[0].mxu0
      %v1292 = vadd.f32 0.0, %v1291
      %v1293 = vpop.f32.mrb[0].mxu0
      %1294 = vmatprep.mubr.f32.mxu0 0.0
      %1295 = vmatmul.mubr.f32.gmra.mrb[0].mxu0 %v1126
      %v1296 = vpop.f32.mrb[0].mxu0
      %v1297 = vadd.f32 0.0, %v1296
      %v1298 = vpop.f32.mrb[0].mxu0
      %1299 = vmatprep.mubr.f32.mxu0 0.0
      %1300 = vmatmul.mubr.f32.gmra.mrb[0].mxu0 %v1129
      %v1301 = vpop.f32.mrb[0].mxu0
      %v1302 = vadd.f32 0.0, %v1301
      %v1303 = vpop.f32.mrb[0].mxu0
      %1304 = vmatprep.mubr.f32.mxu0 0.0
      %1305 = vmatmul.mubr.f32.gmra.mrb[0].mxu0 %v1132
      %v1306 = vpop.f32.mrb[0].mxu0
      %v1307 = vadd.f32 0.0, %v1306
      %v1308 = vpop.f32.mrb[0].mxu0
      %1309 = vmatprep.mubr.f32.mxu0 0.0
      %1310 = vmatmul.mubr.f32.gmra.mrb[0].mxu0 %v1135
      %v1311 = vpop.f32.mrb[0].mxu0
      %v1312 = vadd.f32 0.0, %v1311
      %v1313 = vpop.f32.mrb[0].mxu0
      %1314 = vmatprep.mubr.f32.mxu0 0.0
      %1315 = vmatmul.mubr.f32.gmra.mrb[0].mxu0 %v1138
      %v1316 = vpop.f32.mrb[0].mxu0
      %v1317 = vadd.f32 0.0, %v1316
      %v1318 = vpop.f32.mrb[0].mxu0
      %1319 = vmatprep.mubr.f32.mxu0 0.0
      %1320 = vmatmul.mubr.f32.gmra.mrb[0].mxu0 %v1141
      %v1321 = vpop.f32.mrb[0].mxu0
      %v1322 = vadd.f32 0.0, %v1321
      %v1323 = vpop.f32.mrb[0].mxu0
      %1324 = vmatprep.mubr.f32.mxu0 0.0
      %1325 = vmatmul.mubr.f32.gmra.mrb[0].mxu0 %v1144
      %v1326 = vpop.f32.mrb[0].mxu0
      %v1327 = vadd.f32 0.0, %v1326
      %v1328 = vpop.f32.mrb[0].mxu0
      %1329 = vmatprep.mubr.f32.mxu0 0.0
      %1330 = vmatmul.mubr.f32.gmra.mrb[0].mxu0 %v1147
      %v1331 = vpop.f32.mrb[0].mxu0
      %v1332 = vadd.f32 0.0, %v1331
      %v1333 = vpop.f32.mrb[0].mxu0
      %1334 = vmatprep.mubr.f32.mxu0 0.0
      %1335 = vmatmul.mubr.f32.gmra.mrb[0].mxu0 %v1150
      %v1336 = vpop.f32.mrb[0].mxu0
      %v1337 = vadd.f32 0.0, %v1336
      %v1338 = vpop.f32.mrb[0].mxu0
      %1339 = vmatprep.mubr.f32.mxu0 0.0
      %1340 = vmatmul.mubr.f32.gmra.mrb[0].mxu0 %v1153
      %v1341 = vpop.f32.mrb[0].mxu0
      %v1342 = vadd.f32 0.0, %v1341
      %v1343 = vpop.f32.mrb[0].mxu0
      %1344 = vmatprep.mubr.f32.mxu0 0.0
      %1345 = vmatmul.mubr.f32.gmra.mrb[0].mxu0 %v1156
      %v1346 = vpop.f32.mrb[0].mxu0
      %v1347 = vadd.f32 0.0, %v1346
      %v1348 = vpop.f32.mrb[0].mxu0
      %1349 = vmatprep.mubr.f32.mxu0 0.0
      %1350 = vmatmul.mubr.f32.gmra.mrb[0].mxu0 %v1159
      %v1351 = vpop.f32.mrb[0].mxu0
      %v1352 = vadd.f32 0.0, %v1351
      %v1353 = vpop.f32.mrb[0].mxu0
      %1354 = vmatprep.mubr.f32.mxu0 0.0
      %1355 = vmatmul.mubr.f32.gmra.mrb[0].mxu0 %v1162
      %v1356 = vpop.f32.mrb[0].mxu0
      %v1357 = vadd.f32 0.0, %v1356
      %v1358 = vpop.f32.mrb[0].mxu0
      %1359 = vmatprep.mubr.f32.mxu0 0.0
      %1360 = vmatmul.mubr.f32.gmra.mrb[0].mxu0 %v1165
      %v1361 = vpop.f32.mrb[0].mxu0
      %v1362 = vadd.f32 0.0, %v1361
      %v1363 = vpop.f32.mrb[0].mxu0
      %1364 = vmatprep.mubr.f32.mxu0 0.0
      %1365 = vmatmul.mubr.f32.gmra.mrb[0].mxu0 %v1168
      %v1366 = vpop.f32.mrb[0].mxu0
      %v1367 = vadd.f32 0.0, %v1366
      %v1368 = vpop.f32.mrb[0].mxu0
      %1369 = vmatprep.mubr.f32.mxu0 0.0
      %1370 = vmatmul.mubr.f32.gmra.mrb[0].mxu0 %v1171
      %v1371 = vpop.f32.mrb[0].mxu0
      %v1372 = vadd.f32 0.0, %v1371
      %v1373 = vpop.f32.mrb[0].mxu0
      %1374 = vmatprep.mubr.f32.mxu0 0.0
      %1375 = vmatmul.mubr.f32.gmra.mrb[0].mxu0 %v1174
      %v1376 = vpop.f32.mrb[0].mxu0
      %v1377 = vadd.f32 0.0, %v1376
      %v1378 = vpop.f32.mrb[0].mxu0
      %1379 = vmatprep.mubr.f32.mxu0 0.0
      %1380 = vmatmul.mubr.f32.gmra.mrb[0].mxu0 %v1177
      %v1381 = vpop.f32.mrb[0].mxu0
      %v1382 = vadd.f32 0.0, %v1381
      %v1383 = vpop.f32.mrb[0].mxu0
      %1384 = vmatprep.mubr.f32.mxu0 0.0
      %1385 = vmatmul.mubr.f32.gmra.mrb[0].mxu0 %v1180
      %v1386 = vpop.f32.mrb[0].mxu0
      %v1387 = vadd.f32 0.0, %v1386
      %v1388 = vpop.f32.mrb[0].mxu0
      %1389 = vmatprep.mubr.f32.mxu0 0.0
      %1390 = vmatmul.mubr.f32.gmra.mrb[0].mxu0 %v1183
      %v1391 = vpop.f32.mrb[0].mxu0
      %v1392 = vadd.f32 0.0, %v1391
      %v1393 = vpop.f32.mrb[0].mxu0
      %1394 = vmatprep.mubr.f32.mxu0 0.0
      %1395 = vmatmul.mubr.f32.gmra.mrb[0].mxu0 %v1186
      %v1396 = vpop.f32.mrb[0].mxu0
      %v1397 = vadd.f32 0.0, %v1396
      %v1398 = vpop.f32.mrb[0].mxu0
      %1399 = vmatprep.mubr.f32.mxu0 0.0
      %1400 = vmatmul.mubr.f32.gmra.mrb[0].mxu0 %v1189
      %v1401 = vpop.f32.mrb[0].mxu0
      %v1402 = vadd.f32 0.0, %v1401
      %v1403 = vpop.f32.mrb[0].mxu0
      %1404 = vmatprep.mubr.f32.mxu0 0.0
      %1405 = vmatmul.mubr.f32.gmra.mrb[0].mxu0 %v1192
      %v1406 = vpop.f32.mrb[0].mxu0
      %v1407 = vadd.f32 0.0, %v1406
      %v1408 = vpop.f32.mrb[0].mxu0
      %1409 = vmatprep.mubr.f32.mxu0 0.0
      %1410 = vmatmul.mubr.f32.gmra.mrb[0].mxu0 %v1195
      %v1411 = vpop.f32.mrb[0].mxu0
      %v1412 = vadd.f32 0.0, %v1411
      %v1413 = vpop.f32.mrb[0].mxu0
      %1414 = vmatprep.mubr.f32.mxu0 0.0
      %1415 = vmatmul.mubr.f32.gmra.mrb[0].mxu0 %v1198
      %v1416 = vpop.f32.mrb[0].mxu0
      %v1417 = vadd.f32 0.0, %v1416
      %v1418 = vpop.f32.mrb[0].mxu0
      %1419 = vmatprep.mubr.f32.mxu0 0.0
      %1420 = vmatmul.mubr.f32.gmra.mrb[0].mxu0 %v1201
      %v1421 = vpop.f32.mrb[0].mxu0
      %v1422 = vadd.f32 0.0, %v1421
      %v1423 = vpop.f32.mrb[0].mxu0
      %1424 = vmatprep.mubr.f32.mxu0 0.0
      %1425 = vmatmul.mubr.f32.gmra.mrb[0].mxu0 %v1204
      %v1426 = vpop.f32.mrb[0].mxu0
      %v1427 = vadd.f32 0.0, %v1426
      %v1428 = vpop.f32.mrb[0].mxu0
      %1429 = vmatprep.mubr.f32.mxu0 0.0
      %1430 = vmatmul.mubr.f32.gmra.mrb[0].mxu0 %v1207
      %v1431 = vpop.f32.mrb[0].mxu0
      %v1432 = vadd.f32 0.0, %v1431
      %v1433 = vpop.f32.mrb[0].mxu0
      %1434 = vmatprep.mubr.f32.mxu0 0.0
      %1435 = vmatmul.mubr.f32.gmra.mrb[0].mxu0 %v1210
      %v1436 = vpop.f32.mrb[0].mxu0
      %v1437 = vadd.f32 0.0, %v1436
      %v1438 = vpop.f32.mrb[0].mxu0
      %1439 = vdwg.mxu0
      %v1440 = vadd.f32 %v924, %v1282
      %v1441 = vadd.f32 %v929, %v1287
      %v1442 = vadd.f32 %v934, %v1292
      %v1443 = vadd.f32 %v939, %v1297
      %v1444 = vadd.f32 %v944, %v1302
      %v1445 = vadd.f32 %v949, %v1307
      %v1446 = vadd.f32 %v954, %v1312
      %v1447 = vadd.f32 %v959, %v1317
      %v1448 = vadd.f32 %v964, %v1322
      %v1449 = vadd.f32 %v969, %v1327
      %v1450 = vadd.f32 %v974, %v1332
      %v1451 = vadd.f32 %v979, %v1337
      %v1452 = vadd.f32 %v984, %v1342
      %v1453 = vadd.f32 %v989, %v1347
      %v1454 = vadd.f32 %v994, %v1352
      %v1455 = vadd.f32 %v999, %v1357
      %v1456 = vadd.f32 %v1004, %v1362
      %v1457 = vadd.f32 %v1009, %v1367
      %v1458 = vadd.f32 %v1014, %v1372
      %v1459 = vadd.f32 %v1019, %v1377
      %v1460 = vadd.f32 %v1024, %v1382
      %v1461 = vadd.f32 %v1029, %v1387
      %v1462 = vadd.f32 %v1034, %v1392
      %v1463 = vadd.f32 %v1039, %v1397
      %v1464 = vadd.f32 %v1044, %v1402
      %v1465 = vadd.f32 %v1049, %v1407
      %v1466 = vadd.f32 %v1054, %v1412
      %v1467 = vadd.f32 %v1059, %v1417
      %v1468 = vadd.f32 %v1064, %v1422
      %v1469 = vadd.f32 %v1069, %v1427
      %v1470 = vadd.f32 %v1074, %v1432
      %v1471 = vadd.f32 %v1079, %v1437
      %v1472 = vld [vmem:[%s333] sm:$0xff]
      %v1473 = vld [vmem:[%s333 + $0x8] sm:$0xff]
      %v1474 = vld [vmem:[%s333 + $0x18] sm:$0xff]
      %v1475 = vld [vmem:[%s333 + $0x20] sm:$0xff]
      %v1476 = vld [vmem:[%s333 + $0x30] sm:$0xff]
      %v1477 = vld [vmem:[%s333 + $0x38] sm:$0xff]
      %v1478 = vld [vmem:[%s333 + $0x48] sm:$0xff]
      %v1479 = vld [vmem:[%s333 + $0x50] sm:$0xff]
      %v1480 = vld [vmem:[%s333 + $0x60] sm:$0xff]
      %v1481 = vld [vmem:[%s333 + $0x68] sm:$0xff]
      %v1482 = vld [vmem:[%s333 + $0x78] sm:$0xff]
      %v1483 = vld [vmem:[%s333 + $0x80] sm:$0xff]
      %v1484 = vld [vmem:[%s333 + $0x90] sm:$0xff]
      %v1485 = vld [vmem:[%s333 + $0x98] sm:$0xff]
      %v1486 = vld [vmem:[%s333 + $0xa8] sm:$0xff]
      %v1487 = vld [vmem:[%s333 + $0xb0] sm:$0xff]
      %v1488 = vld [vmem:[%s333 + $0xc0] sm:$0xff]
      %v1489 = vld [vmem:[%s333 + $0xc8] sm:$0xff]
      %v1490 = vld [vmem:[%s333 + $0xd8] sm:$0xff]
      %v1491 = vld [vmem:[%s333 + $0xe0] sm:$0xff]
      %v1492 = vld [vmem:[%s333 + $0xf0] sm:$0xff]
      %v1493 = vld [vmem:[%s333 + $0xf8] sm:$0xff]
      %v1494 = vld [vmem:[%s333 + $0x108] sm:$0xff]
      %v1495 = vld [vmem:[%s333 + $0x110] sm:$0xff]
      %v1496 = vld [vmem:[%s333 + $0x120] sm:$0xff]
      %v1497 = vld [vmem:[%s333 + $0x128] sm:$0xff]
      %v1498 = vld [vmem:[%s333 + $0x138] sm:$0xff]
      %v1499 = vld [vmem:[%s333 + $0x140] sm:$0xff]
      %v1500 = vld [vmem:[%s333 + $0x150] sm:$0xff]
      %v1501 = vld [vmem:[%s333 + $0x158] sm:$0xff]
      %v1502 = vld [vmem:[%s333 + $0x168] sm:$0xff]
      %v1503 = vld [vmem:[%s333 + $0x170] sm:$0xff]
      %s1504 = scalar_lea.vmem %s1, 12
      %v1505 = vld [vmem:[%s1504] sm:$0xf]
      %v1507 = vsel %vm223, %v1472, 0
      %v1510 = vsel %vm223, %v1473, 0
      %v1513 = vsel %vm223, %v1474, 0
      %v1516 = vsel %vm223, %v1475, 0
      %v1519 = vsel %vm223, %v1476, 0
      %v1522 = vsel %vm223, %v1477, 0
      %v1525 = vsel %vm223, %v1478, 0
      %v1528 = vsel %vm223, %v1479, 0
      %v1531 = vsel %vm223, %v1480, 0
      %v1534 = vsel %vm223, %v1481, 0
      %v1537 = vsel %vm223, %v1482, 0
      %v1540 = vsel %vm223, %v1483, 0
      %v1543 = vsel %vm223, %v1484, 0
      %v1546 = vsel %vm223, %v1485, 0
      %v1549 = vsel %vm223, %v1486, 0
      %v1552 = vsel %vm223, %v1487, 0
      %v1555 = vsel %vm223, %v1488, 0
      %v1558 = vsel %vm223, %v1489, 0
      %v1561 = vsel %vm223, %v1490, 0
      %v1564 = vsel %vm223, %v1491, 0
      %v1567 = vsel %vm223, %v1492, 0
      %v1570 = vsel %vm223, %v1493, 0
      %v1573 = vsel %vm223, %v1494, 0
      %v1576 = vsel %vm223, %v1495, 0
      %v1579 = vsel %vm223, %v1496, 0
      %v1582 = vsel %vm223, %v1497, 0
      %v1585 = vsel %vm223, %v1498, 0
      %v1588 = vsel %vm223, %v1499, 0
      %v1591 = vsel %vm223, %v1500, 0
      %v1594 = vsel %vm223, %v1501, 0
      %v1597 = vsel %vm223, %v1502, 0
      %v1600 = vsel %vm223, %v1503, 0
      %v1603 = vsel %vm529, %v1505, 0
      %1605 = vmatprep.subr.mxu0 0.0
      %1606 = vmatpush1.msra.mxu0 %v1603
      %1607 = vmatprep.subr.mxu0 0.0
      %1608 = vmatpush1.msra.mxu0 0.0
      %1609 = vmatprep.subr.mxu0 0.0
      %1610 = vmatpush1.msra.mxu0 0.0
      %1611 = vmatprep.subr.mxu0 0.0
      %1612 = vmatpush1.msra.mxu0 0.0
      %1613 = vmatprep.subr.mxu0 0.0
      %1614 = vmatpush1.msra.mxu0 0.0
      %1615 = vmatprep.subr.mxu0 0.0
      %1616 = vmatpush1.msra.mxu0 0.0
      %1617 = vmatprep.subr.mxu0 0.0
      %1618 = vmatpush1.msra.mxu0 0.0
      %1619 = vmatprep.subr.mxu0 0.0
      %1620 = vmatpush1.msra.mxu0 0.0
      %1621 = vmatprep.subr.mxu0 0.0
      %1622 = vmatpush1.msra.mxu0 0.0
      %1623 = vmatprep.subr.mxu0 0.0
      %1624 = vmatpush1.msra.mxu0 0.0
      %1625 = vmatprep.subr.mxu0 0.0
      %1626 = vmatpush1.msra.mxu0 0.0
      %1627 = vmatprep.subr.mxu0 0.0
      %1628 = vmatpush1.msra.mxu0 0.0
      %1629 = vmatprep.subr.mxu0 0.0
      %1630 = vmatpush1.msra.mxu0 0.0
      %1631 = vmatprep.subr.mxu0 0.0
      %1632 = vmatpush1.msra.mxu0 0.0
      %1633 = vmatprep.subr.mxu0 0.0
      %1634 = vmatpush1.msra.mxu0 0.0
      %1635 = vmatprep.subr.mxu0 0.0
      %1636 = vmatpush1.msra.mxu0 0.0
      %1637 = vmatprep.subr.mxu0 0.0
      %1638 = vmatpush1.msra.mxu0 0.0
      %1639 = vmatprep.subr.mxu0 0.0
      %1640 = vmatpush1.msra.mxu0 0.0
      %1641 = vmatprep.subr.mxu0 0.0
      %1642 = vmatpush1.msra.mxu0 0.0
      %1643 = vmatprep.subr.mxu0 0.0
      %1644 = vmatpush1.msra.mxu0 0.0
      %1645 = vmatprep.subr.mxu0 0.0
      %1646 = vmatpush1.msra.mxu0 0.0
      %1647 = vmatprep.subr.mxu0 0.0
      %1648 = vmatpush1.msra.mxu0 0.0
      %1649 = vmatprep.subr.mxu0 0.0
      %1650 = vmatpush1.msra.mxu0 0.0
      %1651 = vmatprep.subr.mxu0 0.0
      %1652 = vmatpush1.msra.mxu0 0.0
      %1653 = vmatprep.subr.mxu0 0.0
      %1654 = vmatpush1.msra.mxu0 0.0
      %1655 = vmatprep.subr.mxu0 0.0
      %1656 = vmatpush1.msra.mxu0 0.0
      %1657 = vmatprep.subr.mxu0 0.0
      %1658 = vmatpush1.msra.mxu0 0.0
      %1659 = vmatprep.subr.mxu0 0.0
      %1660 = vmatpush1.msra.mxu0 0.0
      %1661 = vmatprep.subr.mxu0 0.0
      %1662 = vmatpush1.msra.mxu0 0.0
      %1663 = vmatprep.subr.mxu0 0.0
      %1664 = vmatpush1.msra.mxu0 0.0
      %1665 = vmatprep.subr.mxu0 0.0
      %1666 = vmatpush1.msra.mxu0 0.0
      %1667 = vmatprep.subr.mxu0 0.0
      %1668 = vmatpush1.msra.mxu0 0.0
      %1669 = vmatprep.mubr.f32.mxu0 0.0
      %1670 = vmatmul.mubr.f32.gmra.mrb[0].mxu0 %v1507
      %v1671 = vpop.f32.mrb[0].mxu0
      %v1672 = vadd.f32 0.0, %v1671
      %v1673 = vpop.f32.mrb[0].mxu0
      %1674 = vmatprep.mubr.f32.mxu0 0.0
      %1675 = vmatmul.mubr.f32.gmra.mrb[0].mxu0 %v1510
      %v1676 = vpop.f32.mrb[0].mxu0
      %v1677 = vadd.f32 0.0, %v1676
      %v1678 = vpop.f32.mrb[0].mxu0
      %1679 = vmatprep.mubr.f32.mxu0 0.0
      %1680 = vmatmul.mubr.f32.gmra.mrb[0].mxu0 %v1513
      %v1681 = vpop.f32.mrb[0].mxu0
      %v1682 = vadd.f32 0.0, %v1681
      %v1683 = vpop.f32.mrb[0].mxu0
      %1684 = vmatprep.mubr.f32.mxu0 0.0
      %1685 = vmatmul.mubr.f32.gmra.mrb[0].mxu0 %v1516
      %v1686 = vpop.f32.mrb[0].mxu0
      %v1687 = vadd.f32 0.0, %v1686
      %v1688 = vpop.f32.mrb[0].mxu0
      %1689 = vmatprep.mubr.f32.mxu0 0.0
      %1690 = vmatmul.mubr.f32.gmra.mrb[0].mxu0 %v1519
      %v1691 = vpop.f32.mrb[0].mxu0
      %v1692 = vadd.f32 0.0, %v1691
      %v1693 = vpop.f32.mrb[0].mxu0
      %1694 = vmatprep.mubr.f32.mxu0 0.0
      %1695 = vmatmul.mubr.f32.gmra.mrb[0].mxu0 %v1522
      %v1696 = vpop.f32.mrb[0].mxu0
      %v1697 = vadd.f32 0.0, %v1696
      %v1698 = vpop.f32.mrb[0].mxu0
      %1699 = vmatprep.mubr.f32.mxu0 0.0
      %1700 = vmatmul.mubr.f32.gmra.mrb[0].mxu0 %v1525
      %v1701 = vpop.f32.mrb[0].mxu0
      %v1702 = vadd.f32 0.0, %v1701
      %v1703 = vpop.f32.mrb[0].mxu0
      %1704 = vmatprep.mubr.f32.mxu0 0.0
      %1705 = vmatmul.mubr.f32.gmra.mrb[0].mxu0 %v1528
      %v1706 = vpop.f32.mrb[0].mxu0
      %v1707 = vadd.f32 0.0, %v1706
      %v1708 = vpop.f32.mrb[0].mxu0
      %1709 = vmatprep.mubr.f32.mxu0 0.0
      %1710 = vmatmul.mubr.f32.gmra.mrb[0].mxu0 %v1531
      %v1711 = vpop.f32.mrb[0].mxu0
      %v1712 = vadd.f32 0.0, %v1711
      %v1713 = vpop.f32.mrb[0].mxu0
      %1714 = vmatprep.mubr.f32.mxu0 0.0
      %1715 = vmatmul.mubr.f32.gmra.mrb[0].mxu0 %v1534
      %v1716 = vpop.f32.mrb[0].mxu0
      %v1717 = vadd.f32 0.0, %v1716
      %v1718 = vpop.f32.mrb[0].mxu0
      %1719 = vmatprep.mubr.f32.mxu0 0.0
      %1720 = vmatmul.mubr.f32.gmra.mrb[0].mxu0 %v1537
      %v1721 = vpop.f32.mrb[0].mxu0
      %v1722 = vadd.f32 0.0, %v1721
      %v1723 = vpop.f32.mrb[0].mxu0
      %1724 = vmatprep.mubr.f32.mxu0 0.0
      %1725 = vmatmul.mubr.f32.gmra.mrb[0].mxu0 %v1540
      %v1726 = vpop.f32.mrb[0].mxu0
      %v1727 = vadd.f32 0.0, %v1726
      %v1728 = vpop.f32.mrb[0].mxu0
      %1729 = vmatprep.mubr.f32.mxu0 0.0
      %1730 = vmatmul.mubr.f32.gmra.mrb[0].mxu0 %v1543
      %v1731 = vpop.f32.mrb[0].mxu0
      %v1732 = vadd.f32 0.0, %v1731
      %v1733 = vpop.f32.mrb[0].mxu0
      %1734 = vmatprep.mubr.f32.mxu0 0.0
      %1735 = vmatmul.mubr.f32.gmra.mrb[0].mxu0 %v1546
      %v1736 = vpop.f32.mrb[0].mxu0
      %v1737 = vadd.f32 0.0, %v1736
      %v1738 = vpop.f32.mrb[0].mxu0
      %1739 = vmatprep.mubr.f32.mxu0 0.0
      %1740 = vmatmul.mubr.f32.gmra.mrb[0].mxu0 %v1549
      %v1741 = vpop.f32.mrb[0].mxu0
      %v1742 = vadd.f32 0.0, %v1741
      %v1743 = vpop.f32.mrb[0].mxu0
      %1744 = vmatprep.mubr.f32.mxu0 0.0
      %1745 = vmatmul.mubr.f32.gmra.mrb[0].mxu0 %v1552
      %v1746 = vpop.f32.mrb[0].mxu0
      %v1747 = vadd.f32 0.0, %v1746
      %v1748 = vpop.f32.mrb[0].mxu0
      %1749 = vmatprep.mubr.f32.mxu0 0.0
      %1750 = vmatmul.mubr.f32.gmra.mrb[0].mxu0 %v1555
      %v1751 = vpop.f32.mrb[0].mxu0
      %v1752 = vadd.f32 0.0, %v1751
      %v1753 = vpop.f32.mrb[0].mxu0
      %1754 = vmatprep.mubr.f32.mxu0 0.0
      %1755 = vmatmul.mubr.f32.gmra.mrb[0].mxu0 %v1558
      %v1756 = vpop.f32.mrb[0].mxu0
      %v1757 = vadd.f32 0.0, %v1756
      %v1758 = vpop.f32.mrb[0].mxu0
      %1759 = vmatprep.mubr.f32.mxu0 0.0
      %1760 = vmatmul.mubr.f32.gmra.mrb[0].mxu0 %v1561
      %v1761 = vpop.f32.mrb[0].mxu0
      %v1762 = vadd.f32 0.0, %v1761
      %v1763 = vpop.f32.mrb[0].mxu0
      %1764 = vmatprep.mubr.f32.mxu0 0.0
      %1765 = vmatmul.mubr.f32.gmra.mrb[0].mxu0 %v1564
      %v1766 = vpop.f32.mrb[0].mxu0
      %v1767 = vadd.f32 0.0, %v1766
      %v1768 = vpop.f32.mrb[0].mxu0
      %1769 = vmatprep.mubr.f32.mxu0 0.0
      %1770 = vmatmul.mubr.f32.gmra.mrb[0].mxu0 %v1567
      %v1771 = vpop.f32.mrb[0].mxu0
      %v1772 = vadd.f32 0.0, %v1771
      %v1773 = vpop.f32.mrb[0].mxu0
      %1774 = vmatprep.mubr.f32.mxu0 0.0
      %1775 = vmatmul.mubr.f32.gmra.mrb[0].mxu0 %v1570
      %v1776 = vpop.f32.mrb[0].mxu0
      %v1777 = vadd.f32 0.0, %v1776
      %v1778 = vpop.f32.mrb[0].mxu0
      %1779 = vmatprep.mubr.f32.mxu0 0.0
      %1780 = vmatmul.mubr.f32.gmra.mrb[0].mxu0 %v1573
      %v1781 = vpop.f32.mrb[0].mxu0
      %v1782 = vadd.f32 0.0, %v1781
      %v1783 = vpop.f32.mrb[0].mxu0
      %1784 = vmatprep.mubr.f32.mxu0 0.0
      %1785 = vmatmul.mubr.f32.gmra.mrb[0].mxu0 %v1576
      %v1786 = vpop.f32.mrb[0].mxu0
      %v1787 = vadd.f32 0.0, %v1786
      %v1788 = vpop.f32.mrb[0].mxu0
      %1789 = vmatprep.mubr.f32.mxu0 0.0
      %1790 = vmatmul.mubr.f32.gmra.mrb[0].mxu0 %v1579
      %v1791 = vpop.f32.mrb[0].mxu0
      %v1792 = vadd.f32 0.0, %v1791
      %v1793 = vpop.f32.mrb[0].mxu0
      %1794 = vmatprep.mubr.f32.mxu0 0.0
      %1795 = vmatmul.mubr.f32.gmra.mrb[0].mxu0 %v1582
      %v1796 = vpop.f32.mrb[0].mxu0
      %v1797 = vadd.f32 0.0, %v1796
      %v1798 = vpop.f32.mrb[0].mxu0
      %1799 = vmatprep.mubr.f32.mxu0 0.0
      %1800 = vmatmul.mubr.f32.gmra.mrb[0].mxu0 %v1585
      %v1801 = vpop.f32.mrb[0].mxu0
      %v1802 = vadd.f32 0.0, %v1801
      %v1803 = vpop.f32.mrb[0].mxu0
      %1804 = vmatprep.mubr.f32.mxu0 0.0
      %1805 = vmatmul.mubr.f32.gmra.mrb[0].mxu0 %v1588
      %v1806 = vpop.f32.mrb[0].mxu0
      %v1807 = vadd.f32 0.0, %v1806
      %v1808 = vpop.f32.mrb[0].mxu0
      %1809 = vmatprep.mubr.f32.mxu0 0.0
      %1810 = vmatmul.mubr.f32.gmra.mrb[0].mxu0 %v1591
      %v1811 = vpop.f32.mrb[0].mxu0
      %v1812 = vadd.f32 0.0, %v1811
      %v1813 = vpop.f32.mrb[0].mxu0
      %1814 = vmatprep.mubr.f32.mxu0 0.0
      %1815 = vmatmul.mubr.f32.gmra.mrb[0].mxu0 %v1594
      %v1816 = vpop.f32.mrb[0].mxu0
      %v1817 = vadd.f32 0.0, %v1816
      %v1818 = vpop.f32.mrb[0].mxu0
      %1819 = vmatprep.mubr.f32.mxu0 0.0
      %1820 = vmatmul.mubr.f32.gmra.mrb[0].mxu0 %v1597
      %v1821 = vpop.f32.mrb[0].mxu0
      %v1822 = vadd.f32 0.0, %v1821
      %v1823 = vpop.f32.mrb[0].mxu0
      %1824 = vmatprep.mubr.f32.mxu0 0.0
      %1825 = vmatmul.mubr.f32.gmra.mrb[0].mxu0 %v1600
      %v1826 = vpop.f32.mrb[0].mxu0
      %v1827 = vadd.f32 0.0, %v1826
      %v1828 = vpop.f32.mrb[0].mxu0
      %1829 = vdwg.mxu0
      %v1830 = vadd.f32 %v1440, %v1672
      %v1831 = vadd.f32 %v1441, %v1677
      %v1832 = vadd.f32 %v1442, %v1682
      %v1833 = vadd.f32 %v1443, %v1687
      %v1834 = vadd.f32 %v1444, %v1692
      %v1835 = vadd.f32 %v1445, %v1697
      %v1836 = vadd.f32 %v1446, %v1702
      %v1837 = vadd.f32 %v1447, %v1707
      %v1838 = vadd.f32 %v1448, %v1712
      %v1839 = vadd.f32 %v1449, %v1717
      %v1840 = vadd.f32 %v1450, %v1722
      %v1841 = vadd.f32 %v1451, %v1727
      %v1842 = vadd.f32 %v1452, %v1732
      %v1843 = vadd.f32 %v1453, %v1737
      %v1844 = vadd.f32 %v1454, %v1742
      %v1845 = vadd.f32 %v1455, %v1747
      %v1846 = vadd.f32 %v1456, %v1752
      %v1847 = vadd.f32 %v1457, %v1757
      %v1848 = vadd.f32 %v1458, %v1762
      %v1849 = vadd.f32 %v1459, %v1767
      %v1850 = vadd.f32 %v1460, %v1772
      %v1851 = vadd.f32 %v1461, %v1777
      %v1852 = vadd.f32 %v1462, %v1782
      %v1853 = vadd.f32 %v1463, %v1787
      %v1854 = vadd.f32 %v1464, %v1792
      %v1855 = vadd.f32 %v1465, %v1797
      %v1856 = vadd.f32 %v1466, %v1802
      %v1857 = vadd.f32 %v1467, %v1807
      %v1858 = vadd.f32 %v1468, %v1812
      %v1859 = vadd.f32 %v1469, %v1817
      %v1860 = vadd.f32 %v1470, %v1822
      %v1861 = vadd.f32 %v1471, %v1827
      %v1862 = vld [vmem:[%s333 + $0x1] sm:$0xff]
      %v1863 = vld [vmem:[%s333 + $0x9] sm:$0xff]
      %v1864 = vld [vmem:[%s333 + $0x19] sm:$0xff]
      %v1865 = vld [vmem:[%s333 + $0x21] sm:$0xff]
      %v1866 = vld [vmem:[%s333 + $0x31] sm:$0xff]
      %v1867 = vld [vmem:[%s333 + $0x39] sm:$0xff]
      %v1868 = vld [vmem:[%s333 + $0x49] sm:$0xff]
      %v1869 = vld [vmem:[%s333 + $0x51] sm:$0xff]
      %v1870 = vld [vmem:[%s333 + $0x61] sm:$0xff]
      %v1871 = vld [vmem:[%s333 + $0x69] sm:$0xff]
      %v1872 = vld [vmem:[%s333 + $0x79] sm:$0xff]
      %v1873 = vld [vmem:[%s333 + $0x81] sm:$0xff]
      %v1874 = vld [vmem:[%s333 + $0x91] sm:$0xff]
      %v1875 = vld [vmem:[%s333 + $0x99] sm:$0xff]
      %v1876 = vld [vmem:[%s333 + $0xa9] sm:$0xff]
      %v1877 = vld [vmem:[%s333 + $0xb1] sm:$0xff]
      %v1878 = vld [vmem:[%s333 + $0xc1] sm:$0xff]
      %v1879 = vld [vmem:[%s333 + $0xc9] sm:$0xff]
      %v1880 = vld [vmem:[%s333 + $0xd9] sm:$0xff]
      %v1881 = vld [vmem:[%s333 + $0xe1] sm:$0xff]
      %v1882 = vld [vmem:[%s333 + $0xf1] sm:$0xff]
      %v1883 = vld [vmem:[%s333 + $0xf9] sm:$0xff]
      %v1884 = vld [vmem:[%s333 + $0x109] sm:$0xff]
      %v1885 = vld [vmem:[%s333 + $0x111] sm:$0xff]
      %v1886 = vld [vmem:[%s333 + $0x121] sm:$0xff]
      %v1887 = vld [vmem:[%s333 + $0x129] sm:$0xff]
      %v1888 = vld [vmem:[%s333 + $0x139] sm:$0xff]
      %v1889 = vld [vmem:[%s333 + $0x141] sm:$0xff]
      %v1890 = vld [vmem:[%s333 + $0x151] sm:$0xff]
      %v1891 = vld [vmem:[%s333 + $0x159] sm:$0xff]
      %v1892 = vld [vmem:[%s333 + $0x169] sm:$0xff]
      %v1893 = vld [vmem:[%s333 + $0x171] sm:$0xff]
      %s1894 = scalar_lea.vmem %s1, 16
      %v1895 = vld [vmem:[%s1894] sm:$0xf]
      %v1897 = vsel %vm223, %v1862, 0
      %v1900 = vsel %vm223, %v1863, 0
      %v1903 = vsel %vm223, %v1864, 0
      %v1906 = vsel %vm223, %v1865, 0
      %v1909 = vsel %vm223, %v1866, 0
      %v1912 = vsel %vm223, %v1867, 0
      %v1915 = vsel %vm223, %v1868, 0
      %v1918 = vsel %vm223, %v1869, 0
      %v1921 = vsel %vm223, %v1870, 0
      %v1924 = vsel %vm223, %v1871, 0
      %v1927 = vsel %vm223, %v1872, 0
      %v1930 = vsel %vm223, %v1873, 0
      %v1933 = vsel %vm223, %v1874, 0
      %v1936 = vsel %vm223, %v1875, 0
      %v1939 = vsel %vm223, %v1876, 0
      %v1942 = vsel %vm223, %v1877, 0
      %v1945 = vsel %vm223, %v1878, 0
      %v1948 = vsel %vm223, %v1879, 0
      %v1951 = vsel %vm223, %v1880, 0
      %v1954 = vsel %vm223, %v1881, 0
      %v1957 = vsel %vm223, %v1882, 0
      %v1960 = vsel %vm223, %v1883, 0
      %v1963 = vsel %vm223, %v1884, 0
      %v1966 = vsel %vm223, %v1885, 0
      %v1969 = vsel %vm223, %v1886, 0
      %v1972 = vsel %vm223, %v1887, 0
      %v1975 = vsel %vm223, %v1888, 0
      %v1978 = vsel %vm223, %v1889, 0
      %v1981 = vsel %vm223, %v1890, 0
      %v1984 = vsel %vm223, %v1891, 0
      %v1987 = vsel %vm223, %v1892, 0
      %v1990 = vsel %vm223, %v1893, 0
      %v1993 = vsel %vm529, %v1895, 0
      %1995 = vmatprep.subr.mxu0 0.0
      %1996 = vmatpush1.msra.mxu0 %v1993
      %1997 = vmatprep.subr.mxu0 0.0
      %1998 = vmatpush1.msra.mxu0 0.0
      %1999 = vmatprep.subr.mxu0 0.0
      %2000 = vmatpush1.msra.mxu0 0.0
      %2001 = vmatprep.subr.mxu0 0.0
      %2002 = vmatpush1.msra.mxu0 0.0
      %2003 = vmatprep.subr.mxu0 0.0
      %2004 = vmatpush1.msra.mxu0 0.0
      %2005 = vmatprep.subr.mxu0 0.0
      %2006 = vmatpush1.msra.mxu0 0.0
      %2007 = vmatprep.subr.mxu0 0.0
      %2008 = vmatpush1.msra.mxu0 0.0
      %2009 = vmatprep.subr.mxu0 0.0
      %2010 = vmatpush1.msra.mxu0 0.0
      %2011 = vmatprep.subr.mxu0 0.0
      %2012 = vmatpush1.msra.mxu0 0.0
      %2013 = vmatprep.subr.mxu0 0.0
      %2014 = vmatpush1.msra.mxu0 0.0
      %2015 = vmatprep.subr.mxu0 0.0
      %2016 = vmatpush1.msra.mxu0 0.0
      %2017 = vmatprep.subr.mxu0 0.0
      %2018 = vmatpush1.msra.mxu0 0.0
      %2019 = vmatprep.subr.mxu0 0.0
      %2020 = vmatpush1.msra.mxu0 0.0
      %2021 = vmatprep.subr.mxu0 0.0
      %2022 = vmatpush1.msra.mxu0 0.0
      %2023 = vmatprep.subr.mxu0 0.0
      %2024 = vmatpush1.msra.mxu0 0.0
      %2025 = vmatprep.subr.mxu0 0.0
      %2026 = vmatpush1.msra.mxu0 0.0
      %2027 = vmatprep.subr.mxu0 0.0
      %2028 = vmatpush1.msra.mxu0 0.0
      %2029 = vmatprep.subr.mxu0 0.0
      %2030 = vmatpush1.msra.mxu0 0.0
      %2031 = vmatprep.subr.mxu0 0.0
      %2032 = vmatpush1.msra.mxu0 0.0
      %2033 = vmatprep.subr.mxu0 0.0
      %2034 = vmatpush1.msra.mxu0 0.0
      %2035 = vmatprep.subr.mxu0 0.0
      %2036 = vmatpush1.msra.mxu0 0.0
      %2037 = vmatprep.subr.mxu0 0.0
      %2038 = vmatpush1.msra.mxu0 0.0
      %2039 = vmatprep.subr.mxu0 0.0
      %2040 = vmatpush1.msra.mxu0 0.0
      %2041 = vmatprep.subr.mxu0 0.0
      %2042 = vmatpush1.msra.mxu0 0.0
      %2043 = vmatprep.subr.mxu0 0.0
      %2044 = vmatpush1.msra.mxu0 0.0
      %2045 = vmatprep.subr.mxu0 0.0
      %2046 = vmatpush1.msra.mxu0 0.0
      %2047 = vmatprep.subr.mxu0 0.0
      %2048 = vmatpush1.msra.mxu0 0.0
      %2049 = vmatprep.subr.mxu0 0.0
      %2050 = vmatpush1.msra.mxu0 0.0
      %2051 = vmatprep.subr.mxu0 0.0
      %2052 = vmatpush1.msra.mxu0 0.0
      %2053 = vmatprep.subr.mxu0 0.0
      %2054 = vmatpush1.msra.mxu0 0.0
      %2055 = vmatprep.subr.mxu0 0.0
      %2056 = vmatpush1.msra.mxu0 0.0
      %2057 = vmatprep.subr.mxu0 0.0
      %2058 = vmatpush1.msra.mxu0 0.0
      %2059 = vmatprep.mubr.f32.mxu0 0.0
      %2060 = vmatmul.mubr.f32.gmra.mrb[0].mxu0 %v1897
      %v2061 = vpop.f32.mrb[0].mxu0
      %v2062 = vadd.f32 0.0, %v2061
      %v2063 = vpop.f32.mrb[0].mxu0
      %2064 = vmatprep.mubr.f32.mxu0 0.0
      %2065 = vmatmul.mubr.f32.gmra.mrb[0].mxu0 %v1900
      %v2066 = vpop.f32.mrb[0].mxu0
      %v2067 = vadd.f32 0.0, %v2066
      %v2068 = vpop.f32.mrb[0].mxu0
      %2069 = vmatprep.mubr.f32.mxu0 0.0
      %2070 = vmatmul.mubr.f32.gmra.mrb[0].mxu0 %v1903
      %v2071 = vpop.f32.mrb[0].mxu0
      %v2072 = vadd.f32 0.0, %v2071
      %v2073 = vpop.f32.mrb[0].mxu0
      %2074 = vmatprep.mubr.f32.mxu0 0.0
      %2075 = vmatmul.mubr.f32.gmra.mrb[0].mxu0 %v1906
      %v2076 = vpop.f32.mrb[0].mxu0
      %v2077 = vadd.f32 0.0, %v2076
      %v2078 = vpop.f32.mrb[0].mxu0
      %2079 = vmatprep.mubr.f32.mxu0 0.0
      %2080 = vmatmul.mubr.f32.gmra.mrb[0].mxu0 %v1909
      %v2081 = vpop.f32.mrb[0].mxu0
      %v2082 = vadd.f32 0.0, %v2081
      %v2083 = vpop.f32.mrb[0].mxu0
      %2084 = vmatprep.mubr.f32.mxu0 0.0
      %2085 = vmatmul.mubr.f32.gmra.mrb[0].mxu0 %v1912
      %v2086 = vpop.f32.mrb[0].mxu0
      %v2087 = vadd.f32 0.0, %v2086
      %v2088 = vpop.f32.mrb[0].mxu0
      %2089 = vmatprep.mubr.f32.mxu0 0.0
      %2090 = vmatmul.mubr.f32.gmra.mrb[0].mxu0 %v1915
      %v2091 = vpop.f32.mrb[0].mxu0
      %v2092 = vadd.f32 0.0, %v2091
      %v2093 = vpop.f32.mrb[0].mxu0
      %2094 = vmatprep.mubr.f32.mxu0 0.0
      %2095 = vmatmul.mubr.f32.gmra.mrb[0].mxu0 %v1918
      %v2096 = vpop.f32.mrb[0].mxu0
      %v2097 = vadd.f32 0.0, %v2096
      %v2098 = vpop.f32.mrb[0].mxu0
      %2099 = vmatprep.mubr.f32.mxu0 0.0
      %2100 = vmatmul.mubr.f32.gmra.mrb[0].mxu0 %v1921
      %v2101 = vpop.f32.mrb[0].mxu0
      %v2102 = vadd.f32 0.0, %v2101
      %v2103 = vpop.f32.mrb[0].mxu0
      %2104 = vmatprep.mubr.f32.mxu0 0.0
      %2105 = vmatmul.mubr.f32.gmra.mrb[0].mxu0 %v1924
      %v2106 = vpop.f32.mrb[0].mxu0
      %v2107 = vadd.f32 0.0, %v2106
      %v2108 = vpop.f32.mrb[0].mxu0
      %2109 = vmatprep.mubr.f32.mxu0 0.0
      %2110 = vmatmul.mubr.f32.gmra.mrb[0].mxu0 %v1927
      %v2111 = vpop.f32.mrb[0].mxu0
      %v2112 = vadd.f32 0.0, %v2111
      %v2113 = vpop.f32.mrb[0].mxu0
      %2114 = vmatprep.mubr.f32.mxu0 0.0
      %2115 = vmatmul.mubr.f32.gmra.mrb[0].mxu0 %v1930
      %v2116 = vpop.f32.mrb[0].mxu0
      %v2117 = vadd.f32 0.0, %v2116
      %v2118 = vpop.f32.mrb[0].mxu0
      %2119 = vmatprep.mubr.f32.mxu0 0.0
      %2120 = vmatmul.mubr.f32.gmra.mrb[0].mxu0 %v1933
      %v2121 = vpop.f32.mrb[0].mxu0
      %v2122 = vadd.f32 0.0, %v2121
      %v2123 = vpop.f32.mrb[0].mxu0
      %2124 = vmatprep.mubr.f32.mxu0 0.0
      %2125 = vmatmul.mubr.f32.gmra.mrb[0].mxu0 %v1936
      %v2126 = vpop.f32.mrb[0].mxu0
      %v2127 = vadd.f32 0.0, %v2126
      %v2128 = vpop.f32.mrb[0].mxu0
      %2129 = vmatprep.mubr.f32.mxu0 0.0
      %2130 = vmatmul.mubr.f32.gmra.mrb[0].mxu0 %v1939
      %v2131 = vpop.f32.mrb[0].mxu0
      %v2132 = vadd.f32 0.0, %v2131
      %v2133 = vpop.f32.mrb[0].mxu0
      %2134 = vmatprep.mubr.f32.mxu0 0.0
      %2135 = vmatmul.mubr.f32.gmra.mrb[0].mxu0 %v1942
      %v2136 = vpop.f32.mrb[0].mxu0
      %v2137 = vadd.f32 0.0, %v2136
      %v2138 = vpop.f32.mrb[0].mxu0
      %2139 = vmatprep.mubr.f32.mxu0 0.0
      %2140 = vmatmul.mubr.f32.gmra.mrb[0].mxu0 %v1945
      %v2141 = vpop.f32.mrb[0].mxu0
      %v2142 = vadd.f32 0.0, %v2141
      %v2143 = vpop.f32.mrb[0].mxu0
      %2144 = vmatprep.mubr.f32.mxu0 0.0
      %2145 = vmatmul.mubr.f32.gmra.mrb[0].mxu0 %v1948
      %v2146 = vpop.f32.mrb[0].mxu0
      %v2147 = vadd.f32 0.0, %v2146
      %v2148 = vpop.f32.mrb[0].mxu0
      %2149 = vmatprep.mubr.f32.mxu0 0.0
      %2150 = vmatmul.mubr.f32.gmra.mrb[0].mxu0 %v1951
      %v2151 = vpop.f32.mrb[0].mxu0
      %v2152 = vadd.f32 0.0, %v2151
      %v2153 = vpop.f32.mrb[0].mxu0
      %2154 = vmatprep.mubr.f32.mxu0 0.0
      %2155 = vmatmul.mubr.f32.gmra.mrb[0].mxu0 %v1954
      %v2156 = vpop.f32.mrb[0].mxu0
      %v2157 = vadd.f32 0.0, %v2156
      %v2158 = vpop.f32.mrb[0].mxu0
      %2159 = vmatprep.mubr.f32.mxu0 0.0
      %2160 = vmatmul.mubr.f32.gmra.mrb[0].mxu0 %v1957
      %v2161 = vpop.f32.mrb[0].mxu0
      %v2162 = vadd.f32 0.0, %v2161
      %v2163 = vpop.f32.mrb[0].mxu0
      %2164 = vmatprep.mubr.f32.mxu0 0.0
      %2165 = vmatmul.mubr.f32.gmra.mrb[0].mxu0 %v1960
      %v2166 = vpop.f32.mrb[0].mxu0
      %v2167 = vadd.f32 0.0, %v2166
      %v2168 = vpop.f32.mrb[0].mxu0
      %2169 = vmatprep.mubr.f32.mxu0 0.0
      %2170 = vmatmul.mubr.f32.gmra.mrb[0].mxu0 %v1963
      %v2171 = vpop.f32.mrb[0].mxu0
      %v2172 = vadd.f32 0.0, %v2171
      %v2173 = vpop.f32.mrb[0].mxu0
      %2174 = vmatprep.mubr.f32.mxu0 0.0
      %2175 = vmatmul.mubr.f32.gmra.mrb[0].mxu0 %v1966
      %v2176 = vpop.f32.mrb[0].mxu0
      %v2177 = vadd.f32 0.0, %v2176
      %v2178 = vpop.f32.mrb[0].mxu0
      %2179 = vmatprep.mubr.f32.mxu0 0.0
      %2180 = vmatmul.mubr.f32.gmra.mrb[0].mxu0 %v1969
      %v2181 = vpop.f32.mrb[0].mxu0
      %v2182 = vadd.f32 0.0, %v2181
      %v2183 = vpop.f32.mrb[0].mxu0
      %2184 = vmatprep.mubr.f32.mxu0 0.0
      %2185 = vmatmul.mubr.f32.gmra.mrb[0].mxu0 %v1972
      %v2186 = vpop.f32.mrb[0].mxu0
      %v2187 = vadd.f32 0.0, %v2186
      %v2188 = vpop.f32.mrb[0].mxu0
      %2189 = vmatprep.mubr.f32.mxu0 0.0
      %2190 = vmatmul.mubr.f32.gmra.mrb[0].mxu0 %v1975
      %v2191 = vpop.f32.mrb[0].mxu0
      %v2192 = vadd.f32 0.0, %v2191
      %v2193 = vpop.f32.mrb[0].mxu0
      %2194 = vmatprep.mubr.f32.mxu0 0.0
      %2195 = vmatmul.mubr.f32.gmra.mrb[0].mxu0 %v1978
      %v2196 = vpop.f32.mrb[0].mxu0
      %v2197 = vadd.f32 0.0, %v2196
      %v2198 = vpop.f32.mrb[0].mxu0
      %2199 = vmatprep.mubr.f32.mxu0 0.0
      %2200 = vmatmul.mubr.f32.gmra.mrb[0].mxu0 %v1981
      %v2201 = vpop.f32.mrb[0].mxu0
      %v2202 = vadd.f32 0.0, %v2201
      %v2203 = vpop.f32.mrb[0].mxu0
      %2204 = vmatprep.mubr.f32.mxu0 0.0
      %2205 = vmatmul.mubr.f32.gmra.mrb[0].mxu0 %v1984
      %v2206 = vpop.f32.mrb[0].mxu0
      %v2207 = vadd.f32 0.0, %v2206
      %v2208 = vpop.f32.mrb[0].mxu0
      %2209 = vmatprep.mubr.f32.mxu0 0.0
      %2210 = vmatmul.mubr.f32.gmra.mrb[0].mxu0 %v1987
      %v2211 = vpop.f32.mrb[0].mxu0
      %v2212 = vadd.f32 0.0, %v2211
      %v2213 = vpop.f32.mrb[0].mxu0
      %2214 = vmatprep.mubr.f32.mxu0 0.0
      %2215 = vmatmul.mubr.f32.gmra.mrb[0].mxu0 %v1990
      %v2216 = vpop.f32.mrb[0].mxu0
      %v2217 = vadd.f32 0.0, %v2216
      %v2218 = vpop.f32.mrb[0].mxu0
      %2219 = vdwg.mxu0
      %v2220 = vadd.f32 %v1830, %v2062
      %v2221 = vadd.f32 %v1831, %v2067
      %v2222 = vadd.f32 %v1832, %v2072
      %v2223 = vadd.f32 %v1833, %v2077
      %v2224 = vadd.f32 %v1834, %v2082
      %v2225 = vadd.f32 %v1835, %v2087
      %v2226 = vadd.f32 %v1836, %v2092
      %v2227 = vadd.f32 %v1837, %v2097
      %v2228 = vadd.f32 %v1838, %v2102
      %v2229 = vadd.f32 %v1839, %v2107
      %v2230 = vadd.f32 %v1840, %v2112
      %v2231 = vadd.f32 %v1841, %v2117
      %v2232 = vadd.f32 %v1842, %v2122
      %v2233 = vadd.f32 %v1843, %v2127
      %v2234 = vadd.f32 %v1844, %v2132
      %v2235 = vadd.f32 %v1845, %v2137
      %v2236 = vadd.f32 %v1846, %v2142
      %v2237 = vadd.f32 %v1847, %v2147
      %v2238 = vadd.f32 %v1848, %v2152
      %v2239 = vadd.f32 %v1849, %v2157
      %v2240 = vadd.f32 %v1850, %v2162
      %v2241 = vadd.f32 %v1851, %v2167
      %v2242 = vadd.f32 %v1852, %v2172
      %v2243 = vadd.f32 %v1853, %v2177
      %v2244 = vadd.f32 %v1854, %v2182
      %v2245 = vadd.f32 %v1855, %v2187
      %v2246 = vadd.f32 %v1856, %v2192
      %v2247 = vadd.f32 %v1857, %v2197
      %v2248 = vadd.f32 %v1858, %v2202
      %v2249 = vadd.f32 %v1859, %v2207
      %v2250 = vadd.f32 %v1860, %v2212
      %v2251 = vadd.f32 %v1861, %v2217
      %v2252 = vld [vmem:[%s333 + $0x2] sm:$0xff]
      %v2253 = vld [vmem:[%s333 + $0xa] sm:$0xff]
      %v2254 = vld [vmem:[%s333 + $0x1a] sm:$0xff]
      %v2255 = vld [vmem:[%s333 + $0x22] sm:$0xff]
      %v2256 = vld [vmem:[%s333 + $0x32] sm:$0xff]
      %v2257 = vld [vmem:[%s333 + $0x3a] sm:$0xff]
      %v2258 = vld [vmem:[%s333 + $0x4a] sm:$0xff]
      %v2259 = vld [vmem:[%s333 + $0x52] sm:$0xff]
      %v2260 = vld [vmem:[%s333 + $0x62] sm:$0xff]
      %v2261 = vld [vmem:[%s333 + $0x6a] sm:$0xff]
      %v2262 = vld [vmem:[%s333 + $0x7a] sm:$0xff]
      %v2263 = vld [vmem:[%s333 + $0x82] sm:$0xff]
      %v2264 = vld [vmem:[%s333 + $0x92] sm:$0xff]
      %v2265 = vld [vmem:[%s333 + $0x9a] sm:$0xff]
      %v2266 = vld [vmem:[%s333 + $0xaa] sm:$0xff]
      %v2267 = vld [vmem:[%s333 + $0xb2] sm:$0xff]
      %v2268 = vld [vmem:[%s333 + $0xc2] sm:$0xff]
      %v2269 = vld [vmem:[%s333 + $0xca] sm:$0xff]
      %v2270 = vld [vmem:[%s333 + $0xda] sm:$0xff]
      %v2271 = vld [vmem:[%s333 + $0xe2] sm:$0xff]
      %v2272 = vld [vmem:[%s333 + $0xf2] sm:$0xff]
      %v2273 = vld [vmem:[%s333 + $0xfa] sm:$0xff]
      %v2274 = vld [vmem:[%s333 + $0x10a] sm:$0xff]
      %v2275 = vld [vmem:[%s333 + $0x112] sm:$0xff]
      %v2276 = vld [vmem:[%s333 + $0x122] sm:$0xff]
      %v2277 = vld [vmem:[%s333 + $0x12a] sm:$0xff]
      %v2278 = vld [vmem:[%s333 + $0x13a] sm:$0xff]
      %v2279 = vld [vmem:[%s333 + $0x142] sm:$0xff]
      %v2280 = vld [vmem:[%s333 + $0x152] sm:$0xff]
      %v2281 = vld [vmem:[%s333 + $0x15a] sm:$0xff]
      %v2282 = vld [vmem:[%s333 + $0x16a] sm:$0xff]
      %v2283 = vld [vmem:[%s333 + $0x172] sm:$0xff]
      %s2284 = scalar_lea.vmem %s1, 20
      %v2285 = vld [vmem:[%s2284] sm:$0xf]
      %v2287 = vsel %vm223, %v2252, 0
      %v2290 = vsel %vm223, %v2253, 0
      %v2293 = vsel %vm223, %v2254, 0
      %v2296 = vsel %vm223, %v2255, 0
      %v2299 = vsel %vm223, %v2256, 0
      %v2302 = vsel %vm223, %v2257, 0
      %v2305 = vsel %vm223, %v2258, 0
      %v2308 = vsel %vm223, %v2259, 0
      %v2311 = vsel %vm223, %v2260, 0
      %v2314 = vsel %vm223, %v2261, 0
      %v2317 = vsel %vm223, %v2262, 0
      %v2320 = vsel %vm223, %v2263, 0
      %v2323 = vsel %vm223, %v2264, 0
      %v2326 = vsel %vm223, %v2265, 0
      %v2329 = vsel %vm223, %v2266, 0
      %v2332 = vsel %vm223, %v2267, 0
      %v2335 = vsel %vm223, %v2268, 0
      %v2338 = vsel %vm223, %v2269, 0
      %v2341 = vsel %vm223, %v2270, 0
      %v2344 = vsel %vm223, %v2271, 0
      %v2347 = vsel %vm223, %v2272, 0
      %v2350 = vsel %vm223, %v2273, 0
      %v2353 = vsel %vm223, %v2274, 0
      %v2356 = vsel %vm223, %v2275, 0
      %v2359 = vsel %vm223, %v2276, 0
      %v2362 = vsel %vm223, %v2277, 0
      %v2365 = vsel %vm223, %v2278, 0
      %v2368 = vsel %vm223, %v2279, 0
      %v2371 = vsel %vm223, %v2280, 0
      %v2374 = vsel %vm223, %v2281, 0
      %v2377 = vsel %vm223, %v2282, 0
      %v2380 = vsel %vm223, %v2283, 0
      %v2383 = vsel %vm529, %v2285, 0
      %2385 = vmatprep.subr.mxu0 0.0
      %2386 = vmatpush1.msra.mxu0 %v2383
      %2387 = vmatprep.subr.mxu0 0.0
      %2388 = vmatpush1.msra.mxu0 0.0
      %2389 = vmatprep.subr.mxu0 0.0
      %2390 = vmatpush1.msra.mxu0 0.0
      %2391 = vmatprep.subr.mxu0 0.0
      %2392 = vmatpush1.msra.mxu0 0.0
      %2393 = vmatprep.subr.mxu0 0.0
      %2394 = vmatpush1.msra.mxu0 0.0
      %2395 = vmatprep.subr.mxu0 0.0
      %2396 = vmatpush1.msra.mxu0 0.0
      %2397 = vmatprep.subr.mxu0 0.0
      %2398 = vmatpush1.msra.mxu0 0.0
      %2399 = vmatprep.subr.mxu0 0.0
      %2400 = vmatpush1.msra.mxu0 0.0
      %2401 = vmatprep.subr.mxu0 0.0
      %2402 = vmatpush1.msra.mxu0 0.0
      %2403 = vmatprep.subr.mxu0 0.0
      %2404 = vmatpush1.msra.mxu0 0.0
      %2405 = vmatprep.subr.mxu0 0.0
      %2406 = vmatpush1.msra.mxu0 0.0
      %2407 = vmatprep.subr.mxu0 0.0
      %2408 = vmatpush1.msra.mxu0 0.0
      %2409 = vmatprep.subr.mxu0 0.0
      %2410 = vmatpush1.msra.mxu0 0.0
      %2411 = vmatprep.subr.mxu0 0.0
      %2412 = vmatpush1.msra.mxu0 0.0
      %2413 = vmatprep.subr.mxu0 0.0
      %2414 = vmatpush1.msra.mxu0 0.0
      %2415 = vmatprep.subr.mxu0 0.0
      %2416 = vmatpush1.msra.mxu0 0.0
      %2417 = vmatprep.subr.mxu0 0.0
      %2418 = vmatpush1.msra.mxu0 0.0
      %2419 = vmatprep.subr.mxu0 0.0
      %2420 = vmatpush1.msra.mxu0 0.0
      %2421 = vmatprep.subr.mxu0 0.0
      %2422 = vmatpush1.msra.mxu0 0.0
      %2423 = vmatprep.subr.mxu0 0.0
      %2424 = vmatpush1.msra.mxu0 0.0
      %2425 = vmatprep.subr.mxu0 0.0
      %2426 = vmatpush1.msra.mxu0 0.0
      %2427 = vmatprep.subr.mxu0 0.0
      %2428 = vmatpush1.msra.mxu0 0.0
      %2429 = vmatprep.subr.mxu0 0.0
      %2430 = vmatpush1.msra.mxu0 0.0
      %2431 = vmatprep.subr.mxu0 0.0
      %2432 = vmatpush1.msra.mxu0 0.0
      %2433 = vmatprep.subr.mxu0 0.0
      %2434 = vmatpush1.msra.mxu0 0.0
      %2435 = vmatprep.subr.mxu0 0.0
      %2436 = vmatpush1.msra.mxu0 0.0
      %2437 = vmatprep.subr.mxu0 0.0
      %2438 = vmatpush1.msra.mxu0 0.0
      %2439 = vmatprep.subr.mxu0 0.0
      %2440 = vmatpush1.msra.mxu0 0.0
      %2441 = vmatprep.subr.mxu0 0.0
      %2442 = vmatpush1.msra.mxu0 0.0
      %2443 = vmatprep.subr.mxu0 0.0
      %2444 = vmatpush1.msra.mxu0 0.0
      %2445 = vmatprep.subr.mxu0 0.0
      %2446 = vmatpush1.msra.mxu0 0.0
      %2447 = vmatprep.subr.mxu0 0.0
      %2448 = vmatpush1.msra.mxu0 0.0
      %2449 = vmatprep.mubr.f32.mxu0 0.0
      %2450 = vmatmul.mubr.f32.gmra.mrb[0].mxu0 %v2287
      %v2451 = vpop.f32.mrb[0].mxu0
      %v2452 = vadd.f32 0.0, %v2451
      %v2453 = vpop.f32.mrb[0].mxu0
      %2454 = vmatprep.mubr.f32.mxu0 0.0
      %2455 = vmatmul.mubr.f32.gmra.mrb[0].mxu0 %v2290
      %v2456 = vpop.f32.mrb[0].mxu0
      %v2457 = vadd.f32 0.0, %v2456
      %v2458 = vpop.f32.mrb[0].mxu0
      %2459 = vmatprep.mubr.f32.mxu0 0.0
      %2460 = vmatmul.mubr.f32.gmra.mrb[0].mxu0 %v2293
      %v2461 = vpop.f32.mrb[0].mxu0
      %v2462 = vadd.f32 0.0, %v2461
      %v2463 = vpop.f32.mrb[0].mxu0
      %2464 = vmatprep.mubr.f32.mxu0 0.0
      %2465 = vmatmul.mubr.f32.gmra.mrb[0].mxu0 %v2296
      %v2466 = vpop.f32.mrb[0].mxu0
      %v2467 = vadd.f32 0.0, %v2466
      %v2468 = vpop.f32.mrb[0].mxu0
      %2469 = vmatprep.mubr.f32.mxu0 0.0
      %2470 = vmatmul.mubr.f32.gmra.mrb[0].mxu0 %v2299
      %v2471 = vpop.f32.mrb[0].mxu0
      %v2472 = vadd.f32 0.0, %v2471
      %v2473 = vpop.f32.mrb[0].mxu0
      %2474 = vmatprep.mubr.f32.mxu0 0.0
      %2475 = vmatmul.mubr.f32.gmra.mrb[0].mxu0 %v2302
      %v2476 = vpop.f32.mrb[0].mxu0
      %v2477 = vadd.f32 0.0, %v2476
      %v2478 = vpop.f32.mrb[0].mxu0
      %2479 = vmatprep.mubr.f32.mxu0 0.0
      %2480 = vmatmul.mubr.f32.gmra.mrb[0].mxu0 %v2305
      %v2481 = vpop.f32.mrb[0].mxu0
      %v2482 = vadd.f32 0.0, %v2481
      %v2483 = vpop.f32.mrb[0].mxu0
      %2484 = vmatprep.mubr.f32.mxu0 0.0
      %2485 = vmatmul.mubr.f32.gmra.mrb[0].mxu0 %v2308
      %v2486 = vpop.f32.mrb[0].mxu0
      %v2487 = vadd.f32 0.0, %v2486
      %v2488 = vpop.f32.mrb[0].mxu0
      %2489 = vmatprep.mubr.f32.mxu0 0.0
      %2490 = vmatmul.mubr.f32.gmra.mrb[0].mxu0 %v2311
      %v2491 = vpop.f32.mrb[0].mxu0
      %v2492 = vadd.f32 0.0, %v2491
      %v2493 = vpop.f32.mrb[0].mxu0
      %2494 = vmatprep.mubr.f32.mxu0 0.0
      %2495 = vmatmul.mubr.f32.gmra.mrb[0].mxu0 %v2314
      %v2496 = vpop.f32.mrb[0].mxu0
      %v2497 = vadd.f32 0.0, %v2496
      %v2498 = vpop.f32.mrb[0].mxu0
      %2499 = vmatprep.mubr.f32.mxu0 0.0
      %2500 = vmatmul.mubr.f32.gmra.mrb[0].mxu0 %v2317
      %v2501 = vpop.f32.mrb[0].mxu0
      %v2502 = vadd.f32 0.0, %v2501
      %v2503 = vpop.f32.mrb[0].mxu0
      %2504 = vmatprep.mubr.f32.mxu0 0.0
      %2505 = vmatmul.mubr.f32.gmra.mrb[0].mxu0 %v2320
      %v2506 = vpop.f32.mrb[0].mxu0
      %v2507 = vadd.f32 0.0, %v2506
      %v2508 = vpop.f32.mrb[0].mxu0
      %2509 = vmatprep.mubr.f32.mxu0 0.0
      %2510 = vmatmul.mubr.f32.gmra.mrb[0].mxu0 %v2323
      %v2511 = vpop.f32.mrb[0].mxu0
      %v2512 = vadd.f32 0.0, %v2511
      %v2513 = vpop.f32.mrb[0].mxu0
      %2514 = vmatprep.mubr.f32.mxu0 0.0
      %2515 = vmatmul.mubr.f32.gmra.mrb[0].mxu0 %v2326
      %v2516 = vpop.f32.mrb[0].mxu0
      %v2517 = vadd.f32 0.0, %v2516
      %v2518 = vpop.f32.mrb[0].mxu0
      %2519 = vmatprep.mubr.f32.mxu0 0.0
      %2520 = vmatmul.mubr.f32.gmra.mrb[0].mxu0 %v2329
      %v2521 = vpop.f32.mrb[0].mxu0
      %v2522 = vadd.f32 0.0, %v2521
      %v2523 = vpop.f32.mrb[0].mxu0
      %2524 = vmatprep.mubr.f32.mxu0 0.0
      %2525 = vmatmul.mubr.f32.gmra.mrb[0].mxu0 %v2332
      %v2526 = vpop.f32.mrb[0].mxu0
      %v2527 = vadd.f32 0.0, %v2526
      %v2528 = vpop.f32.mrb[0].mxu0
      %2529 = vmatprep.mubr.f32.mxu0 0.0
      %2530 = vmatmul.mubr.f32.gmra.mrb[0].mxu0 %v2335
      %v2531 = vpop.f32.mrb[0].mxu0
      %v2532 = vadd.f32 0.0, %v2531
      %v2533 = vpop.f32.mrb[0].mxu0
      %2534 = vmatprep.mubr.f32.mxu0 0.0
      %2535 = vmatmul.mubr.f32.gmra.mrb[0].mxu0 %v2338
      %v2536 = vpop.f32.mrb[0].mxu0
      %v2537 = vadd.f32 0.0, %v2536
      %v2538 = vpop.f32.mrb[0].mxu0
      %2539 = vmatprep.mubr.f32.mxu0 0.0
      %2540 = vmatmul.mubr.f32.gmra.mrb[0].mxu0 %v2341
      %v2541 = vpop.f32.mrb[0].mxu0
      %v2542 = vadd.f32 0.0, %v2541
      %v2543 = vpop.f32.mrb[0].mxu0
      %2544 = vmatprep.mubr.f32.mxu0 0.0
      %2545 = vmatmul.mubr.f32.gmra.mrb[0].mxu0 %v2344
      %v2546 = vpop.f32.mrb[0].mxu0
      %v2547 = vadd.f32 0.0, %v2546
      %v2548 = vpop.f32.mrb[0].mxu0
      %2549 = vmatprep.mubr.f32.mxu0 0.0
      %2550 = vmatmul.mubr.f32.gmra.mrb[0].mxu0 %v2347
      %v2551 = vpop.f32.mrb[0].mxu0
      %v2552 = vadd.f32 0.0, %v2551
      %v2553 = vpop.f32.mrb[0].mxu0
      %2554 = vmatprep.mubr.f32.mxu0 0.0
      %2555 = vmatmul.mubr.f32.gmra.mrb[0].mxu0 %v2350
      %v2556 = vpop.f32.mrb[0].mxu0
      %v2557 = vadd.f32 0.0, %v2556
      %v2558 = vpop.f32.mrb[0].mxu0
      %2559 = vmatprep.mubr.f32.mxu0 0.0
      %2560 = vmatmul.mubr.f32.gmra.mrb[0].mxu0 %v2353
      %v2561 = vpop.f32.mrb[0].mxu0
      %v2562 = vadd.f32 0.0, %v2561
      %v2563 = vpop.f32.mrb[0].mxu0
      %2564 = vmatprep.mubr.f32.mxu0 0.0
      %2565 = vmatmul.mubr.f32.gmra.mrb[0].mxu0 %v2356
      %v2566 = vpop.f32.mrb[0].mxu0
      %v2567 = vadd.f32 0.0, %v2566
      %v2568 = vpop.f32.mrb[0].mxu0
      %2569 = vmatprep.mubr.f32.mxu0 0.0
      %2570 = vmatmul.mubr.f32.gmra.mrb[0].mxu0 %v2359
      %v2571 = vpop.f32.mrb[0].mxu0
      %v2572 = vadd.f32 0.0, %v2571
      %v2573 = vpop.f32.mrb[0].mxu0
      %2574 = vmatprep.mubr.f32.mxu0 0.0
      %2575 = vmatmul.mubr.f32.gmra.mrb[0].mxu0 %v2362
      %v2576 = vpop.f32.mrb[0].mxu0
      %v2577 = vadd.f32 0.0, %v2576
      %v2578 = vpop.f32.mrb[0].mxu0
      %2579 = vmatprep.mubr.f32.mxu0 0.0
      %2580 = vmatmul.mubr.f32.gmra.mrb[0].mxu0 %v2365
      %v2581 = vpop.f32.mrb[0].mxu0
      %v2582 = vadd.f32 0.0, %v2581
      %v2583 = vpop.f32.mrb[0].mxu0
      %2584 = vmatprep.mubr.f32.mxu0 0.0
      %2585 = vmatmul.mubr.f32.gmra.mrb[0].mxu0 %v2368
      %v2586 = vpop.f32.mrb[0].mxu0
      %v2587 = vadd.f32 0.0, %v2586
      %v2588 = vpop.f32.mrb[0].mxu0
      %2589 = vmatprep.mubr.f32.mxu0 0.0
      %2590 = vmatmul.mubr.f32.gmra.mrb[0].mxu0 %v2371
      %v2591 = vpop.f32.mrb[0].mxu0
      %v2592 = vadd.f32 0.0, %v2591
      %v2593 = vpop.f32.mrb[0].mxu0
      %2594 = vmatprep.mubr.f32.mxu0 0.0
      %2595 = vmatmul.mubr.f32.gmra.mrb[0].mxu0 %v2374
      %v2596 = vpop.f32.mrb[0].mxu0
      %v2597 = vadd.f32 0.0, %v2596
      %v2598 = vpop.f32.mrb[0].mxu0
      %2599 = vmatprep.mubr.f32.mxu0 0.0
      %2600 = vmatmul.mubr.f32.gmra.mrb[0].mxu0 %v2377
      %v2601 = vpop.f32.mrb[0].mxu0
      %v2602 = vadd.f32 0.0, %v2601
      %v2603 = vpop.f32.mrb[0].mxu0
      %2604 = vmatprep.mubr.f32.mxu0 0.0
      %2605 = vmatmul.mubr.f32.gmra.mrb[0].mxu0 %v2380
      %v2606 = vpop.f32.mrb[0].mxu0
      %v2607 = vadd.f32 0.0, %v2606
      %v2608 = vpop.f32.mrb[0].mxu0
      %2609 = vdwg.mxu0
      %v2610 = vadd.f32 %v2220, %v2452
      %v2611 = vadd.f32 %v2221, %v2457
      %v2612 = vadd.f32 %v2222, %v2462
      %v2613 = vadd.f32 %v2223, %v2467
      %v2614 = vadd.f32 %v2224, %v2472
      %v2615 = vadd.f32 %v2225, %v2477
      %v2616 = vadd.f32 %v2226, %v2482
      %v2617 = vadd.f32 %v2227, %v2487
      %v2618 = vadd.f32 %v2228, %v2492
      %v2619 = vadd.f32 %v2229, %v2497
      %v2620 = vadd.f32 %v2230, %v2502
      %v2621 = vadd.f32 %v2231, %v2507
      %v2622 = vadd.f32 %v2232, %v2512
      %v2623 = vadd.f32 %v2233, %v2517
      %v2624 = vadd.f32 %v2234, %v2522
      %v2625 = vadd.f32 %v2235, %v2527
      %v2626 = vadd.f32 %v2236, %v2532
      %v2627 = vadd.f32 %v2237, %v2537
      %v2628 = vadd.f32 %v2238, %v2542
      %v2629 = vadd.f32 %v2239, %v2547
      %v2630 = vadd.f32 %v2240, %v2552
      %v2631 = vadd.f32 %v2241, %v2557
      %v2632 = vadd.f32 %v2242, %v2562
      %v2633 = vadd.f32 %v2243, %v2567
      %v2634 = vadd.f32 %v2244, %v2572
      %v2635 = vadd.f32 %v2245, %v2577
      %v2636 = vadd.f32 %v2246, %v2582
      %v2637 = vadd.f32 %v2247, %v2587
      %v2638 = vadd.f32 %v2248, %v2592
      %v2639 = vadd.f32 %v2249, %v2597
      %v2640 = vadd.f32 %v2250, %v2602
      %v2641 = vadd.f32 %v2251, %v2607
      %s2642 = scalar_lea.vmem [#allocation2], 48
      %v2643 = vld [vmem:[%s2642] sm:$0xff]
      %v2644 = vld [vmem:[%s2642 + $0x8] sm:$0xff]
      %v2645 = vld [vmem:[%s2642 + $0x18] sm:$0xff]
      %v2646 = vld [vmem:[%s2642 + $0x20] sm:$0xff]
      %v2647 = vld [vmem:[%s2642 + $0x30] sm:$0xff]
      %v2648 = vld [vmem:[%s2642 + $0x38] sm:$0xff]
      %v2649 = vld [vmem:[%s2642 + $0x48] sm:$0xff]
      %v2650 = vld [vmem:[%s2642 + $0x50] sm:$0xff]
      %v2651 = vld [vmem:[%s2642 + $0x60] sm:$0xff]
      %v2652 = vld [vmem:[%s2642 + $0x68] sm:$0xff]
      %v2653 = vld [vmem:[%s2642 + $0x78] sm:$0xff]
      %v2654 = vld [vmem:[%s2642 + $0x80] sm:$0xff]
      %v2655 = vld [vmem:[%s2642 + $0x90] sm:$0xff]
      %v2656 = vld [vmem:[%s2642 + $0x98] sm:$0xff]
      %v2657 = vld [vmem:[%s2642 + $0xa8] sm:$0xff]
      %v2658 = vld [vmem:[%s2642 + $0xb0] sm:$0xff]
      %v2659 = vld [vmem:[%s2642 + $0xc0] sm:$0xff]
      %v2660 = vld [vmem:[%s2642 + $0xc8] sm:$0xff]
      %v2661 = vld [vmem:[%s2642 + $0xd8] sm:$0xff]
      %v2662 = vld [vmem:[%s2642 + $0xe0] sm:$0xff]
      %v2663 = vld [vmem:[%s2642 + $0xf0] sm:$0xff]
      %v2664 = vld [vmem:[%s2642 + $0xf8] sm:$0xff]
      %v2665 = vld [vmem:[%s2642 + $0x108] sm:$0xff]
      %v2666 = vld [vmem:[%s2642 + $0x110] sm:$0xff]
      %v2667 = vld [vmem:[%s2642 + $0x120] sm:$0xff]
      %v2668 = vld [vmem:[%s2642 + $0x128] sm:$0xff]
      %v2669 = vld [vmem:[%s2642 + $0x138] sm:$0xff]
      %v2670 = vld [vmem:[%s2642 + $0x140] sm:$0xff]
      %v2671 = vld [vmem:[%s2642 + $0x150] sm:$0xff]
      %v2672 = vld [vmem:[%s2642 + $0x158] sm:$0xff]
      %v2673 = vld [vmem:[%s2642 + $0x168] sm:$0xff]
      %v2674 = vld [vmem:[%s2642 + $0x170] sm:$0xff]
      %s2675 = scalar_lea.vmem %s1, 24
      %v2676 = vld [vmem:[%s2675] sm:$0xf]
      %v2678 = vsel %vm223, %v2643, 0
      %v2681 = vsel %vm223, %v2644, 0
      %v2684 = vsel %vm223, %v2645, 0
      %v2687 = vsel %vm223, %v2646, 0
      %v2690 = vsel %vm223, %v2647, 0
      %v2693 = vsel %vm223, %v2648, 0
      %v2696 = vsel %vm223, %v2649, 0
      %v2699 = vsel %vm223, %v2650, 0
      %v2702 = vsel %vm223, %v2651, 0
      %v2705 = vsel %vm223, %v2652, 0
      %v2708 = vsel %vm223, %v2653, 0
      %v2711 = vsel %vm223, %v2654, 0
      %v2714 = vsel %vm223, %v2655, 0
      %v2717 = vsel %vm223, %v2656, 0
      %v2720 = vsel %vm223, %v2657, 0
      %v2723 = vsel %vm223, %v2658, 0
      %v2726 = vsel %vm223, %v2659, 0
      %v2729 = vsel %vm223, %v2660, 0
      %v2732 = vsel %vm223, %v2661, 0
      %v2735 = vsel %vm223, %v2662, 0
      %v2738 = vsel %vm223, %v2663, 0
      %v2741 = vsel %vm223, %v2664, 0
      %v2744 = vsel %vm223, %v2665, 0
      %v2747 = vsel %vm223, %v2666, 0
      %v2750 = vsel %vm223, %v2667, 0
      %v2753 = vsel %vm223, %v2668, 0
      %v2756 = vsel %vm223, %v2669, 0
      %v2759 = vsel %vm223, %v2670, 0
      %v2762 = vsel %vm223, %v2671, 0
      %v2765 = vsel %vm223, %v2672, 0
      %v2768 = vsel %vm223, %v2673, 0
      %v2771 = vsel %vm223, %v2674, 0
      %v2774 = vsel %vm529, %v2676, 0
      %2776 = vmatprep.subr.mxu0 0.0
      %2777 = vmatpush1.msra.mxu0 %v2774
      %2778 = vmatprep.subr.mxu0 0.0
      %2779 = vmatpush1.msra.mxu0 0.0
      %2780 = vmatprep.subr.mxu0 0.0
      %2781 = vmatpush1.msra.mxu0 0.0
      %2782 = vmatprep.subr.mxu0 0.0
      %2783 = vmatpush1.msra.mxu0 0.0
      %2784 = vmatprep.subr.mxu0 0.0
      %2785 = vmatpush1.msra.mxu0 0.0
      %2786 = vmatprep.subr.mxu0 0.0
      %2787 = vmatpush1.msra.mxu0 0.0
      %2788 = vmatprep.subr.mxu0 0.0
      %2789 = vmatpush1.msra.mxu0 0.0
      %2790 = vmatprep.subr.mxu0 0.0
      %2791 = vmatpush1.msra.mxu0 0.0
      %2792 = vmatprep.subr.mxu0 0.0
      %2793 = vmatpush1.msra.mxu0 0.0
      %2794 = vmatprep.subr.mxu0 0.0
      %2795 = vmatpush1.msra.mxu0 0.0
      %2796 = vmatprep.subr.mxu0 0.0
      %2797 = vmatpush1.msra.mxu0 0.0
      %2798 = vmatprep.subr.mxu0 0.0
      %2799 = vmatpush1.msra.mxu0 0.0
      %2800 = vmatprep.subr.mxu0 0.0
      %2801 = vmatpush1.msra.mxu0 0.0
      %2802 = vmatprep.subr.mxu0 0.0
      %2803 = vmatpush1.msra.mxu0 0.0
      %2804 = vmatprep.subr.mxu0 0.0
      %2805 = vmatpush1.msra.mxu0 0.0
      %2806 = vmatprep.subr.mxu0 0.0
      %2807 = vmatpush1.msra.mxu0 0.0
      %2808 = vmatprep.subr.mxu0 0.0
      %2809 = vmatpush1.msra.mxu0 0.0
      %2810 = vmatprep.subr.mxu0 0.0
      %2811 = vmatpush1.msra.mxu0 0.0
      %2812 = vmatprep.subr.mxu0 0.0
      %2813 = vmatpush1.msra.mxu0 0.0
      %2814 = vmatprep.subr.mxu0 0.0
      %2815 = vmatpush1.msra.mxu0 0.0
      %2816 = vmatprep.subr.mxu0 0.0
      %2817 = vmatpush1.msra.mxu0 0.0
      %2818 = vmatprep.subr.mxu0 0.0
      %2819 = vmatpush1.msra.mxu0 0.0
      %2820 = vmatprep.subr.mxu0 0.0
      %2821 = vmatpush1.msra.mxu0 0.0
      %2822 = vmatprep.subr.mxu0 0.0
      %2823 = vmatpush1.msra.mxu0 0.0
      %2824 = vmatprep.subr.mxu0 0.0
      %2825 = vmatpush1.msra.mxu0 0.0
      %2826 = vmatprep.subr.mxu0 0.0
      %2827 = vmatpush1.msra.mxu0 0.0
      %2828 = vmatprep.subr.mxu0 0.0
      %2829 = vmatpush1.msra.mxu0 0.0
      %2830 = vmatprep.subr.mxu0 0.0
      %2831 = vmatpush1.msra.mxu0 0.0
      %2832 = vmatprep.subr.mxu0 0.0
      %2833 = vmatpush1.msra.mxu0 0.0
      %2834 = vmatprep.subr.mxu0 0.0
      %2835 = vmatpush1.msra.mxu0 0.0
      %2836 = vmatprep.subr.mxu0 0.0
      %2837 = vmatpush1.msra.mxu0 0.0
      %2838 = vmatprep.subr.mxu0 0.0
      %2839 = vmatpush1.msra.mxu0 0.0
      %2840 = vmatprep.mubr.f32.mxu0 0.0
      %2841 = vmatmul.mubr.f32.gmra.mrb[0].mxu0 %v2678
      %v2842 = vpop.f32.mrb[0].mxu0
      %v2843 = vadd.f32 0.0, %v2842
      %v2844 = vpop.f32.mrb[0].mxu0
      %2845 = vmatprep.mubr.f32.mxu0 0.0
      %2846 = vmatmul.mubr.f32.gmra.mrb[0].mxu0 %v2681
      %v2847 = vpop.f32.mrb[0].mxu0
      %v2848 = vadd.f32 0.0, %v2847
      %v2849 = vpop.f32.mrb[0].mxu0
      %2850 = vmatprep.mubr.f32.mxu0 0.0
      %2851 = vmatmul.mubr.f32.gmra.mrb[0].mxu0 %v2684
      %v2852 = vpop.f32.mrb[0].mxu0
      %v2853 = vadd.f32 0.0, %v2852
      %v2854 = vpop.f32.mrb[0].mxu0
      %2855 = vmatprep.mubr.f32.mxu0 0.0
      %2856 = vmatmul.mubr.f32.gmra.mrb[0].mxu0 %v2687
      %v2857 = vpop.f32.mrb[0].mxu0
      %v2858 = vadd.f32 0.0, %v2857
      %v2859 = vpop.f32.mrb[0].mxu0
      %2860 = vmatprep.mubr.f32.mxu0 0.0
      %2861 = vmatmul.mubr.f32.gmra.mrb[0].mxu0 %v2690
      %v2862 = vpop.f32.mrb[0].mxu0
      %v2863 = vadd.f32 0.0, %v2862
      %v2864 = vpop.f32.mrb[0].mxu0
      %2865 = vmatprep.mubr.f32.mxu0 0.0
      %2866 = vmatmul.mubr.f32.gmra.mrb[0].mxu0 %v2693
      %v2867 = vpop.f32.mrb[0].mxu0
      %v2868 = vadd.f32 0.0, %v2867
      %v2869 = vpop.f32.mrb[0].mxu0
      %2870 = vmatprep.mubr.f32.mxu0 0.0
      %2871 = vmatmul.mubr.f32.gmra.mrb[0].mxu0 %v2696
      %v2872 = vpop.f32.mrb[0].mxu0
      %v2873 = vadd.f32 0.0, %v2872
      %v2874 = vpop.f32.mrb[0].mxu0
      %2875 = vmatprep.mubr.f32.mxu0 0.0
      %2876 = vmatmul.mubr.f32.gmra.mrb[0].mxu0 %v2699
      %v2877 = vpop.f32.mrb[0].mxu0
      %v2878 = vadd.f32 0.0, %v2877
      %v2879 = vpop.f32.mrb[0].mxu0
      %2880 = vmatprep.mubr.f32.mxu0 0.0
      %2881 = vmatmul.mubr.f32.gmra.mrb[0].mxu0 %v2702
      %v2882 = vpop.f32.mrb[0].mxu0
      %v2883 = vadd.f32 0.0, %v2882
      %v2884 = vpop.f32.mrb[0].mxu0
      %2885 = vmatprep.mubr.f32.mxu0 0.0
      %2886 = vmatmul.mubr.f32.gmra.mrb[0].mxu0 %v2705
      %v2887 = vpop.f32.mrb[0].mxu0
      %v2888 = vadd.f32 0.0, %v2887
      %v2889 = vpop.f32.mrb[0].mxu0
      %2890 = vmatprep.mubr.f32.mxu0 0.0
      %2891 = vmatmul.mubr.f32.gmra.mrb[0].mxu0 %v2708
      %v2892 = vpop.f32.mrb[0].mxu0
      %v2893 = vadd.f32 0.0, %v2892
      %v2894 = vpop.f32.mrb[0].mxu0
      %2895 = vmatprep.mubr.f32.mxu0 0.0
      %2896 = vmatmul.mubr.f32.gmra.mrb[0].mxu0 %v2711
      %v2897 = vpop.f32.mrb[0].mxu0
      %v2898 = vadd.f32 0.0, %v2897
      %v2899 = vpop.f32.mrb[0].mxu0
      %2900 = vmatprep.mubr.f32.mxu0 0.0
      %2901 = vmatmul.mubr.f32.gmra.mrb[0].mxu0 %v2714
      %v2902 = vpop.f32.mrb[0].mxu0
      %v2903 = vadd.f32 0.0, %v2902
      %v2904 = vpop.f32.mrb[0].mxu0
      %2905 = vmatprep.mubr.f32.mxu0 0.0
      %2906 = vmatmul.mubr.f32.gmra.mrb[0].mxu0 %v2717
      %v2907 = vpop.f32.mrb[0].mxu0
      %v2908 = vadd.f32 0.0, %v2907
      %v2909 = vpop.f32.mrb[0].mxu0
      %2910 = vmatprep.mubr.f32.mxu0 0.0
      %2911 = vmatmul.mubr.f32.gmra.mrb[0].mxu0 %v2720
      %v2912 = vpop.f32.mrb[0].mxu0
      %v2913 = vadd.f32 0.0, %v2912
      %v2914 = vpop.f32.mrb[0].mxu0
      %2915 = vmatprep.mubr.f32.mxu0 0.0
      %2916 = vmatmul.mubr.f32.gmra.mrb[0].mxu0 %v2723
      %v2917 = vpop.f32.mrb[0].mxu0
      %v2918 = vadd.f32 0.0, %v2917
      %v2919 = vpop.f32.mrb[0].mxu0
      %2920 = vmatprep.mubr.f32.mxu0 0.0
      %2921 = vmatmul.mubr.f32.gmra.mrb[0].mxu0 %v2726
      %v2922 = vpop.f32.mrb[0].mxu0
      %v2923 = vadd.f32 0.0, %v2922
      %v2924 = vpop.f32.mrb[0].mxu0
      %2925 = vmatprep.mubr.f32.mxu0 0.0
      %2926 = vmatmul.mubr.f32.gmra.mrb[0].mxu0 %v2729
      %v2927 = vpop.f32.mrb[0].mxu0
      %v2928 = vadd.f32 0.0, %v2927
      %v2929 = vpop.f32.mrb[0].mxu0
      %2930 = vmatprep.mubr.f32.mxu0 0.0
      %2931 = vmatmul.mubr.f32.gmra.mrb[0].mxu0 %v2732
      %v2932 = vpop.f32.mrb[0].mxu0
      %v2933 = vadd.f32 0.0, %v2932
      %v2934 = vpop.f32.mrb[0].mxu0
      %2935 = vmatprep.mubr.f32.mxu0 0.0
      %2936 = vmatmul.mubr.f32.gmra.mrb[0].mxu0 %v2735
      %v2937 = vpop.f32.mrb[0].mxu0
      %v2938 = vadd.f32 0.0, %v2937
      %v2939 = vpop.f32.mrb[0].mxu0
      %2940 = vmatprep.mubr.f32.mxu0 0.0
      %2941 = vmatmul.mubr.f32.gmra.mrb[0].mxu0 %v2738
      %v2942 = vpop.f32.mrb[0].mxu0
      %v2943 = vadd.f32 0.0, %v2942
      %v2944 = vpop.f32.mrb[0].mxu0
      %2945 = vmatprep.mubr.f32.mxu0 0.0
      %2946 = vmatmul.mubr.f32.gmra.mrb[0].mxu0 %v2741
      %v2947 = vpop.f32.mrb[0].mxu0
      %v2948 = vadd.f32 0.0, %v2947
      %v2949 = vpop.f32.mrb[0].mxu0
      %2950 = vmatprep.mubr.f32.mxu0 0.0
      %2951 = vmatmul.mubr.f32.gmra.mrb[0].mxu0 %v2744
      %v2952 = vpop.f32.mrb[0].mxu0
      %v2953 = vadd.f32 0.0, %v2952
      %v2954 = vpop.f32.mrb[0].mxu0
      %2955 = vmatprep.mubr.f32.mxu0 0.0
      %2956 = vmatmul.mubr.f32.gmra.mrb[0].mxu0 %v2747
      %v2957 = vpop.f32.mrb[0].mxu0
      %v2958 = vadd.f32 0.0, %v2957
      %v2959 = vpop.f32.mrb[0].mxu0
      %2960 = vmatprep.mubr.f32.mxu0 0.0
      %2961 = vmatmul.mubr.f32.gmra.mrb[0].mxu0 %v2750
      %v2962 = vpop.f32.mrb[0].mxu0
      %v2963 = vadd.f32 0.0, %v2962
      %v2964 = vpop.f32.mrb[0].mxu0
      %2965 = vmatprep.mubr.f32.mxu0 0.0
      %2966 = vmatmul.mubr.f32.gmra.mrb[0].mxu0 %v2753
      %v2967 = vpop.f32.mrb[0].mxu0
      %v2968 = vadd.f32 0.0, %v2967
      %v2969 = vpop.f32.mrb[0].mxu0
      %2970 = vmatprep.mubr.f32.mxu0 0.0
      %2971 = vmatmul.mubr.f32.gmra.mrb[0].mxu0 %v2756
      %v2972 = vpop.f32.mrb[0].mxu0
      %v2973 = vadd.f32 0.0, %v2972
      %v2974 = vpop.f32.mrb[0].mxu0
      %2975 = vmatprep.mubr.f32.mxu0 0.0
      %2976 = vmatmul.mubr.f32.gmra.mrb[0].mxu0 %v2759
      %v2977 = vpop.f32.mrb[0].mxu0
      %v2978 = vadd.f32 0.0, %v2977
      %v2979 = vpop.f32.mrb[0].mxu0
      %2980 = vmatprep.mubr.f32.mxu0 0.0
      %2981 = vmatmul.mubr.f32.gmra.mrb[0].mxu0 %v2762
      %v2982 = vpop.f32.mrb[0].mxu0
      %v2983 = vadd.f32 0.0, %v2982
      %v2984 = vpop.f32.mrb[0].mxu0
      %2985 = vmatprep.mubr.f32.mxu0 0.0
      %2986 = vmatmul.mubr.f32.gmra.mrb[0].mxu0 %v2765
      %v2987 = vpop.f32.mrb[0].mxu0
      %v2988 = vadd.f32 0.0, %v2987
      %v2989 = vpop.f32.mrb[0].mxu0
      %2990 = vmatprep.mubr.f32.mxu0 0.0
      %2991 = vmatmul.mubr.f32.gmra.mrb[0].mxu0 %v2768
      %v2992 = vpop.f32.mrb[0].mxu0
      %v2993 = vadd.f32 0.0, %v2992
      %v2994 = vpop.f32.mrb[0].mxu0
      %2995 = vmatprep.mubr.f32.mxu0 0.0
      %2996 = vmatmul.mubr.f32.gmra.mrb[0].mxu0 %v2771
      %v2997 = vpop.f32.mrb[0].mxu0
      %v2998 = vadd.f32 0.0, %v2997
      %v2999 = vpop.f32.mrb[0].mxu0
      %3000 = vdwg.mxu0
      %v3001 = vadd.f32 %v2610, %v2843
      %v3002 = vadd.f32 %v2611, %v2848
      %v3003 = vadd.f32 %v2612, %v2853
      %v3004 = vadd.f32 %v2613, %v2858
      %v3005 = vadd.f32 %v2614, %v2863
      %v3006 = vadd.f32 %v2615, %v2868
      %v3007 = vadd.f32 %v2616, %v2873
      %v3008 = vadd.f32 %v2617, %v2878
      %v3009 = vadd.f32 %v2618, %v2883
      %v3010 = vadd.f32 %v2619, %v2888
      %v3011 = vadd.f32 %v2620, %v2893
      %v3012 = vadd.f32 %v2621, %v2898
      %v3013 = vadd.f32 %v2622, %v2903
      %v3014 = vadd.f32 %v2623, %v2908
      %v3015 = vadd.f32 %v2624, %v2913
      %v3016 = vadd.f32 %v2625, %v2918
      %v3017 = vadd.f32 %v2626, %v2923
      %v3018 = vadd.f32 %v2627, %v2928
      %v3019 = vadd.f32 %v2628, %v2933
      %v3020 = vadd.f32 %v2629, %v2938
      %v3021 = vadd.f32 %v2630, %v2943
      %v3022 = vadd.f32 %v2631, %v2948
      %v3023 = vadd.f32 %v2632, %v2953
      %v3024 = vadd.f32 %v2633, %v2958
      %v3025 = vadd.f32 %v2634, %v2963
      %v3026 = vadd.f32 %v2635, %v2968
      %v3027 = vadd.f32 %v2636, %v2973
      %v3028 = vadd.f32 %v2637, %v2978
      %v3029 = vadd.f32 %v2638, %v2983
      %v3030 = vadd.f32 %v2639, %v2988
      %v3031 = vadd.f32 %v2640, %v2993
      %v3032 = vadd.f32 %v2641, %v2998
      %v3033 = vld [vmem:[%s2642 + $0x1] sm:$0xff]
      %v3034 = vld [vmem:[%s2642 + $0x9] sm:$0xff]
      %v3035 = vld [vmem:[%s2642 + $0x19] sm:$0xff]
      %v3036 = vld [vmem:[%s2642 + $0x21] sm:$0xff]
      %v3037 = vld [vmem:[%s2642 + $0x31] sm:$0xff]
      %v3038 = vld [vmem:[%s2642 + $0x39] sm:$0xff]
      %v3039 = vld [vmem:[%s2642 + $0x49] sm:$0xff]
      %v3040 = vld [vmem:[%s2642 + $0x51] sm:$0xff]
      %v3041 = vld [vmem:[%s2642 + $0x61] sm:$0xff]
      %v3042 = vld [vmem:[%s2642 + $0x69] sm:$0xff]
      %v3043 = vld [vmem:[%s2642 + $0x79] sm:$0xff]
      %v3044 = vld [vmem:[%s2642 + $0x81] sm:$0xff]
      %v3045 = vld [vmem:[%s2642 + $0x91] sm:$0xff]
      %v3046 = vld [vmem:[%s2642 + $0x99] sm:$0xff]
      %v3047 = vld [vmem:[%s2642 + $0xa9] sm:$0xff]
      %v3048 = vld [vmem:[%s2642 + $0xb1] sm:$0xff]
      %v3049 = vld [vmem:[%s2642 + $0xc1] sm:$0xff]
      %v3050 = vld [vmem:[%s2642 + $0xc9] sm:$0xff]
      %v3051 = vld [vmem:[%s2642 + $0xd9] sm:$0xff]
      %v3052 = vld [vmem:[%s2642 + $0xe1] sm:$0xff]
      %v3053 = vld [vmem:[%s2642 + $0xf1] sm:$0xff]
      %v3054 = vld [vmem:[%s2642 + $0xf9] sm:$0xff]
      %v3055 = vld [vmem:[%s2642 + $0x109] sm:$0xff]
      %v3056 = vld [vmem:[%s2642 + $0x111] sm:$0xff]
      %v3057 = vld [vmem:[%s2642 + $0x121] sm:$0xff]
      %v3058 = vld [vmem:[%s2642 + $0x129] sm:$0xff]
      %v3059 = vld [vmem:[%s2642 + $0x139] sm:$0xff]
      %v3060 = vld [vmem:[%s2642 + $0x141] sm:$0xff]
      %v3061 = vld [vmem:[%s2642 + $0x151] sm:$0xff]
      %v3062 = vld [vmem:[%s2642 + $0x159] sm:$0xff]
      %v3063 = vld [vmem:[%s2642 + $0x169] sm:$0xff]
      %v3064 = vld [vmem:[%s2642 + $0x171] sm:$0xff]
      %s3065 = scalar_lea.vmem %s1, 28
      %v3066 = vld [vmem:[%s3065] sm:$0xf]
      %v3068 = vsel %vm223, %v3033, 0
      %v3071 = vsel %vm223, %v3034, 0
      %v3074 = vsel %vm223, %v3035, 0
      %v3077 = vsel %vm223, %v3036, 0
      %v3080 = vsel %vm223, %v3037, 0
      %v3083 = vsel %vm223, %v3038, 0
      %v3086 = vsel %vm223, %v3039, 0
      %v3089 = vsel %vm223, %v3040, 0
      %v3092 = vsel %vm223, %v3041, 0
      %v3095 = vsel %vm223, %v3042, 0
      %v3098 = vsel %vm223, %v3043, 0
      %v3101 = vsel %vm223, %v3044, 0
      %v3104 = vsel %vm223, %v3045, 0
      %v3107 = vsel %vm223, %v3046, 0
      %v3110 = vsel %vm223, %v3047, 0
      %v3113 = vsel %vm223, %v3048, 0
      %v3116 = vsel %vm223, %v3049, 0
      %v3119 = vsel %vm223, %v3050, 0
      %v3122 = vsel %vm223, %v3051, 0
      %v3125 = vsel %vm223, %v3052, 0
      %v3128 = vsel %vm223, %v3053, 0
      %v3131 = vsel %vm223, %v3054, 0
      %v3134 = vsel %vm223, %v3055, 0
      %v3137 = vsel %vm223, %v3056, 0
      %v3140 = vsel %vm223, %v3057, 0
      %v3143 = vsel %vm223, %v3058, 0
      %v3146 = vsel %vm223, %v3059, 0
      %v3149 = vsel %vm223, %v3060, 0
      %v3152 = vsel %vm223, %v3061, 0
      %v3155 = vsel %vm223, %v3062, 0
      %v3158 = vsel %vm223, %v3063, 0
      %v3161 = vsel %vm223, %v3064, 0
      %v3164 = vsel %vm529, %v3066, 0
      %3166 = vmatprep.subr.mxu0 0.0
      %3167 = vmatpush1.msra.mxu0 %v3164
      %3168 = vmatprep.subr.mxu0 0.0
      %3169 = vmatpush1.msra.mxu0 0.0
      %3170 = vmatprep.subr.mxu0 0.0
      %3171 = vmatpush1.msra.mxu0 0.0
      %3172 = vmatprep.subr.mxu0 0.0
      %3173 = vmatpush1.msra.mxu0 0.0
      %3174 = vmatprep.subr.mxu0 0.0
      %3175 = vmatpush1.msra.mxu0 0.0
      %3176 = vmatprep.subr.mxu0 0.0
      %3177 = vmatpush1.msra.mxu0 0.0
      %3178 = vmatprep.subr.mxu0 0.0
      %3179 = vmatpush1.msra.mxu0 0.0
      %3180 = vmatprep.subr.mxu0 0.0
      %3181 = vmatpush1.msra.mxu0 0.0
      %3182 = vmatprep.subr.mxu0 0.0
      %3183 = vmatpush1.msra.mxu0 0.0
      %3184 = vmatprep.subr.mxu0 0.0
      %3185 = vmatpush1.msra.mxu0 0.0
      %3186 = vmatprep.subr.mxu0 0.0
      %3187 = vmatpush1.msra.mxu0 0.0
      %3188 = vmatprep.subr.mxu0 0.0
      %3189 = vmatpush1.msra.mxu0 0.0
      %3190 = vmatprep.subr.mxu0 0.0
      %3191 = vmatpush1.msra.mxu0 0.0
      %3192 = vmatprep.subr.mxu0 0.0
      %3193 = vmatpush1.msra.mxu0 0.0
      %3194 = vmatprep.subr.mxu0 0.0
      %3195 = vmatpush1.msra.mxu0 0.0
      %3196 = vmatprep.subr.mxu0 0.0
      %3197 = vmatpush1.msra.mxu0 0.0
      %3198 = vmatprep.subr.mxu0 0.0
      %3199 = vmatpush1.msra.mxu0 0.0
      %3200 = vmatprep.subr.mxu0 0.0
      %3201 = vmatpush1.msra.mxu0 0.0
      %3202 = vmatprep.subr.mxu0 0.0
      %3203 = vmatpush1.msra.mxu0 0.0
      %3204 = vmatprep.subr.mxu0 0.0
      %3205 = vmatpush1.msra.mxu0 0.0
      %3206 = vmatprep.subr.mxu0 0.0
      %3207 = vmatpush1.msra.mxu0 0.0
      %3208 = vmatprep.subr.mxu0 0.0
      %3209 = vmatpush1.msra.mxu0 0.0
      %3210 = vmatprep.subr.mxu0 0.0
      %3211 = vmatpush1.msra.mxu0 0.0
      %3212 = vmatprep.subr.mxu0 0.0
      %3213 = vmatpush1.msra.mxu0 0.0
      %3214 = vmatprep.subr.mxu0 0.0
      %3215 = vmatpush1.msra.mxu0 0.0
      %3216 = vmatprep.subr.mxu0 0.0
      %3217 = vmatpush1.msra.mxu0 0.0
      %3218 = vmatprep.subr.mxu0 0.0
      %3219 = vmatpush1.msra.mxu0 0.0
      %3220 = vmatprep.subr.mxu0 0.0
      %3221 = vmatpush1.msra.mxu0 0.0
      %3222 = vmatprep.subr.mxu0 0.0
      %3223 = vmatpush1.msra.mxu0 0.0
      %3224 = vmatprep.subr.mxu0 0.0
      %3225 = vmatpush1.msra.mxu0 0.0
      %3226 = vmatprep.subr.mxu0 0.0
      %3227 = vmatpush1.msra.mxu0 0.0
      %3228 = vmatprep.subr.mxu0 0.0
      %3229 = vmatpush1.msra.mxu0 0.0
      %3230 = vmatprep.mubr.f32.mxu0 0.0
      %3231 = vmatmul.mubr.f32.gmra.mrb[0].mxu0 %v3068
      %v3232 = vpop.f32.mrb[0].mxu0
      %v3233 = vadd.f32 0.0, %v3232
      %v3234 = vpop.f32.mrb[0].mxu0
      %3235 = vmatprep.mubr.f32.mxu0 0.0
      %3236 = vmatmul.mubr.f32.gmra.mrb[0].mxu0 %v3071
      %v3237 = vpop.f32.mrb[0].mxu0
      %v3238 = vadd.f32 0.0, %v3237
      %v3239 = vpop.f32.mrb[0].mxu0
      %3240 = vmatprep.mubr.f32.mxu0 0.0
      %3241 = vmatmul.mubr.f32.gmra.mrb[0].mxu0 %v3074
      %v3242 = vpop.f32.mrb[0].mxu0
      %v3243 = vadd.f32 0.0, %v3242
      %v3244 = vpop.f32.mrb[0].mxu0
      %3245 = vmatprep.mubr.f32.mxu0 0.0
      %3246 = vmatmul.mubr.f32.gmra.mrb[0].mxu0 %v3077
      %v3247 = vpop.f32.mrb[0].mxu0
      %v3248 = vadd.f32 0.0, %v3247
      %v3249 = vpop.f32.mrb[0].mxu0
      %3250 = vmatprep.mubr.f32.mxu0 0.0
      %3251 = vmatmul.mubr.f32.gmra.mrb[0].mxu0 %v3080
      %v3252 = vpop.f32.mrb[0].mxu0
      %v3253 = vadd.f32 0.0, %v3252
      %v3254 = vpop.f32.mrb[0].mxu0
      %3255 = vmatprep.mubr.f32.mxu0 0.0
      %3256 = vmatmul.mubr.f32.gmra.mrb[0].mxu0 %v3083
      %v3257 = vpop.f32.mrb[0].mxu0
      %v3258 = vadd.f32 0.0, %v3257
      %v3259 = vpop.f32.mrb[0].mxu0
      %3260 = vmatprep.mubr.f32.mxu0 0.0
      %3261 = vmatmul.mubr.f32.gmra.mrb[0].mxu0 %v3086
      %v3262 = vpop.f32.mrb[0].mxu0
      %v3263 = vadd.f32 0.0, %v3262
      %v3264 = vpop.f32.mrb[0].mxu0
      %3265 = vmatprep.mubr.f32.mxu0 0.0
      %3266 = vmatmul.mubr.f32.gmra.mrb[0].mxu0 %v3089
      %v3267 = vpop.f32.mrb[0].mxu0
      %v3268 = vadd.f32 0.0, %v3267
      %v3269 = vpop.f32.mrb[0].mxu0
      %3270 = vmatprep.mubr.f32.mxu0 0.0
      %3271 = vmatmul.mubr.f32.gmra.mrb[0].mxu0 %v3092
      %v3272 = vpop.f32.mrb[0].mxu0
      %v3273 = vadd.f32 0.0, %v3272
      %v3274 = vpop.f32.mrb[0].mxu0
      %3275 = vmatprep.mubr.f32.mxu0 0.0
      %3276 = vmatmul.mubr.f32.gmra.mrb[0].mxu0 %v3095
      %v3277 = vpop.f32.mrb[0].mxu0
      %v3278 = vadd.f32 0.0, %v3277
      %v3279 = vpop.f32.mrb[0].mxu0
      %3280 = vmatprep.mubr.f32.mxu0 0.0
      %3281 = vmatmul.mubr.f32.gmra.mrb[0].mxu0 %v3098
      %v3282 = vpop.f32.mrb[0].mxu0
      %v3283 = vadd.f32 0.0, %v3282
      %v3284 = vpop.f32.mrb[0].mxu0
      %3285 = vmatprep.mubr.f32.mxu0 0.0
      %3286 = vmatmul.mubr.f32.gmra.mrb[0].mxu0 %v3101
      %v3287 = vpop.f32.mrb[0].mxu0
      %v3288 = vadd.f32 0.0, %v3287
      %v3289 = vpop.f32.mrb[0].mxu0
      %3290 = vmatprep.mubr.f32.mxu0 0.0
      %3291 = vmatmul.mubr.f32.gmra.mrb[0].mxu0 %v3104
      %v3292 = vpop.f32.mrb[0].mxu0
      %v3293 = vadd.f32 0.0, %v3292
      %v3294 = vpop.f32.mrb[0].mxu0
      %3295 = vmatprep.mubr.f32.mxu0 0.0
      %3296 = vmatmul.mubr.f32.gmra.mrb[0].mxu0 %v3107
      %v3297 = vpop.f32.mrb[0].mxu0
      %v3298 = vadd.f32 0.0, %v3297
      %v3299 = vpop.f32.mrb[0].mxu0
      %3300 = vmatprep.mubr.f32.mxu0 0.0
      %3301 = vmatmul.mubr.f32.gmra.mrb[0].mxu0 %v3110
      %v3302 = vpop.f32.mrb[0].mxu0
      %v3303 = vadd.f32 0.0, %v3302
      %v3304 = vpop.f32.mrb[0].mxu0
      %3305 = vmatprep.mubr.f32.mxu0 0.0
      %3306 = vmatmul.mubr.f32.gmra.mrb[0].mxu0 %v3113
      %v3307 = vpop.f32.mrb[0].mxu0
      %v3308 = vadd.f32 0.0, %v3307
      %v3309 = vpop.f32.mrb[0].mxu0
      %3310 = vmatprep.mubr.f32.mxu0 0.0
      %3311 = vmatmul.mubr.f32.gmra.mrb[0].mxu0 %v3116
      %v3312 = vpop.f32.mrb[0].mxu0
      %v3313 = vadd.f32 0.0, %v3312
      %v3314 = vpop.f32.mrb[0].mxu0
      %3315 = vmatprep.mubr.f32.mxu0 0.0
      %3316 = vmatmul.mubr.f32.gmra.mrb[0].mxu0 %v3119
      %v3317 = vpop.f32.mrb[0].mxu0
      %v3318 = vadd.f32 0.0, %v3317
      %v3319 = vpop.f32.mrb[0].mxu0
      %3320 = vmatprep.mubr.f32.mxu0 0.0
      %3321 = vmatmul.mubr.f32.gmra.mrb[0].mxu0 %v3122
      %v3322 = vpop.f32.mrb[0].mxu0
      %v3323 = vadd.f32 0.0, %v3322
      %v3324 = vpop.f32.mrb[0].mxu0
      %3325 = vmatprep.mubr.f32.mxu0 0.0
      %3326 = vmatmul.mubr.f32.gmra.mrb[0].mxu0 %v3125
      %v3327 = vpop.f32.mrb[0].mxu0
      %v3328 = vadd.f32 0.0, %v3327
      %v3329 = vpop.f32.mrb[0].mxu0
      %3330 = vmatprep.mubr.f32.mxu0 0.0
      %3331 = vmatmul.mubr.f32.gmra.mrb[0].mxu0 %v3128
      %v3332 = vpop.f32.mrb[0].mxu0
      %v3333 = vadd.f32 0.0, %v3332
      %v3334 = vpop.f32.mrb[0].mxu0
      %3335 = vmatprep.mubr.f32.mxu0 0.0
      %3336 = vmatmul.mubr.f32.gmra.mrb[0].mxu0 %v3131
      %v3337 = vpop.f32.mrb[0].mxu0
      %v3338 = vadd.f32 0.0, %v3337
      %v3339 = vpop.f32.mrb[0].mxu0
      %3340 = vmatprep.mubr.f32.mxu0 0.0
      %3341 = vmatmul.mubr.f32.gmra.mrb[0].mxu0 %v3134
      %v3342 = vpop.f32.mrb[0].mxu0
      %v3343 = vadd.f32 0.0, %v3342
      %v3344 = vpop.f32.mrb[0].mxu0
      %3345 = vmatprep.mubr.f32.mxu0 0.0
      %3346 = vmatmul.mubr.f32.gmra.mrb[0].mxu0 %v3137
      %v3347 = vpop.f32.mrb[0].mxu0
      %v3348 = vadd.f32 0.0, %v3347
      %v3349 = vpop.f32.mrb[0].mxu0
      %3350 = vmatprep.mubr.f32.mxu0 0.0
      %3351 = vmatmul.mubr.f32.gmra.mrb[0].mxu0 %v3140
      %v3352 = vpop.f32.mrb[0].mxu0
      %v3353 = vadd.f32 0.0, %v3352
      %v3354 = vpop.f32.mrb[0].mxu0
      %3355 = vmatprep.mubr.f32.mxu0 0.0
      %3356 = vmatmul.mubr.f32.gmra.mrb[0].mxu0 %v3143
      %v3357 = vpop.f32.mrb[0].mxu0
      %v3358 = vadd.f32 0.0, %v3357
      %v3359 = vpop.f32.mrb[0].mxu0
      %3360 = vmatprep.mubr.f32.mxu0 0.0
      %3361 = vmatmul.mubr.f32.gmra.mrb[0].mxu0 %v3146
      %v3362 = vpop.f32.mrb[0].mxu0
      %v3363 = vadd.f32 0.0, %v3362
      %v3364 = vpop.f32.mrb[0].mxu0
      %3365 = vmatprep.mubr.f32.mxu0 0.0
      %3366 = vmatmul.mubr.f32.gmra.mrb[0].mxu0 %v3149
      %v3367 = vpop.f32.mrb[0].mxu0
      %v3368 = vadd.f32 0.0, %v3367
      %v3369 = vpop.f32.mrb[0].mxu0
      %3370 = vmatprep.mubr.f32.mxu0 0.0
      %3371 = vmatmul.mubr.f32.gmra.mrb[0].mxu0 %v3152
      %v3372 = vpop.f32.mrb[0].mxu0
      %v3373 = vadd.f32 0.0, %v3372
      %v3374 = vpop.f32.mrb[0].mxu0
      %3375 = vmatprep.mubr.f32.mxu0 0.0
      %3376 = vmatmul.mubr.f32.gmra.mrb[0].mxu0 %v3155
      %v3377 = vpop.f32.mrb[0].mxu0
      %v3378 = vadd.f32 0.0, %v3377
      %v3379 = vpop.f32.mrb[0].mxu0
      %3380 = vmatprep.mubr.f32.mxu0 0.0
      %3381 = vmatmul.mubr.f32.gmra.mrb[0].mxu0 %v3158
      %v3382 = vpop.f32.mrb[0].mxu0
      %v3383 = vadd.f32 0.0, %v3382
      %v3384 = vpop.f32.mrb[0].mxu0
      %3385 = vmatprep.mubr.f32.mxu0 0.0
      %3386 = vmatmul.mubr.f32.gmra.mrb[0].mxu0 %v3161
      %v3387 = vpop.f32.mrb[0].mxu0
      %v3388 = vadd.f32 0.0, %v3387
      %v3389 = vpop.f32.mrb[0].mxu0
      %3390 = vdwg.mxu0
      %v3391 = vadd.f32 %v3001, %v3233
      %v3392 = vadd.f32 %v3002, %v3238
      %v3393 = vadd.f32 %v3003, %v3243
      %v3394 = vadd.f32 %v3004, %v3248
      %v3395 = vadd.f32 %v3005, %v3253
      %v3396 = vadd.f32 %v3006, %v3258
      %v3397 = vadd.f32 %v3007, %v3263
      %v3398 = vadd.f32 %v3008, %v3268
      %v3399 = vadd.f32 %v3009, %v3273
      %v3400 = vadd.f32 %v3010, %v3278
      %v3401 = vadd.f32 %v3011, %v3283
      %v3402 = vadd.f32 %v3012, %v3288
      %v3403 = vadd.f32 %v3013, %v3293
      %v3404 = vadd.f32 %v3014, %v3298
      %v3405 = vadd.f32 %v3015, %v3303
      %v3406 = vadd.f32 %v3016, %v3308
      %v3407 = vadd.f32 %v3017, %v3313
      %v3408 = vadd.f32 %v3018, %v3318
      %v3409 = vadd.f32 %v3019, %v3323
      %v3410 = vadd.f32 %v3020, %v3328
      %v3411 = vadd.f32 %v3021, %v3333
      %v3412 = vadd.f32 %v3022, %v3338
      %v3413 = vadd.f32 %v3023, %v3343
      %v3414 = vadd.f32 %v3024, %v3348
      %v3415 = vadd.f32 %v3025, %v3353
      %v3416 = vadd.f32 %v3026, %v3358
      %v3417 = vadd.f32 %v3027, %v3363
      %v3418 = vadd.f32 %v3028, %v3368
      %v3419 = vadd.f32 %v3029, %v3373
      %v3420 = vadd.f32 %v3030, %v3378
      %v3421 = vadd.f32 %v3031, %v3383
      %v3422 = vadd.f32 %v3032, %v3388
      %v3423 = vld [vmem:[%s2642 + $0x2] sm:$0xff]
      %v3424 = vld [vmem:[%s2642 + $0xa] sm:$0xff]
      %v3425 = vld [vmem:[%s2642 + $0x1a] sm:$0xff]
      %v3426 = vld [vmem:[%s2642 + $0x22] sm:$0xff]
      %v3427 = vld [vmem:[%s2642 + $0x32] sm:$0xff]
      %v3428 = vld [vmem:[%s2642 + $0x3a] sm:$0xff]
      %v3429 = vld [vmem:[%s2642 + $0x4a] sm:$0xff]
      %v3430 = vld [vmem:[%s2642 + $0x52] sm:$0xff]
      %v3431 = vld [vmem:[%s2642 + $0x62] sm:$0xff]
      %v3432 = vld [vmem:[%s2642 + $0x6a] sm:$0xff]
      %v3433 = vld [vmem:[%s2642 + $0x7a] sm:$0xff]
      %v3434 = vld [vmem:[%s2642 + $0x82] sm:$0xff]
      %v3435 = vld [vmem:[%s2642 + $0x92] sm:$0xff]
      %v3436 = vld [vmem:[%s2642 + $0x9a] sm:$0xff]
      %v3437 = vld [vmem:[%s2642 + $0xaa] sm:$0xff]
      %v3438 = vld [vmem:[%s2642 + $0xb2] sm:$0xff]
      %v3439 = vld [vmem:[%s2642 + $0xc2] sm:$0xff]
      %v3440 = vld [vmem:[%s2642 + $0xca] sm:$0xff]
      %v3441 = vld [vmem:[%s2642 + $0xda] sm:$0xff]
      %v3442 = vld [vmem:[%s2642 + $0xe2] sm:$0xff]
      %v3443 = vld [vmem:[%s2642 + $0xf2] sm:$0xff]
      %v3444 = vld [vmem:[%s2642 + $0xfa] sm:$0xff]
      %v3445 = vld [vmem:[%s2642 + $0x10a] sm:$0xff]
      %v3446 = vld [vmem:[%s2642 + $0x112] sm:$0xff]
      %v3447 = vld [vmem:[%s2642 + $0x122] sm:$0xff]
      %v3448 = vld [vmem:[%s2642 + $0x12a] sm:$0xff]
      %v3449 = vld [vmem:[%s2642 + $0x13a] sm:$0xff]
      %v3450 = vld [vmem:[%s2642 + $0x142] sm:$0xff]
      %v3451 = vld [vmem:[%s2642 + $0x152] sm:$0xff]
      %v3452 = vld [vmem:[%s2642 + $0x15a] sm:$0xff]
      %v3453 = vld [vmem:[%s2642 + $0x16a] sm:$0xff]
      %v3454 = vld [vmem:[%s2642 + $0x172] sm:$0xff]
      %s3455 = scalar_lea.vmem %s1, 32
      %v3456 = vld [vmem:[%s3455] sm:$0xf]
      %v3458 = vsel %vm223, %v3423, 0
      %v3461 = vsel %vm223, %v3424, 0
      %v3464 = vsel %vm223, %v3425, 0
      %v3467 = vsel %vm223, %v3426, 0
      %v3470 = vsel %vm223, %v3427, 0
      %v3473 = vsel %vm223, %v3428, 0
      %v3476 = vsel %vm223, %v3429, 0
      %v3479 = vsel %vm223, %v3430, 0
      %v3482 = vsel %vm223, %v3431, 0
      %v3485 = vsel %vm223, %v3432, 0
      %v3488 = vsel %vm223, %v3433, 0
      %v3491 = vsel %vm223, %v3434, 0
      %v3494 = vsel %vm223, %v3435, 0
      %v3497 = vsel %vm223, %v3436, 0
      %v3500 = vsel %vm223, %v3437, 0
      %v3503 = vsel %vm223, %v3438, 0
      %v3506 = vsel %vm223, %v3439, 0
      %v3509 = vsel %vm223, %v3440, 0
      %v3512 = vsel %vm223, %v3441, 0
      %v3515 = vsel %vm223, %v3442, 0
      %v3518 = vsel %vm223, %v3443, 0
      %v3521 = vsel %vm223, %v3444, 0
      %v3524 = vsel %vm223, %v3445, 0
      %v3527 = vsel %vm223, %v3446, 0
      %v3530 = vsel %vm223, %v3447, 0
      %v3533 = vsel %vm223, %v3448, 0
      %v3536 = vsel %vm223, %v3449, 0
      %v3539 = vsel %vm223, %v3450, 0
      %v3542 = vsel %vm223, %v3451, 0
      %v3545 = vsel %vm223, %v3452, 0
      %v3548 = vsel %vm223, %v3453, 0
      %v3551 = vsel %vm223, %v3454, 0
      %v3554 = vsel %vm529, %v3456, 0
      %3556 = vmatprep.subr.mxu0 0.0
      %3557 = vmatpush1.msra.mxu0 %v3554
      %3558 = vmatprep.subr.mxu0 0.0
      %3559 = vmatpush1.msra.mxu0 0.0
      %3560 = vmatprep.subr.mxu0 0.0
      %3561 = vmatpush1.msra.mxu0 0.0
      %3562 = vmatprep.subr.mxu0 0.0
      %3563 = vmatpush1.msra.mxu0 0.0
      %3564 = vmatprep.subr.mxu0 0.0
      %3565 = vmatpush1.msra.mxu0 0.0
      %3566 = vmatprep.subr.mxu0 0.0
      %3567 = vmatpush1.msra.mxu0 0.0
      %3568 = vmatprep.subr.mxu0 0.0
      %3569 = vmatpush1.msra.mxu0 0.0
      %3570 = vmatprep.subr.mxu0 0.0
      %3571 = vmatpush1.msra.mxu0 0.0
      %3572 = vmatprep.subr.mxu0 0.0
      %3573 = vmatpush1.msra.mxu0 0.0
      %3574 = vmatprep.subr.mxu0 0.0
      %3575 = vmatpush1.msra.mxu0 0.0
      %3576 = vmatprep.subr.mxu0 0.0
      %3577 = vmatpush1.msra.mxu0 0.0
      %3578 = vmatprep.subr.mxu0 0.0
      %3579 = vmatpush1.msra.mxu0 0.0
      %3580 = vmatprep.subr.mxu0 0.0
      %3581 = vmatpush1.msra.mxu0 0.0
      %3582 = vmatprep.subr.mxu0 0.0
      %3583 = vmatpush1.msra.mxu0 0.0
      %3584 = vmatprep.subr.mxu0 0.0
      %3585 = vmatpush1.msra.mxu0 0.0
      %3586 = vmatprep.subr.mxu0 0.0
      %3587 = vmatpush1.msra.mxu0 0.0
      %3588 = vmatprep.subr.mxu0 0.0
      %3589 = vmatpush1.msra.mxu0 0.0
      %3590 = vmatprep.subr.mxu0 0.0
      %3591 = vmatpush1.msra.mxu0 0.0
      %3592 = vmatprep.subr.mxu0 0.0
      %3593 = vmatpush1.msra.mxu0 0.0
      %3594 = vmatprep.subr.mxu0 0.0
      %3595 = vmatpush1.msra.mxu0 0.0
      %3596 = vmatprep.subr.mxu0 0.0
      %3597 = vmatpush1.msra.mxu0 0.0
      %3598 = vmatprep.subr.mxu0 0.0
      %3599 = vmatpush1.msra.mxu0 0.0
      %3600 = vmatprep.subr.mxu0 0.0
      %3601 = vmatpush1.msra.mxu0 0.0
      %3602 = vmatprep.subr.mxu0 0.0
      %3603 = vmatpush1.msra.mxu0 0.0
      %3604 = vmatprep.subr.mxu0 0.0
      %3605 = vmatpush1.msra.mxu0 0.0
      %3606 = vmatprep.subr.mxu0 0.0
      %3607 = vmatpush1.msra.mxu0 0.0
      %3608 = vmatprep.subr.mxu0 0.0
      %3609 = vmatpush1.msra.mxu0 0.0
      %3610 = vmatprep.subr.mxu0 0.0
      %3611 = vmatpush1.msra.mxu0 0.0
      %3612 = vmatprep.subr.mxu0 0.0
      %3613 = vmatpush1.msra.mxu0 0.0
      %3614 = vmatprep.subr.mxu0 0.0
      %3615 = vmatpush1.msra.mxu0 0.0
      %3616 = vmatprep.subr.mxu0 0.0
      %3617 = vmatpush1.msra.mxu0 0.0
      %3618 = vmatprep.subr.mxu0 0.0
      %3619 = vmatpush1.msra.mxu0 0.0
      %3620 = vmatprep.mubr.f32.mxu0 0.0
      %3621 = vmatmul.mubr.f32.gmra.mrb[0].mxu0 %v3458
      %v3622 = vpop.f32.mrb[0].mxu0
      %v3623 = vadd.f32 0.0, %v3622
      %v3624 = vpop.f32.mrb[0].mxu0
      %3625 = vmatprep.mubr.f32.mxu0 0.0
      %3626 = vmatmul.mubr.f32.gmra.mrb[0].mxu0 %v3461
      %v3627 = vpop.f32.mrb[0].mxu0
      %v3628 = vadd.f32 0.0, %v3627
      %v3629 = vpop.f32.mrb[0].mxu0
      %3630 = vmatprep.mubr.f32.mxu0 0.0
      %3631 = vmatmul.mubr.f32.gmra.mrb[0].mxu0 %v3464
      %v3632 = vpop.f32.mrb[0].mxu0
      %v3633 = vadd.f32 0.0, %v3632
      %v3634 = vpop.f32.mrb[0].mxu0
      %3635 = vmatprep.mubr.f32.mxu0 0.0
      %3636 = vmatmul.mubr.f32.gmra.mrb[0].mxu0 %v3467
      %v3637 = vpop.f32.mrb[0].mxu0
      %v3638 = vadd.f32 0.0, %v3637
      %v3639 = vpop.f32.mrb[0].mxu0
      %3640 = vmatprep.mubr.f32.mxu0 0.0
      %3641 = vmatmul.mubr.f32.gmra.mrb[0].mxu0 %v3470
      %v3642 = vpop.f32.mrb[0].mxu0
      %v3643 = vadd.f32 0.0, %v3642
      %v3644 = vpop.f32.mrb[0].mxu0
      %3645 = vmatprep.mubr.f32.mxu0 0.0
      %3646 = vmatmul.mubr.f32.gmra.mrb[0].mxu0 %v3473
      %v3647 = vpop.f32.mrb[0].mxu0
      %v3648 = vadd.f32 0.0, %v3647
      %v3649 = vpop.f32.mrb[0].mxu0
      %3650 = vmatprep.mubr.f32.mxu0 0.0
      %3651 = vmatmul.mubr.f32.gmra.mrb[0].mxu0 %v3476
      %v3652 = vpop.f32.mrb[0].mxu0
      %v3653 = vadd.f32 0.0, %v3652
      %v3654 = vpop.f32.mrb[0].mxu0
      %3655 = vmatprep.mubr.f32.mxu0 0.0
      %3656 = vmatmul.mubr.f32.gmra.mrb[0].mxu0 %v3479
      %v3657 = vpop.f32.mrb[0].mxu0
      %v3658 = vadd.f32 0.0, %v3657
      %v3659 = vpop.f32.mrb[0].mxu0
      %3660 = vmatprep.mubr.f32.mxu0 0.0
      %3661 = vmatmul.mubr.f32.gmra.mrb[0].mxu0 %v3482
      %v3662 = vpop.f32.mrb[0].mxu0
      %v3663 = vadd.f32 0.0, %v3662
      %v3664 = vpop.f32.mrb[0].mxu0
      %3665 = vmatprep.mubr.f32.mxu0 0.0
      %3666 = vmatmul.mubr.f32.gmra.mrb[0].mxu0 %v3485
      %v3667 = vpop.f32.mrb[0].mxu0
      %v3668 = vadd.f32 0.0, %v3667
      %v3669 = vpop.f32.mrb[0].mxu0
      %3670 = vmatprep.mubr.f32.mxu0 0.0
      %3671 = vmatmul.mubr.f32.gmra.mrb[0].mxu0 %v3488
      %v3672 = vpop.f32.mrb[0].mxu0
      %v3673 = vadd.f32 0.0, %v3672
      %v3674 = vpop.f32.mrb[0].mxu0
      %3675 = vmatprep.mubr.f32.mxu0 0.0
      %3676 = vmatmul.mubr.f32.gmra.mrb[0].mxu0 %v3491
      %v3677 = vpop.f32.mrb[0].mxu0
      %v3678 = vadd.f32 0.0, %v3677
      %v3679 = vpop.f32.mrb[0].mxu0
      %3680 = vmatprep.mubr.f32.mxu0 0.0
      %3681 = vmatmul.mubr.f32.gmra.mrb[0].mxu0 %v3494
      %v3682 = vpop.f32.mrb[0].mxu0
      %v3683 = vadd.f32 0.0, %v3682
      %v3684 = vpop.f32.mrb[0].mxu0
      %3685 = vmatprep.mubr.f32.mxu0 0.0
      %3686 = vmatmul.mubr.f32.gmra.mrb[0].mxu0 %v3497
      %v3687 = vpop.f32.mrb[0].mxu0
      %v3688 = vadd.f32 0.0, %v3687
      %v3689 = vpop.f32.mrb[0].mxu0
      %3690 = vmatprep.mubr.f32.mxu0 0.0
      %3691 = vmatmul.mubr.f32.gmra.mrb[0].mxu0 %v3500
      %v3692 = vpop.f32.mrb[0].mxu0
      %v3693 = vadd.f32 0.0, %v3692
      %v3694 = vpop.f32.mrb[0].mxu0
      %3695 = vmatprep.mubr.f32.mxu0 0.0
      %3696 = vmatmul.mubr.f32.gmra.mrb[0].mxu0 %v3503
      %v3697 = vpop.f32.mrb[0].mxu0
      %v3698 = vadd.f32 0.0, %v3697
      %v3699 = vpop.f32.mrb[0].mxu0
      %3700 = vmatprep.mubr.f32.mxu0 0.0
      %3701 = vmatmul.mubr.f32.gmra.mrb[0].mxu0 %v3506
      %v3702 = vpop.f32.mrb[0].mxu0
      %v3703 = vadd.f32 0.0, %v3702
      %v3704 = vpop.f32.mrb[0].mxu0
      %3705 = vmatprep.mubr.f32.mxu0 0.0
      %3706 = vmatmul.mubr.f32.gmra.mrb[0].mxu0 %v3509
      %v3707 = vpop.f32.mrb[0].mxu0
      %v3708 = vadd.f32 0.0, %v3707
      %v3709 = vpop.f32.mrb[0].mxu0
      %3710 = vmatprep.mubr.f32.mxu0 0.0
      %3711 = vmatmul.mubr.f32.gmra.mrb[0].mxu0 %v3512
      %v3712 = vpop.f32.mrb[0].mxu0
      %v3713 = vadd.f32 0.0, %v3712
      %v3714 = vpop.f32.mrb[0].mxu0
      %3715 = vmatprep.mubr.f32.mxu0 0.0
      %3716 = vmatmul.mubr.f32.gmra.mrb[0].mxu0 %v3515
      %v3717 = vpop.f32.mrb[0].mxu0
      %v3718 = vadd.f32 0.0, %v3717
      %v3719 = vpop.f32.mrb[0].mxu0
      %3720 = vmatprep.mubr.f32.mxu0 0.0
      %3721 = vmatmul.mubr.f32.gmra.mrb[0].mxu0 %v3518
      %v3722 = vpop.f32.mrb[0].mxu0
      %v3723 = vadd.f32 0.0, %v3722
      %v3724 = vpop.f32.mrb[0].mxu0
      %3725 = vmatprep.mubr.f32.mxu0 0.0
      %3726 = vmatmul.mubr.f32.gmra.mrb[0].mxu0 %v3521
      %v3727 = vpop.f32.mrb[0].mxu0
      %v3728 = vadd.f32 0.0, %v3727
      %v3729 = vpop.f32.mrb[0].mxu0
      %3730 = vmatprep.mubr.f32.mxu0 0.0
      %3731 = vmatmul.mubr.f32.gmra.mrb[0].mxu0 %v3524
      %v3732 = vpop.f32.mrb[0].mxu0
      %v3733 = vadd.f32 0.0, %v3732
      %v3734 = vpop.f32.mrb[0].mxu0
      %3735 = vmatprep.mubr.f32.mxu0 0.0
      %3736 = vmatmul.mubr.f32.gmra.mrb[0].mxu0 %v3527
      %v3737 = vpop.f32.mrb[0].mxu0
      %v3738 = vadd.f32 0.0, %v3737
      %v3739 = vpop.f32.mrb[0].mxu0
      %3740 = vmatprep.mubr.f32.mxu0 0.0
      %3741 = vmatmul.mubr.f32.gmra.mrb[0].mxu0 %v3530
      %v3742 = vpop.f32.mrb[0].mxu0
      %v3743 = vadd.f32 0.0, %v3742
      %v3744 = vpop.f32.mrb[0].mxu0
      %3745 = vmatprep.mubr.f32.mxu0 0.0
      %3746 = vmatmul.mubr.f32.gmra.mrb[0].mxu0 %v3533
      %v3747 = vpop.f32.mrb[0].mxu0
      %v3748 = vadd.f32 0.0, %v3747
      %v3749 = vpop.f32.mrb[0].mxu0
      %3750 = vmatprep.mubr.f32.mxu0 0.0
      %3751 = vmatmul.mubr.f32.gmra.mrb[0].mxu0 %v3536
      %v3752 = vpop.f32.mrb[0].mxu0
      %v3753 = vadd.f32 0.0, %v3752
      %v3754 = vpop.f32.mrb[0].mxu0
      %3755 = vmatprep.mubr.f32.mxu0 0.0
      %3756 = vmatmul.mubr.f32.gmra.mrb[0].mxu0 %v3539
      %v3757 = vpop.f32.mrb[0].mxu0
      %v3758 = vadd.f32 0.0, %v3757
      %v3759 = vpop.f32.mrb[0].mxu0
      %3760 = vmatprep.mubr.f32.mxu0 0.0
      %3761 = vmatmul.mubr.f32.gmra.mrb[0].mxu0 %v3542
      %v3762 = vpop.f32.mrb[0].mxu0
      %v3763 = vadd.f32 0.0, %v3762
      %v3764 = vpop.f32.mrb[0].mxu0
      %3765 = vmatprep.mubr.f32.mxu0 0.0
      %3766 = vmatmul.mubr.f32.gmra.mrb[0].mxu0 %v3545
      %v3767 = vpop.f32.mrb[0].mxu0
      %v3768 = vadd.f32 0.0, %v3767
      %v3769 = vpop.f32.mrb[0].mxu0
      %3770 = vmatprep.mubr.f32.mxu0 0.0
      %3771 = vmatmul.mubr.f32.gmra.mrb[0].mxu0 %v3548
      %v3772 = vpop.f32.mrb[0].mxu0
      %v3773 = vadd.f32 0.0, %v3772
      %v3774 = vpop.f32.mrb[0].mxu0
      %3775 = vmatprep.mubr.f32.mxu0 0.0
      %3776 = vmatmul.mubr.f32.gmra.mrb[0].mxu0 %v3551
      %v3777 = vpop.f32.mrb[0].mxu0
      %v3778 = vadd.f32 0.0, %v3777
      %v3779 = vpop.f32.mrb[0].mxu0
      %3780 = vdwg.mxu0
      %v3781 = vadd.f32 %v3391, %v3623
      %v3782 = vadd.f32 %v3392, %v3628
      %v3783 = vadd.f32 %v3393, %v3633
      %v3784 = vadd.f32 %v3394, %v3638
      %v3785 = vadd.f32 %v3395, %v3643
      %v3786 = vadd.f32 %v3396, %v3648
      %v3787 = vadd.f32 %v3397, %v3653
      %v3788 = vadd.f32 %v3398, %v3658
      %v3789 = vadd.f32 %v3399, %v3663
      %v3790 = vadd.f32 %v3400, %v3668
      %v3791 = vadd.f32 %v3401, %v3673
      %v3792 = vadd.f32 %v3402, %v3678
      %v3793 = vadd.f32 %v3403, %v3683
      %v3794 = vadd.f32 %v3404, %v3688
      %v3795 = vadd.f32 %v3405, %v3693
      %v3796 = vadd.f32 %v3406, %v3698
      %v3797 = vadd.f32 %v3407, %v3703
      %v3798 = vadd.f32 %v3408, %v3708
      %v3799 = vadd.f32 %v3409, %v3713
      %v3800 = vadd.f32 %v3410, %v3718
      %v3801 = vadd.f32 %v3411, %v3723
      %v3802 = vadd.f32 %v3412, %v3728
      %v3803 = vadd.f32 %v3413, %v3733
      %v3804 = vadd.f32 %v3414, %v3738
      %v3805 = vadd.f32 %v3415, %v3743
      %v3806 = vadd.f32 %v3416, %v3748
      %v3807 = vadd.f32 %v3417, %v3753
      %v3808 = vadd.f32 %v3418, %v3758
      %v3809 = vadd.f32 %v3419, %v3763
      %v3810 = vadd.f32 %v3420, %v3768
      %v3811 = vadd.f32 %v3421, %v3773
      %v3812 = vadd.f32 %v3422, %v3778
      %v3813 = vld [vmem:[%s3] sm:$0x1]
      %v3815 = vlaneseq
      %v3816 = vshrl.u32 %v3815, 7
      %v3817 = vsub.s32 0, %v3816
      %v3818 = vrot.slane %v3813, %v3817
      %v3820 = vadd.f32 %v3781, %v3818
      %v3821 = vadd.f32 %v3782, %v3818
      %v3822 = vadd.f32 %v3783, %v3818
      %v3823 = vadd.f32 %v3784, %v3818
      %v3824 = vadd.f32 %v3785, %v3818
      %v3825 = vadd.f32 %v3786, %v3818
      %v3826 = vadd.f32 %v3787, %v3818
      %v3827 = vadd.f32 %v3788, %v3818
      %v3828 = vadd.f32 %v3789, %v3818
      %v3829 = vadd.f32 %v3790, %v3818
      %v3830 = vadd.f32 %v3791, %v3818
      %v3831 = vadd.f32 %v3792, %v3818
      %v3832 = vadd.f32 %v3793, %v3818
      %v3833 = vadd.f32 %v3794, %v3818
      %v3834 = vadd.f32 %v3795, %v3818
      %v3835 = vadd.f32 %v3796, %v3818
      %v3836 = vadd.f32 %v3797, %v3818
      %v3837 = vadd.f32 %v3798, %v3818
      %v3838 = vadd.f32 %v3799, %v3818
      %v3839 = vadd.f32 %v3800, %v3818
      %v3840 = vadd.f32 %v3801, %v3818
      %v3841 = vadd.f32 %v3802, %v3818
      %v3842 = vadd.f32 %v3803, %v3818
      %v3843 = vadd.f32 %v3804, %v3818
      %v3844 = vadd.f32 %v3805, %v3818
      %v3845 = vadd.f32 %v3806, %v3818
      %v3846 = vadd.f32 %v3807, %v3818
      %v3847 = vadd.f32 %v3808, %v3818
      %v3848 = vadd.f32 %v3809, %v3818
      %v3849 = vadd.f32 %v3810, %v3818
      %v3850 = vadd.f32 %v3811, %v3818
      %v3851 = vadd.f32 %v3812, %v3818
      %v3852 = vmax.f32 %v3820, 0.0
      %v3853 = vmax.f32 %v3821, 0.0
      %v3854 = vmax.f32 %v3822, 0.0
      %v3855 = vmax.f32 %v3823, 0.0
      %v3856 = vmax.f32 %v3824, 0.0
      %v3857 = vmax.f32 %v3825, 0.0
      %v3858 = vmax.f32 %v3826, 0.0
      %v3859 = vmax.f32 %v3827, 0.0
      %v3860 = vmax.f32 %v3828, 0.0
      %v3861 = vmax.f32 %v3829, 0.0
      %v3862 = vmax.f32 %v3830, 0.0
      %v3863 = vmax.f32 %v3831, 0.0
      %v3864 = vmax.f32 %v3832, 0.0
      %v3865 = vmax.f32 %v3833, 0.0
      %v3866 = vmax.f32 %v3834, 0.0
      %v3867 = vmax.f32 %v3835, 0.0
      %v3868 = vmax.f32 %v3836, 0.0
      %v3869 = vmax.f32 %v3837, 0.0
      %v3870 = vmax.f32 %v3838, 0.0
      %v3871 = vmax.f32 %v3839, 0.0
      %v3872 = vmax.f32 %v3840, 0.0
      %v3873 = vmax.f32 %v3841, 0.0
      %v3874 = vmax.f32 %v3842, 0.0
      %v3875 = vmax.f32 %v3843, 0.0
      %v3876 = vmax.f32 %v3844, 0.0
      %v3877 = vmax.f32 %v3845, 0.0
      %v3878 = vmax.f32 %v3846, 0.0
      %v3879 = vmax.f32 %v3847, 0.0
      %v3880 = vmax.f32 %v3848, 0.0
      %v3881 = vmax.f32 %v3849, 0.0
      %v3882 = vmax.f32 %v3850, 0.0
      %v3883 = vmax.f32 %v3851, 0.0
      %vm3884 = vcmask 64512
      %3885 = vst.msk [vmem:[#allocation3] sm:$0xff] %vm3884, 0.0
      %3886 = vst.msk [vmem:[#allocation3 + $0x8] sm:$0xff] %vm3884, 0.0
      %vm3887 = vcmask 58368
      %3888 = vst.msk [vmem:[#allocation3 + $0x10] sm:$0x3] %vm3887, 0.0
      %s3889 = scalar_lea.vmem [#allocation4], 192
      %3890 = vst.msk [vmem:[%s3889] sm:$0xff] %vm3884, 0.0
      %3891 = vst.msk [vmem:[%s3889 + $0x8] sm:$0xff] %vm3884, 0.0
      %3892 = vst.msk [vmem:[%s3889 + $0x10] sm:$0x3] %vm3887, 0.0
      %vm3893 = vcmask 57344
      %3894 = vst.msk [vmem:[#allocation3] sm:$0x1] %vm3893, 0.0
      %3895 = vst.msk [vmem:[#allocation3 + $0x18] sm:$0x1] %vm3893, 0.0
      %3896 = vst.msk [vmem:[#allocation3 + $0x30] sm:$0x1] %vm3893, 0.0
      %3897 = vst.msk [vmem:[#allocation3 + $0x48] sm:$0x1] %vm3893, 0.0
      %3898 = vst.msk [vmem:[#allocation3 + $0x60] sm:$0x1] %vm3893, 0.0
      %3899 = vst.msk [vmem:[#allocation3 + $0x78] sm:$0x1] %vm3893, 0.0
      %3900 = vst.msk [vmem:[#allocation3 + $0x90] sm:$0x1] %vm3893, 0.0
      %3901 = vst.msk [vmem:[#allocation3 + $0xa8] sm:$0x1] %vm3893, 0.0
      %3902 = vst.msk [vmem:[#allocation3 + $0xc0] sm:$0x1] %vm3893, 0.0
      %3903 = vst.msk [vmem:[#allocation3 + $0x11] sm:$0x1] %vm3893, 0.0
      %3904 = vst.msk [vmem:[#allocation3 + $0x29] sm:$0x1] %vm3893, 0.0
      %3905 = vst.msk [vmem:[#allocation3 + $0x41] sm:$0x1] %vm3893, 0.0
      %3906 = vst.msk [vmem:[#allocation3 + $0x59] sm:$0x1] %vm3893, 0.0
      %3907 = vst.msk [vmem:[#allocation3 + $0x71] sm:$0x1] %vm3893, 0.0
      %3908 = vst.msk [vmem:[#allocation3 + $0x89] sm:$0x1] %vm3893, 0.0
      %3909 = vst.msk [vmem:[#allocation3 + $0xa1] sm:$0x1] %vm3893, 0.0
      %3910 = vst.msk [vmem:[#allocation3 + $0xb9] sm:$0x1] %vm3893, 0.0
      %3911 = vst.msk [vmem:[#allocation3 + $0xd1] sm:$0x1] %vm3893, 0.0
      %3912 = vst.msk [vmem:[#allocation4] sm:$0x1] %vm3893, 0.0
      %3913 = vst.msk [vmem:[#allocation4 + $0x18] sm:$0x1] %vm3893, 0.0
      %3914 = vst.msk [vmem:[#allocation4 + $0x30] sm:$0x1] %vm3893, 0.0
      %3915 = vst.msk [vmem:[#allocation4 + $0x48] sm:$0x1] %vm3893, 0.0
      %3916 = vst.msk [vmem:[#allocation4 + $0x60] sm:$0x1] %vm3893, 0.0
      %3917 = vst.msk [vmem:[#allocation4 + $0x78] sm:$0x1] %vm3893, 0.0
      %3918 = vst.msk [vmem:[#allocation4 + $0x90] sm:$0x1] %vm3893, 0.0
      %3919 = vst.msk [vmem:[#allocation4 + $0xa8] sm:$0x1] %vm3893, 0.0
      %3920 = vst.msk [vmem:[#allocation4 + $0xc0] sm:$0x1] %vm3893, 0.0
      %3921 = vst.msk [vmem:[#allocation4 + $0x11] sm:$0x1] %vm3893, 0.0
      %3922 = vst.msk [vmem:[#allocation4 + $0x29] sm:$0x1] %vm3893, 0.0
      %3923 = vst.msk [vmem:[#allocation4 + $0x41] sm:$0x1] %vm3893, 0.0
      %3924 = vst.msk [vmem:[#allocation4 + $0x59] sm:$0x1] %vm3893, 0.0
      %3925 = vst.msk [vmem:[#allocation4 + $0x71] sm:$0x1] %vm3893, 0.0
      %3926 = vst.msk [vmem:[#allocation4 + $0x89] sm:$0x1] %vm3893, 0.0
      %3927 = vst.msk [vmem:[#allocation4 + $0xa1] sm:$0x1] %vm3893, 0.0
      %3928 = vst.msk [vmem:[#allocation4 + $0xb9] sm:$0x1] %vm3893, 0.0
      %3929 = vst.msk [vmem:[#allocation4 + $0xd1] sm:$0x1] %vm3893, 0.0
      %3930 = vst.msk [vmem:[#allocation4 + $0x1] sm:$0xff] %vm3884, %v3852
      %3931 = vst.msk [vmem:[#allocation4 + $0x9] sm:$0xff] %vm3884, %v3853
      %3932 = vst.msk [vmem:[#allocation4 + $0x19] sm:$0xff] %vm3884, %v3856
      %3933 = vst.msk [vmem:[#allocation4 + $0x21] sm:$0xff] %vm3884, %v3857
      %3934 = vst.msk [vmem:[#allocation4 + $0x31] sm:$0xff] %vm3884, %v3860
      %3935 = vst.msk [vmem:[#allocation4 + $0x39] sm:$0xff] %vm3884, %v3861
      %3936 = vst.msk [vmem:[#allocation4 + $0x49] sm:$0xff] %vm3884, %v3864
      %3937 = vst.msk [vmem:[#allocation4 + $0x51] sm:$0xff] %vm3884, %v3865
      %3938 = vst.msk [vmem:[#allocation4 + $0x61] sm:$0xff] %vm3884, %v3868
      %3939 = vst.msk [vmem:[#allocation4 + $0x69] sm:$0xff] %vm3884, %v3869
      %3940 = vst.msk [vmem:[#allocation4 + $0x79] sm:$0xff] %vm3884, %v3872
      %3941 = vst.msk [vmem:[#allocation4 + $0x81] sm:$0xff] %vm3884, %v3873
      %3942 = vst.msk [vmem:[#allocation4 + $0x91] sm:$0xff] %vm3884, %v3876
      %3943 = vst.msk [vmem:[#allocation4 + $0x99] sm:$0xff] %vm3884, %v3877
      %3944 = vst.msk [vmem:[#allocation4 + $0xa9] sm:$0xff] %vm3884, %v3880
      %3945 = vst.msk [vmem:[#allocation4 + $0xb1] sm:$0xff] %vm3884, %v3881
      %s3946 = scalar_lea.vmem [#allocation3], 24
      %3947 = vst.msk [vmem:[%s3946 + $0x1] sm:$0xff] %vm3884, %v3854
      %3948 = vst.msk [vmem:[%s3946 + $0x9] sm:$0xff] %vm3884, %v3855
      %3949 = vst.msk [vmem:[%s3946 + $0x19] sm:$0xff] %vm3884, %v3858
      %3950 = vst.msk [vmem:[%s3946 + $0x21] sm:$0xff] %vm3884, %v3859
      %3951 = vst.msk [vmem:[%s3946 + $0x31] sm:$0xff] %vm3884, %v3862
      %3952 = vst.msk [vmem:[%s3946 + $0x39] sm:$0xff] %vm3884, %v3863
      %3953 = vst.msk [vmem:[%s3946 + $0x49] sm:$0xff] %vm3884, %v3866
      %3954 = vst.msk [vmem:[%s3946 + $0x51] sm:$0xff] %vm3884, %v3867
      %3955 = vst.msk [vmem:[%s3946 + $0x61] sm:$0xff] %vm3884, %v3870
      %3956 = vst.msk [vmem:[%s3946 + $0x69] sm:$0xff] %vm3884, %v3871
      %3957 = vst.msk [vmem:[%s3946 + $0x79] sm:$0xff] %vm3884, %v3874
      %3958 = vst.msk [vmem:[%s3946 + $0x81] sm:$0xff] %vm3884, %v3875
      %3959 = vst.msk [vmem:[%s3946 + $0x91] sm:$0xff] %vm3884, %v3878
      %3960 = vst.msk [vmem:[%s3946 + $0x99] sm:$0xff] %vm3884, %v3879
      %3961 = vst.msk [vmem:[%s3946 + $0xa9] sm:$0xff] %vm3884, %v3882
      %3962 = vst.msk [vmem:[%s3946 + $0xb1] sm:$0xff] %vm3884, %v3883
      %v3963 = vld [vmem:[#allocation3] ss:$2 sm:$0xff]
      %s3964 = scalar_lea.vmem [#allocation3], 24
      %v3965 = vld [vmem:[%s3964] ss:$2 sm:$0xff]
      %s3966 = scalar_lea.vmem [#allocation3], 48
      %v3967 = vld [vmem:[%s3966] ss:$2 sm:$0xff]
      %s3968 = scalar_lea.vmem [#allocation3], 72
      %v3969 = vld [vmem:[%s3968] ss:$2 sm:$0xff]
      %s3970 = scalar_lea.vmem [#allocation3], 96
      %v3971 = vld [vmem:[%s3970] ss:$2 sm:$0xff]
      %s3972 = scalar_lea.vmem [#allocation3], 120
      %v3973 = vld [vmem:[%s3972] ss:$2 sm:$0xff]
      %s3974 = scalar_lea.vmem [#allocation3], 144
      %v3975 = vld [vmem:[%s3974] ss:$2 sm:$0xff]
      %s3976 = scalar_lea.vmem [#allocation3], 168
      %v3977 = vld [vmem:[%s3976] ss:$2 sm:$0xff]
      %v3978 = vld [vmem:[%s2] sm:$0xff]
      %s3979 = scalar_lea.vmem [#allocation3], 1
      %v3980 = vld [vmem:[%s3979] ss:$2 sm:$0xff]
      %s3981 = scalar_lea.vmem [#allocation3], 25
      %v3982 = vld [vmem:[%s3981] ss:$2 sm:$0xff]
      %s3983 = scalar_lea.vmem [#allocation3], 49
      %v3984 = vld [vmem:[%s3983] ss:$2 sm:$0xff]
      %s3985 = scalar_lea.vmem [#allocation3], 73
      %v3986 = vld [vmem:[%s3985] ss:$2 sm:$0xff]
      %s3987 = scalar_lea.vmem [#allocation3], 97
      %v3988 = vld [vmem:[%s3987] ss:$2 sm:$0xff]
      %s3989 = scalar_lea.vmem [#allocation3], 121
      %v3990 = vld [vmem:[%s3989] ss:$2 sm:$0xff]
      %s3991 = scalar_lea.vmem [#allocation3], 145
      %v3992 = vld [vmem:[%s3991] ss:$2 sm:$0xff]
      %s3993 = scalar_lea.vmem [#allocation3], 169
      %v3994 = vld [vmem:[%s3993] ss:$2 sm:$0xff]
      %s3995 = scalar_lea.vmem %s2, 8
      %v3996 = vld [vmem:[%s3995] sm:$0xff]
      %v3998 = vsel %vm3884, %v3980, 0
      %v4001 = vsel %vm3884, %v3982, 0
      %v4004 = vsel %vm3884, %v3984, 0
      %v4007 = vsel %vm3884, %v3986, 0
      %v4010 = vsel %vm3884, %v3988, 0
      %v4013 = vsel %vm3884, %v3990, 0
      %v4016 = vsel %vm3884, %v3992, 0
      %v4019 = vsel %vm3884, %v3994, 0
      %4021 = vmatprep.subr.mxu0 0.0
      %4022 = vmatpush1.msra.mxu0 %v3996
      %4023 = vmatprep.subr.mxu0 0.0
      %4024 = vmatpush1.msra.mxu0 0.0
      %4025 = vmatprep.subr.mxu0 0.0
      %4026 = vmatpush1.msra.mxu0 0.0
      %4027 = vmatprep.subr.mxu0 0.0
      %4028 = vmatpush1.msra.mxu0 0.0
      %4029 = vmatprep.subr.mxu0 0.0
      %4030 = vmatpush1.msra.mxu0 0.0
      %4031 = vmatprep.subr.mxu0 0.0
      %4032 = vmatpush1.msra.mxu0 0.0
      %4033 = vmatprep.subr.mxu0 0.0
      %4034 = vmatpush1.msra.mxu0 0.0
      %4035 = vmatprep.subr.mxu0 0.0
      %4036 = vmatpush1.msra.mxu0 0.0
      %4037 = vmatprep.subr.mxu0 0.0
      %4038 = vmatpush1.msra.mxu0 0.0
      %4039 = vmatprep.subr.mxu0 0.0
      %4040 = vmatpush1.msra.mxu0 0.0
      %4041 = vmatprep.subr.mxu0 0.0
      %4042 = vmatpush1.msra.mxu0 0.0
      %4043 = vmatprep.subr.mxu0 0.0
      %4044 = vmatpush1.msra.mxu0 0.0
      %4045 = vmatprep.subr.mxu0 0.0
      %4046 = vmatpush1.msra.mxu0 0.0
      %4047 = vmatprep.subr.mxu0 0.0
      %4048 = vmatpush1.msra.mxu0 0.0
      %4049 = vmatprep.subr.mxu0 0.0
      %4050 = vmatpush1.msra.mxu0 0.0
      %4051 = vmatprep.subr.mxu0 0.0
      %4052 = vmatpush1.msra.mxu0 0.0
      %4053 = vmatprep.subr.mxu0 0.0
      %4054 = vmatpush1.msra.mxu0 0.0
      %4055 = vmatprep.subr.mxu0 0.0
      %4056 = vmatpush1.msra.mxu0 0.0
      %4057 = vmatprep.subr.mxu0 0.0
      %4058 = vmatpush1.msra.mxu0 0.0
      %4059 = vmatprep.subr.mxu0 0.0
      %4060 = vmatpush1.msra.mxu0 0.0
      %4061 = vmatprep.subr.mxu0 0.0
      %4062 = vmatpush1.msra.mxu0 0.0
      %4063 = vmatprep.subr.mxu0 0.0
      %4064 = vmatpush1.msra.mxu0 0.0
      %4065 = vmatprep.subr.mxu0 0.0
      %4066 = vmatpush1.msra.mxu0 0.0
      %4067 = vmatprep.subr.mxu0 0.0
      %4068 = vmatpush1.msra.mxu0 0.0
      %4069 = vmatprep.subr.mxu0 0.0
      %4070 = vmatpush1.msra.mxu0 0.0
      %4071 = vmatprep.subr.mxu0 0.0
      %4072 = vmatpush1.msra.mxu0 0.0
      %4073 = vmatprep.subr.mxu0 0.0
      %4074 = vmatpush1.msra.mxu0 0.0
      %4075 = vmatprep.subr.mxu0 0.0
      %4076 = vmatpush1.msra.mxu0 0.0
      %4077 = vmatprep.subr.mxu0 0.0
      %4078 = vmatpush1.msra.mxu0 0.0
      %4079 = vmatprep.subr.mxu0 0.0
      %4080 = vmatpush1.msra.mxu0 0.0
      %4081 = vmatprep.subr.mxu0 0.0
      %4082 = vmatpush1.msra.mxu0 0.0
      %4083 = vmatprep.subr.mxu0 0.0
      %4084 = vmatpush1.msra.mxu0 0.0
      %4085 = vmatprep.mubr.f32.mxu0 0.0
      %4086 = vmatmul.mubr.f32.gmra.mrb[0].mxu0 %v3998
      %v4087 = vpop.f32.mrb[0].mxu0
      %v4088 = vadd.f32 0.0, %v4087
      %v4089 = vpop.f32.mrb[0].mxu0
      %4090 = vmatprep.mubr.f32.mxu0 0.0
      %4091 = vmatmul.mubr.f32.gmra.mrb[0].mxu0 %v4001
      %v4092 = vpop.f32.mrb[0].mxu0
      %v4093 = vadd.f32 0.0, %v4092
      %v4094 = vpop.f32.mrb[0].mxu0
      %4095 = vmatprep.mubr.f32.mxu0 0.0
      %4096 = vmatmul.mubr.f32.gmra.mrb[0].mxu0 %v4004
      %v4097 = vpop.f32.mrb[0].mxu0
      %v4098 = vadd.f32 0.0, %v4097
      %v4099 = vpop.f32.mrb[0].mxu0
      %4100 = vmatprep.mubr.f32.mxu0 0.0
      %4101 = vmatmul.mubr.f32.gmra.mrb[0].mxu0 %v4007
      %v4102 = vpop.f32.mrb[0].mxu0
      %v4103 = vadd.f32 0.0, %v4102
      %v4104 = vpop.f32.mrb[0].mxu0
      %4105 = vmatprep.mubr.f32.mxu0 0.0
      %4106 = vmatmul.mubr.f32.gmra.mrb[0].mxu0 %v4010
      %v4107 = vpop.f32.mrb[0].mxu0
      %v4108 = vadd.f32 0.0, %v4107
      %v4109 = vpop.f32.mrb[0].mxu0
      %4110 = vmatprep.mubr.f32.mxu0 0.0
      %4111 = vmatmul.mubr.f32.gmra.mrb[0].mxu0 %v4013
      %v4112 = vpop.f32.mrb[0].mxu0
      %v4113 = vadd.f32 0.0, %v4112
      %v4114 = vpop.f32.mrb[0].mxu0
      %4115 = vmatprep.mubr.f32.mxu0 0.0
      %4116 = vmatmul.mubr.f32.gmra.mrb[0].mxu0 %v4016
      %v4117 = vpop.f32.mrb[0].mxu0
      %v4118 = vadd.f32 0.0, %v4117
      %v4119 = vpop.f32.mrb[0].mxu0
      %4120 = vmatprep.mubr.f32.mxu0 0.0
      %4121 = vmatmul.mubr.f32.gmra.mrb[0].mxu0 %v4019
      %v4122 = vpop.f32.mrb[0].mxu0
      %v4123 = vadd.f32 0.0, %v4122
      %v4124 = vpop.f32.mrb[0].mxu0
      %4125 = vdwg.mxu0
      %v4127 = vsel %vm3884, %v3963, 0
      %v4130 = vsel %vm3884, %v3965, 0
      %v4133 = vsel %vm3884, %v3967, 0
      %v4136 = vsel %vm3884, %v3969, 0
      %v4139 = vsel %vm3884, %v3971, 0
      %v4142 = vsel %vm3884, %v3973, 0
      %v4145 = vsel %vm3884, %v3975, 0
      %v4148 = vsel %vm3884, %v3977, 0
      %4150 = vmatprep.subr.mxu0 0.0
      %4151 = vmatpush1.msra.mxu0 %v3978
      %4152 = vmatprep.subr.mxu0 0.0
      %4153 = vmatpush1.msra.mxu0 0.0
      %4154 = vmatprep.subr.mxu0 0.0
      %4155 = vmatpush1.msra.mxu0 0.0
      %4156 = vmatprep.subr.mxu0 0.0
      %4157 = vmatpush1.msra.mxu0 0.0
      %4158 = vmatprep.subr.mxu0 0.0
      %4159 = vmatpush1.msra.mxu0 0.0
      %4160 = vmatprep.subr.mxu0 0.0
      %4161 = vmatpush1.msra.mxu0 0.0
      %4162 = vmatprep.subr.mxu0 0.0
      %4163 = vmatpush1.msra.mxu0 0.0
      %4164 = vmatprep.subr.mxu0 0.0
      %4165 = vmatpush1.msra.mxu0 0.0
      %4166 = vmatprep.subr.mxu0 0.0
      %4167 = vmatpush1.msra.mxu0 0.0
      %4168 = vmatprep.subr.mxu0 0.0
      %4169 = vmatpush1.msra.mxu0 0.0
      %4170 = vmatprep.subr.mxu0 0.0
      %4171 = vmatpush1.msra.mxu0 0.0
      %4172 = vmatprep.subr.mxu0 0.0
      %4173 = vmatpush1.msra.mxu0 0.0
      %4174 = vmatprep.subr.mxu0 0.0
      %4175 = vmatpush1.msra.mxu0 0.0
      %4176 = vmatprep.subr.mxu0 0.0
      %4177 = vmatpush1.msra.mxu0 0.0
      %4178 = vmatprep.subr.mxu0 0.0
      %4179 = vmatpush1.msra.mxu0 0.0
      %4180 = vmatprep.subr.mxu0 0.0
      %4181 = vmatpush1.msra.mxu0 0.0
      %4182 = vmatprep.subr.mxu0 0.0
      %4183 = vmatpush1.msra.mxu0 0.0
      %4184 = vmatprep.subr.mxu0 0.0
      %4185 = vmatpush1.msra.mxu0 0.0
      %4186 = vmatprep.subr.mxu0 0.0
      %4187 = vmatpush1.msra.mxu0 0.0
      %4188 = vmatprep.subr.mxu0 0.0
      %4189 = vmatpush1.msra.mxu0 0.0
      %4190 = vmatprep.subr.mxu0 0.0
      %4191 = vmatpush1.msra.mxu0 0.0
      %4192 = vmatprep.subr.mxu0 0.0
      %4193 = vmatpush1.msra.mxu0 0.0
      %4194 = vmatprep.subr.mxu0 0.0
      %4195 = vmatpush1.msra.mxu0 0.0
      %4196 = vmatprep.subr.mxu0 0.0
      %4197 = vmatpush1.msra.mxu0 0.0
      %4198 = vmatprep.subr.mxu0 0.0
      %4199 = vmatpush1.msra.mxu0 0.0
      %4200 = vmatprep.subr.mxu0 0.0
      %4201 = vmatpush1.msra.mxu0 0.0
      %4202 = vmatprep.subr.mxu0 0.0
      %4203 = vmatpush1.msra.mxu0 0.0
      %4204 = vmatprep.subr.mxu0 0.0
      %4205 = vmatpush1.msra.mxu0 0.0
      %4206 = vmatprep.subr.mxu0 0.0
      %4207 = vmatpush1.msra.mxu0 0.0
      %4208 = vmatprep.subr.mxu0 0.0
      %4209 = vmatpush1.msra.mxu0 0.0
      %4210 = vmatprep.subr.mxu0 0.0
      %4211 = vmatpush1.msra.mxu0 0.0
      %4212 = vmatprep.subr.mxu0 0.0
      %4213 = vmatpush1.msra.mxu0 0.0
      %4214 = vmatprep.mubr.f32.mxu0 0.0
      %4215 = vmatmul.mubr.f32.gmra.mrb[0].mxu0 %v4127
      %v4216 = vpop.f32.mrb[0].mxu0
      %v4217 = vadd.f32 %v4088, %v4216
      %v4218 = vpop.f32.mrb[0].mxu0
      %4219 = vmatprep.mubr.f32.mxu0 0.0
      %4220 = vmatmul.mubr.f32.gmra.mrb[0].mxu0 %v4130
      %v4221 = vpop.f32.mrb[0].mxu0
      %v4222 = vadd.f32 %v4093, %v4221
      %v4223 = vpop.f32.mrb[0].mxu0
      %4224 = vmatprep.mubr.f32.mxu0 0.0
      %4225 = vmatmul.mubr.f32.gmra.mrb[0].mxu0 %v4133
      %v4226 = vpop.f32.mrb[0].mxu0
      %v4227 = vadd.f32 %v4098, %v4226
      %v4228 = vpop.f32.mrb[0].mxu0
      %4229 = vmatprep.mubr.f32.mxu0 0.0
      %4230 = vmatmul.mubr.f32.gmra.mrb[0].mxu0 %v4136
      %v4231 = vpop.f32.mrb[0].mxu0
      %v4232 = vadd.f32 %v4103, %v4231
      %v4233 = vpop.f32.mrb[0].mxu0
      %4234 = vmatprep.mubr.f32.mxu0 0.0
      %4235 = vmatmul.mubr.f32.gmra.mrb[0].mxu0 %v4139
      %v4236 = vpop.f32.mrb[0].mxu0
      %v4237 = vadd.f32 %v4108, %v4236
      %v4238 = vpop.f32.mrb[0].mxu0
      %4239 = vmatprep.mubr.f32.mxu0 0.0
      %4240 = vmatmul.mubr.f32.gmra.mrb[0].mxu0 %v4142
      %v4241 = vpop.f32.mrb[0].mxu0
      %v4242 = vadd.f32 %v4113, %v4241
      %v4243 = vpop.f32.mrb[0].mxu0
      %4244 = vmatprep.mubr.f32.mxu0 0.0
      %4245 = vmatmul.mubr.f32.gmra.mrb[0].mxu0 %v4145
      %v4246 = vpop.f32.mrb[0].mxu0
      %v4247 = vadd.f32 %v4118, %v4246
      %v4248 = vpop.f32.mrb[0].mxu0
      %4249 = vmatprep.mubr.f32.mxu0 0.0
      %4250 = vmatmul.mubr.f32.gmra.mrb[0].mxu0 %v4148
      %v4251 = vpop.f32.mrb[0].mxu0
      %v4252 = vadd.f32 %v4123, %v4251
      %v4253 = vpop.f32.mrb[0].mxu0
      %4254 = vdwg.mxu0
      %s4255 = scalar_lea.vmem [#allocation3], 2
      %v4256 = vld [vmem:[%s4255] ss:$2 sm:$0xff]
      %s4257 = scalar_lea.vmem [#allocation3], 26
      %v4258 = vld [vmem:[%s4257] ss:$2 sm:$0xff]
      %s4259 = scalar_lea.vmem [#allocation3], 50
      %v4260 = vld [vmem:[%s4259] ss:$2 sm:$0xff]
      %s4261 = scalar_lea.vmem [#allocation3], 74
      %v4262 = vld [vmem:[%s4261] ss:$2 sm:$0xff]
      %s4263 = scalar_lea.vmem [#allocation3], 98
      %v4264 = vld [vmem:[%s4263] ss:$2 sm:$0xff]
      %s4265 = scalar_lea.vmem [#allocation3], 122
      %v4266 = vld [vmem:[%s4265] ss:$2 sm:$0xff]
      %s4267 = scalar_lea.vmem [#allocation3], 146
      %v4268 = vld [vmem:[%s4267] ss:$2 sm:$0xff]
      %s4269 = scalar_lea.vmem [#allocation3], 170
      %v4270 = vld [vmem:[%s4269] ss:$2 sm:$0xff]
      %s4271 = scalar_lea.vmem %s2, 16
      %v4272 = vld [vmem:[%s4271] sm:$0xff]
      %v4274 = vsel %vm3884, %v4256, 0
      %v4277 = vsel %vm3884, %v4258, 0
      %v4280 = vsel %vm3884, %v4260, 0
      %v4283 = vsel %vm3884, %v4262, 0
      %v4286 = vsel %vm3884, %v4264, 0
      %v4289 = vsel %vm3884, %v4266, 0
      %v4292 = vsel %vm3884, %v4268, 0
      %v4295 = vsel %vm3884, %v4270, 0
      %4297 = vmatprep.subr.mxu0 0.0
      %4298 = vmatpush1.msra.mxu0 %v4272
      %4299 = vmatprep.subr.mxu0 0.0
      %4300 = vmatpush1.msra.mxu0 0.0
      %4301 = vmatprep.subr.mxu0 0.0
      %4302 = vmatpush1.msra.mxu0 0.0
      %4303 = vmatprep.subr.mxu0 0.0
      %4304 = vmatpush1.msra.mxu0 0.0
      %4305 = vmatprep.subr.mxu0 0.0
      %4306 = vmatpush1.msra.mxu0 0.0
      %4307 = vmatprep.subr.mxu0 0.0
      %4308 = vmatpush1.msra.mxu0 0.0
      %4309 = vmatprep.subr.mxu0 0.0
      %4310 = vmatpush1.msra.mxu0 0.0
      %4311 = vmatprep.subr.mxu0 0.0
      %4312 = vmatpush1.msra.mxu0 0.0
      %4313 = vmatprep.subr.mxu0 0.0
      %4314 = vmatpush1.msra.mxu0 0.0
      %4315 = vmatprep.subr.mxu0 0.0
      %4316 = vmatpush1.msra.mxu0 0.0
      %4317 = vmatprep.subr.mxu0 0.0
      %4318 = vmatpush1.msra.mxu0 0.0
      %4319 = vmatprep.subr.mxu0 0.0
      %4320 = vmatpush1.msra.mxu0 0.0
      %4321 = vmatprep.subr.mxu0 0.0
      %4322 = vmatpush1.msra.mxu0 0.0
      %4323 = vmatprep.subr.mxu0 0.0
      %4324 = vmatpush1.msra.mxu0 0.0
      %4325 = vmatprep.subr.mxu0 0.0
      %4326 = vmatpush1.msra.mxu0 0.0
      %4327 = vmatprep.subr.mxu0 0.0
      %4328 = vmatpush1.msra.mxu0 0.0
      %4329 = vmatprep.subr.mxu0 0.0
      %4330 = vmatpush1.msra.mxu0 0.0
      %4331 = vmatprep.subr.mxu0 0.0
      %4332 = vmatpush1.msra.mxu0 0.0
      %4333 = vmatprep.subr.mxu0 0.0
      %4334 = vmatpush1.msra.mxu0 0.0
      %4335 = vmatprep.subr.mxu0 0.0
      %4336 = vmatpush1.msra.mxu0 0.0
      %4337 = vmatprep.subr.mxu0 0.0
      %4338 = vmatpush1.msra.mxu0 0.0
      %4339 = vmatprep.subr.mxu0 0.0
      %4340 = vmatpush1.msra.mxu0 0.0
      %4341 = vmatprep.subr.mxu0 0.0
      %4342 = vmatpush1.msra.mxu0 0.0
      %4343 = vmatprep.subr.mxu0 0.0
      %4344 = vmatpush1.msra.mxu0 0.0
      %4345 = vmatprep.subr.mxu0 0.0
      %4346 = vmatpush1.msra.mxu0 0.0
      %4347 = vmatprep.subr.mxu0 0.0
      %4348 = vmatpush1.msra.mxu0 0.0
      %4349 = vmatprep.subr.mxu0 0.0
      %4350 = vmatpush1.msra.mxu0 0.0
      %4351 = vmatprep.subr.mxu0 0.0
      %4352 = vmatpush1.msra.mxu0 0.0
      %4353 = vmatprep.subr.mxu0 0.0
      %4354 = vmatpush1.msra.mxu0 0.0
      %4355 = vmatprep.subr.mxu0 0.0
      %4356 = vmatpush1.msra.mxu0 0.0
      %4357 = vmatprep.subr.mxu0 0.0
      %4358 = vmatpush1.msra.mxu0 0.0
      %4359 = vmatprep.subr.mxu0 0.0
      %4360 = vmatpush1.msra.mxu0 0.0
      %4361 = vmatprep.mubr.f32.mxu0 0.0
      %4362 = vmatmul.mubr.f32.gmra.mrb[0].mxu0 %v4274
      %v4363 = vpop.f32.mrb[0].mxu0
      %v4364 = vadd.f32 0.0, %v4363
      %v4365 = vpop.f32.mrb[0].mxu0
      %4366 = vmatprep.mubr.f32.mxu0 0.0
      %4367 = vmatmul.mubr.f32.gmra.mrb[0].mxu0 %v4277
      %v4368 = vpop.f32.mrb[0].mxu0
      %v4369 = vadd.f32 0.0, %v4368
      %v4370 = vpop.f32.mrb[0].mxu0
      %4371 = vmatprep.mubr.f32.mxu0 0.0
      %4372 = vmatmul.mubr.f32.gmra.mrb[0].mxu0 %v4280
      %v4373 = vpop.f32.mrb[0].mxu0
      %v4374 = vadd.f32 0.0, %v4373
      %v4375 = vpop.f32.mrb[0].mxu0
      %4376 = vmatprep.mubr.f32.mxu0 0.0
      %4377 = vmatmul.mubr.f32.gmra.mrb[0].mxu0 %v4283
      %v4378 = vpop.f32.mrb[0].mxu0
      %v4379 = vadd.f32 0.0, %v4378
      %v4380 = vpop.f32.mrb[0].mxu0
      %4381 = vmatprep.mubr.f32.mxu0 0.0
      %4382 = vmatmul.mubr.f32.gmra.mrb[0].mxu0 %v4286
      %v4383 = vpop.f32.mrb[0].mxu0
      %v4384 = vadd.f32 0.0, %v4383
      %v4385 = vpop.f32.mrb[0].mxu0
      %4386 = vmatprep.mubr.f32.mxu0 0.0
      %4387 = vmatmul.mubr.f32.gmra.mrb[0].mxu0 %v4289
      %v4388 = vpop.f32.mrb[0].mxu0
      %v4389 = vadd.f32 0.0, %v4388
      %v4390 = vpop.f32.mrb[0].mxu0
      %4391 = vmatprep.mubr.f32.mxu0 0.0
      %4392 = vmatmul.mubr.f32.gmra.mrb[0].mxu0 %v4292
      %v4393 = vpop.f32.mrb[0].mxu0
      %v4394 = vadd.f32 0.0, %v4393
      %v4395 = vpop.f32.mrb[0].mxu0
      %4396 = vmatprep.mubr.f32.mxu0 0.0
      %4397 = vmatmul.mubr.f32.gmra.mrb[0].mxu0 %v4295
      %v4398 = vpop.f32.mrb[0].mxu0
      %v4399 = vadd.f32 0.0, %v4398
      %v4400 = vpop.f32.mrb[0].mxu0
      %4401 = vdwg.mxu0
      %v4402 = vadd.f32 %v4217, %v4364
      %v4403 = vadd.f32 %v4222, %v4369
      %v4404 = vadd.f32 %v4227, %v4374
      %v4405 = vadd.f32 %v4232, %v4379
      %v4406 = vadd.f32 %v4237, %v4384
      %v4407 = vadd.f32 %v4242, %v4389
      %v4408 = vadd.f32 %v4247, %v4394
      %v4409 = vadd.f32 %v4252, %v4399
      %v4410 = vld [vmem:[#allocation4] ss:$2 sm:$0xff]
      %s4411 = scalar_lea.vmem [#allocation4], 24
      %v4412 = vld [vmem:[%s4411] ss:$2 sm:$0xff]
      %s4413 = scalar_lea.vmem [#allocation4], 48
      %v4414 = vld [vmem:[%s4413] ss:$2 sm:$0xff]
      %s4415 = scalar_lea.vmem [#allocation4], 72
      %v4416 = vld [vmem:[%s4415] ss:$2 sm:$0xff]
      %s4417 = scalar_lea.vmem [#allocation4], 96
      %v4418 = vld [vmem:[%s4417] ss:$2 sm:$0xff]
      %s4419 = scalar_lea.vmem [#allocation4], 120
      %v4420 = vld [vmem:[%s4419] ss:$2 sm:$0xff]
      %s4421 = scalar_lea.vmem [#allocation4], 144
      %v4422 = vld [vmem:[%s4421] ss:$2 sm:$0xff]
      %s4423 = scalar_lea.vmem [#allocation4], 168
      %v4424 = vld [vmem:[%s4423] ss:$2 sm:$0xff]
      %s4425 = scalar_lea.vmem %s2, 24
      %v4426 = vld [vmem:[%s4425] sm:$0xff]
      %v4428 = vsel %vm3884, %v4410, 0
      %v4431 = vsel %vm3884, %v4412, 0
      %v4434 = vsel %vm3884, %v4414, 0
      %v4437 = vsel %vm3884, %v4416, 0
      %v4440 = vsel %vm3884, %v4418, 0
      %v4443 = vsel %vm3884, %v4420, 0
      %v4446 = vsel %vm3884, %v4422, 0
      %v4449 = vsel %vm3884, %v4424, 0
      %4451 = vmatprep.subr.mxu0 0.0
      %4452 = vmatpush1.msra.mxu0 %v4426
      %4453 = vmatprep.subr.mxu0 0.0
      %4454 = vmatpush1.msra.mxu0 0.0
      %4455 = vmatprep.subr.mxu0 0.0
      %4456 = vmatpush1.msra.mxu0 0.0
      %4457 = vmatprep.subr.mxu0 0.0
      %4458 = vmatpush1.msra.mxu0 0.0
      %4459 = vmatprep.subr.mxu0 0.0
      %4460 = vmatpush1.msra.mxu0 0.0
      %4461 = vmatprep.subr.mxu0 0.0
      %4462 = vmatpush1.msra.mxu0 0.0
      %4463 = vmatprep.subr.mxu0 0.0
      %4464 = vmatpush1.msra.mxu0 0.0
      %4465 = vmatprep.subr.mxu0 0.0
      %4466 = vmatpush1.msra.mxu0 0.0
      %4467 = vmatprep.subr.mxu0 0.0
      %4468 = vmatpush1.msra.mxu0 0.0
      %4469 = vmatprep.subr.mxu0 0.0
      %4470 = vmatpush1.msra.mxu0 0.0
      %4471 = vmatprep.subr.mxu0 0.0
      %4472 = vmatpush1.msra.mxu0 0.0
      %4473 = vmatprep.subr.mxu0 0.0
      %4474 = vmatpush1.msra.mxu0 0.0
      %4475 = vmatprep.subr.mxu0 0.0
      %4476 = vmatpush1.msra.mxu0 0.0
      %4477 = vmatprep.subr.mxu0 0.0
      %4478 = vmatpush1.msra.mxu0 0.0
      %4479 = vmatprep.subr.mxu0 0.0
      %4480 = vmatpush1.msra.mxu0 0.0
      %4481 = vmatprep.subr.mxu0 0.0
      %4482 = vmatpush1.msra.mxu0 0.0
      %4483 = vmatprep.subr.mxu0 0.0
      %4484 = vmatpush1.msra.mxu0 0.0
      %4485 = vmatprep.subr.mxu0 0.0
      %4486 = vmatpush1.msra.mxu0 0.0
      %4487 = vmatprep.subr.mxu0 0.0
      %4488 = vmatpush1.msra.mxu0 0.0
      %4489 = vmatprep.subr.mxu0 0.0
      %4490 = vmatpush1.msra.mxu0 0.0
      %4491 = vmatprep.subr.mxu0 0.0
      %4492 = vmatpush1.msra.mxu0 0.0
      %4493 = vmatprep.subr.mxu0 0.0
      %4494 = vmatpush1.msra.mxu0 0.0
      %4495 = vmatprep.subr.mxu0 0.0
      %4496 = vmatpush1.msra.mxu0 0.0
      %4497 = vmatprep.subr.mxu0 0.0
      %4498 = vmatpush1.msra.mxu0 0.0
      %4499 = vmatprep.subr.mxu0 0.0
      %4500 = vmatpush1.msra.mxu0 0.0
      %4501 = vmatprep.subr.mxu0 0.0
      %4502 = vmatpush1.msra.mxu0 0.0
      %4503 = vmatprep.subr.mxu0 0.0
      %4504 = vmatpush1.msra.mxu0 0.0
      %4505 = vmatprep.subr.mxu0 0.0
      %4506 = vmatpush1.msra.mxu0 0.0
      %4507 = vmatprep.subr.mxu0 0.0
      %4508 = vmatpush1.msra.mxu0 0.0
      %4509 = vmatprep.subr.mxu0 0.0
      %4510 = vmatpush1.msra.mxu0 0.0
      %4511 = vmatprep.subr.mxu0 0.0
      %4512 = vmatpush1.msra.mxu0 0.0
      %4513 = vmatprep.subr.mxu0 0.0
      %4514 = vmatpush1.msra.mxu0 0.0
      %4515 = vmatprep.mubr.f32.mxu0 0.0
      %4516 = vmatmul.mubr.f32.gmra.mrb[0].mxu0 %v4428
      %v4517 = vpop.f32.mrb[0].mxu0
      %v4518 = vadd.f32 0.0, %v4517
      %v4519 = vpop.f32.mrb[0].mxu0
      %4520 = vmatprep.mubr.f32.mxu0 0.0
      %4521 = vmatmul.mubr.f32.gmra.mrb[0].mxu0 %v4431
      %v4522 = vpop.f32.mrb[0].mxu0
      %v4523 = vadd.f32 0.0, %v4522
      %v4524 = vpop.f32.mrb[0].mxu0
      %4525 = vmatprep.mubr.f32.mxu0 0.0
      %4526 = vmatmul.mubr.f32.gmra.mrb[0].mxu0 %v4434
      %v4527 = vpop.f32.mrb[0].mxu0
      %v4528 = vadd.f32 0.0, %v4527
      %v4529 = vpop.f32.mrb[0].mxu0
      %4530 = vmatprep.mubr.f32.mxu0 0.0
      %4531 = vmatmul.mubr.f32.gmra.mrb[0].mxu0 %v4437
      %v4532 = vpop.f32.mrb[0].mxu0
      %v4533 = vadd.f32 0.0, %v4532
      %v4534 = vpop.f32.mrb[0].mxu0
      %4535 = vmatprep.mubr.f32.mxu0 0.0
      %4536 = vmatmul.mubr.f32.gmra.mrb[0].mxu0 %v4440
      %v4537 = vpop.f32.mrb[0].mxu0
      %v4538 = vadd.f32 0.0, %v4537
      %v4539 = vpop.f32.mrb[0].mxu0
      %4540 = vmatprep.mubr.f32.mxu0 0.0
      %4541 = vmatmul.mubr.f32.gmra.mrb[0].mxu0 %v4443
      %v4542 = vpop.f32.mrb[0].mxu0
      %v4543 = vadd.f32 0.0, %v4542
      %v4544 = vpop.f32.mrb[0].mxu0
      %4545 = vmatprep.mubr.f32.mxu0 0.0
      %4546 = vmatmul.mubr.f32.gmra.mrb[0].mxu0 %v4446
      %v4547 = vpop.f32.mrb[0].mxu0
      %v4548 = vadd.f32 0.0, %v4547
      %v4549 = vpop.f32.mrb[0].mxu0
      %4550 = vmatprep.mubr.f32.mxu0 0.0
      %4551 = vmatmul.mubr.f32.gmra.mrb[0].mxu0 %v4449
      %v4552 = vpop.f32.mrb[0].mxu0
      %v4553 = vadd.f32 0.0, %v4552
      %v4554 = vpop.f32.mrb[0].mxu0
      %4555 = vdwg.mxu0
      %v4556 = vadd.f32 %v4402, %v4518
      %v4557 = vadd.f32 %v4403, %v4523
      %v4558 = vadd.f32 %v4404, %v4528
      %v4559 = vadd.f32 %v4405, %v4533
      %v4560 = vadd.f32 %v4406, %v4538
      %v4561 = vadd.f32 %v4407, %v4543
      %v4562 = vadd.f32 %v4408, %v4548
      %v4563 = vadd.f32 %v4409, %v4553
      %s4564 = scalar_lea.vmem [#allocation4], 1
      %v4565 = vld [vmem:[%s4564] ss:$2 sm:$0xff]
      %s4566 = scalar_lea.vmem [#allocation4], 25
      %v4567 = vld [vmem:[%s4566] ss:$2 sm:$0xff]
      %s4568 = scalar_lea.vmem [#allocation4], 49
      %v4569 = vld [vmem:[%s4568] ss:$2 sm:$0xff]
      %s4570 = scalar_lea.vmem [#allocation4], 73
      %v4571 = vld [vmem:[%s4570] ss:$2 sm:$0xff]
      %s4572 = scalar_lea.vmem [#allocation4], 97
      %v4573 = vld [vmem:[%s4572] ss:$2 sm:$0xff]
      %s4574 = scalar_lea.vmem [#allocation4], 121
      %v4575 = vld [vmem:[%s4574] ss:$2 sm:$0xff]
      %s4576 = scalar_lea.vmem [#allocation4], 145
      %v4577 = vld [vmem:[%s4576] ss:$2 sm:$0xff]
      %s4578 = scalar_lea.vmem [#allocation4], 169
      %v4579 = vld [vmem:[%s4578] ss:$2 sm:$0xff]
      %s4580 = scalar_lea.vmem %s2, 32
      %v4581 = vld [vmem:[%s4580] sm:$0xff]
      %v4583 = vsel %vm3884, %v4565, 0
      %v4586 = vsel %vm3884, %v4567, 0
      %v4589 = vsel %vm3884, %v4569, 0
      %v4592 = vsel %vm3884, %v4571, 0
      %v4595 = vsel %vm3884, %v4573, 0
      %v4598 = vsel %vm3884, %v4575, 0
      %v4601 = vsel %vm3884, %v4577, 0
      %v4604 = vsel %vm3884, %v4579, 0
      %4606 = vmatprep.subr.mxu0 0.0
      %4607 = vmatpush1.msra.mxu0 %v4581
      %4608 = vmatprep.subr.mxu0 0.0
      %4609 = vmatpush1.msra.mxu0 0.0
      %4610 = vmatprep.subr.mxu0 0.0
      %4611 = vmatpush1.msra.mxu0 0.0
      %4612 = vmatprep.subr.mxu0 0.0
      %4613 = vmatpush1.msra.mxu0 0.0
      %4614 = vmatprep.subr.mxu0 0.0
      %4615 = vmatpush1.msra.mxu0 0.0
      %4616 = vmatprep.subr.mxu0 0.0
      %4617 = vmatpush1.msra.mxu0 0.0
      %4618 = vmatprep.subr.mxu0 0.0
      %4619 = vmatpush1.msra.mxu0 0.0
      %4620 = vmatprep.subr.mxu0 0.0
      %4621 = vmatpush1.msra.mxu0 0.0
      %4622 = vmatprep.subr.mxu0 0.0
      %4623 = vmatpush1.msra.mxu0 0.0
      %4624 = vmatprep.subr.mxu0 0.0
      %4625 = vmatpush1.msra.mxu0 0.0
      %4626 = vmatprep.subr.mxu0 0.0
      %4627 = vmatpush1.msra.mxu0 0.0
      %4628 = vmatprep.subr.mxu0 0.0
      %4629 = vmatpush1.msra.mxu0 0.0
      %4630 = vmatprep.subr.mxu0 0.0
      %4631 = vmatpush1.msra.mxu0 0.0
      %4632 = vmatprep.subr.mxu0 0.0
      %4633 = vmatpush1.msra.mxu0 0.0
      %4634 = vmatprep.subr.mxu0 0.0
      %4635 = vmatpush1.msra.mxu0 0.0
      %4636 = vmatprep.subr.mxu0 0.0
      %4637 = vmatpush1.msra.mxu0 0.0
      %4638 = vmatprep.subr.mxu0 0.0
      %4639 = vmatpush1.msra.mxu0 0.0
      %4640 = vmatprep.subr.mxu0 0.0
      %4641 = vmatpush1.msra.mxu0 0.0
      %4642 = vmatprep.subr.mxu0 0.0
      %4643 = vmatpush1.msra.mxu0 0.0
      %4644 = vmatprep.subr.mxu0 0.0
      %4645 = vmatpush1.msra.mxu0 0.0
      %4646 = vmatprep.subr.mxu0 0.0
      %4647 = vmatpush1.msra.mxu0 0.0
      %4648 = vmatprep.subr.mxu0 0.0
      %4649 = vmatpush1.msra.mxu0 0.0
      %4650 = vmatprep.subr.mxu0 0.0
      %4651 = vmatpush1.msra.mxu0 0.0
      %4652 = vmatprep.subr.mxu0 0.0
      %4653 = vmatpush1.msra.mxu0 0.0
      %4654 = vmatprep.subr.mxu0 0.0
      %4655 = vmatpush1.msra.mxu0 0.0
      %4656 = vmatprep.subr.mxu0 0.0
      %4657 = vmatpush1.msra.mxu0 0.0
      %4658 = vmatprep.subr.mxu0 0.0
      %4659 = vmatpush1.msra.mxu0 0.0
      %4660 = vmatprep.subr.mxu0 0.0
      %4661 = vmatpush1.msra.mxu0 0.0
      %4662 = vmatprep.subr.mxu0 0.0
      %4663 = vmatpush1.msra.mxu0 0.0
      %4664 = vmatprep.subr.mxu0 0.0
      %4665 = vmatpush1.msra.mxu0 0.0
      %4666 = vmatprep.subr.mxu0 0.0
      %4667 = vmatpush1.msra.mxu0 0.0
      %4668 = vmatprep.subr.mxu0 0.0
      %4669 = vmatpush1.msra.mxu0 0.0
      %4670 = vmatprep.mubr.f32.mxu0 0.0
      %4671 = vmatmul.mubr.f32.gmra.mrb[0].mxu0 %v4583
      %v4672 = vpop.f32.mrb[0].mxu0
      %v4673 = vadd.f32 0.0, %v4672
      %v4674 = vpop.f32.mrb[0].mxu0
      %4675 = vmatprep.mubr.f32.mxu0 0.0
      %4676 = vmatmul.mubr.f32.gmra.mrb[0].mxu0 %v4586
      %v4677 = vpop.f32.mrb[0].mxu0
      %v4678 = vadd.f32 0.0, %v4677
      %v4679 = vpop.f32.mrb[0].mxu0
      %4680 = vmatprep.mubr.f32.mxu0 0.0
      %4681 = vmatmul.mubr.f32.gmra.mrb[0].mxu0 %v4589
      %v4682 = vpop.f32.mrb[0].mxu0
      %v4683 = vadd.f32 0.0, %v4682
      %v4684 = vpop.f32.mrb[0].mxu0
      %4685 = vmatprep.mubr.f32.mxu0 0.0
      %4686 = vmatmul.mubr.f32.gmra.mrb[0].mxu0 %v4592
      %v4687 = vpop.f32.mrb[0].mxu0
      %v4688 = vadd.f32 0.0, %v4687
      %v4689 = vpop.f32.mrb[0].mxu0
      %4690 = vmatprep.mubr.f32.mxu0 0.0
      %4691 = vmatmul.mubr.f32.gmra.mrb[0].mxu0 %v4595
      %v4692 = vpop.f32.mrb[0].mxu0
      %v4693 = vadd.f32 0.0, %v4692
      %v4694 = vpop.f32.mrb[0].mxu0
      %4695 = vmatprep.mubr.f32.mxu0 0.0
      %4696 = vmatmul.mubr.f32.gmra.mrb[0].mxu0 %v4598
      %v4697 = vpop.f32.mrb[0].mxu0
      %v4698 = vadd.f32 0.0, %v4697
      %v4699 = vpop.f32.mrb[0].mxu0
      %4700 = vmatprep.mubr.f32.mxu0 0.0
      %4701 = vmatmul.mubr.f32.gmra.mrb[0].mxu0 %v4601
      %v4702 = vpop.f32.mrb[0].mxu0
      %v4703 = vadd.f32 0.0, %v4702
      %v4704 = vpop.f32.mrb[0].mxu0
      %4705 = vmatprep.mubr.f32.mxu0 0.0
      %4706 = vmatmul.mubr.f32.gmra.mrb[0].mxu0 %v4604
      %v4707 = vpop.f32.mrb[0].mxu0
      %v4708 = vadd.f32 0.0, %v4707
      %v4709 = vpop.f32.mrb[0].mxu0
      %4710 = vdwg.mxu0
      %v4711 = vadd.f32 %v4556, %v4673
      %v4712 = vadd.f32 %v4557, %v4678
      %v4713 = vadd.f32 %v4558, %v4683
      %v4714 = vadd.f32 %v4559, %v4688
      %v4715 = vadd.f32 %v4560, %v4693
      %v4716 = vadd.f32 %v4561, %v4698
      %v4717 = vadd.f32 %v4562, %v4703
      %v4718 = vadd.f32 %v4563, %v4708
      %s4719 = scalar_lea.vmem [#allocation4], 2
      %v4720 = vld [vmem:[%s4719] ss:$2 sm:$0xff]
      %s4721 = scalar_lea.vmem [#allocation4], 26
      %v4722 = vld [vmem:[%s4721] ss:$2 sm:$0xff]
      %s4723 = scalar_lea.vmem [#allocation4], 50
      %v4724 = vld [vmem:[%s4723] ss:$2 sm:$0xff]
      %s4725 = scalar_lea.vmem [#allocation4], 74
      %v4726 = vld [vmem:[%s4725] ss:$2 sm:$0xff]
      %s4727 = scalar_lea.vmem [#allocation4], 98
      %v4728 = vld [vmem:[%s4727] ss:$2 sm:$0xff]
      %s4729 = scalar_lea.vmem [#allocation4], 122
      %v4730 = vld [vmem:[%s4729] ss:$2 sm:$0xff]
      %s4731 = scalar_lea.vmem [#allocation4], 146
      %v4732 = vld [vmem:[%s4731] ss:$2 sm:$0xff]
      %s4733 = scalar_lea.vmem [#allocation4], 170
      %v4734 = vld [vmem:[%s4733] ss:$2 sm:$0xff]
      %s4735 = scalar_lea.vmem %s2, 40
      %v4736 = vld [vmem:[%s4735] sm:$0xff]
      %v4738 = vsel %vm3884, %v4720, 0
      %v4741 = vsel %vm3884, %v4722, 0
      %v4744 = vsel %vm3884, %v4724, 0
      %v4747 = vsel %vm3884, %v4726, 0
      %v4750 = vsel %vm3884, %v4728, 0
      %v4753 = vsel %vm3884, %v4730, 0
      %v4756 = vsel %vm3884, %v4732, 0
      %v4759 = vsel %vm3884, %v4734, 0
      %4761 = vmatprep.subr.mxu0 0.0
      %4762 = vmatpush1.msra.mxu0 %v4736
      %4763 = vmatprep.subr.mxu0 0.0
      %4764 = vmatpush1.msra.mxu0 0.0
      %4765 = vmatprep.subr.mxu0 0.0
      %4766 = vmatpush1.msra.mxu0 0.0
      %4767 = vmatprep.subr.mxu0 0.0
      %4768 = vmatpush1.msra.mxu0 0.0
      %4769 = vmatprep.subr.mxu0 0.0
      %4770 = vmatpush1.msra.mxu0 0.0
      %4771 = vmatprep.subr.mxu0 0.0
      %4772 = vmatpush1.msra.mxu0 0.0
      %4773 = vmatprep.subr.mxu0 0.0
      %4774 = vmatpush1.msra.mxu0 0.0
      %4775 = vmatprep.subr.mxu0 0.0
      %4776 = vmatpush1.msra.mxu0 0.0
      %4777 = vmatprep.subr.mxu0 0.0
      %4778 = vmatpush1.msra.mxu0 0.0
      %4779 = vmatprep.subr.mxu0 0.0
      %4780 = vmatpush1.msra.mxu0 0.0
      %4781 = vmatprep.subr.mxu0 0.0
      %4782 = vmatpush1.msra.mxu0 0.0
      %4783 = vmatprep.subr.mxu0 0.0
      %4784 = vmatpush1.msra.mxu0 0.0
      %4785 = vmatprep.subr.mxu0 0.0
      %4786 = vmatpush1.msra.mxu0 0.0
      %4787 = vmatprep.subr.mxu0 0.0
      %4788 = vmatpush1.msra.mxu0 0.0
      %4789 = vmatprep.subr.mxu0 0.0
      %4790 = vmatpush1.msra.mxu0 0.0
      %4791 = vmatprep.subr.mxu0 0.0
      %4792 = vmatpush1.msra.mxu0 0.0
      %4793 = vmatprep.subr.mxu0 0.0
      %4794 = vmatpush1.msra.mxu0 0.0
      %4795 = vmatprep.subr.mxu0 0.0
      %4796 = vmatpush1.msra.mxu0 0.0
      %4797 = vmatprep.subr.mxu0 0.0
      %4798 = vmatpush1.msra.mxu0 0.0
      %4799 = vmatprep.subr.mxu0 0.0
      %4800 = vmatpush1.msra.mxu0 0.0
      %4801 = vmatprep.subr.mxu0 0.0
      %4802 = vmatpush1.msra.mxu0 0.0
      %4803 = vmatprep.subr.mxu0 0.0
      %4804 = vmatpush1.msra.mxu0 0.0
      %4805 = vmatprep.subr.mxu0 0.0
      %4806 = vmatpush1.msra.mxu0 0.0
      %4807 = vmatprep.subr.mxu0 0.0
      %4808 = vmatpush1.msra.mxu0 0.0
      %4809 = vmatprep.subr.mxu0 0.0
      %4810 = vmatpush1.msra.mxu0 0.0
      %4811 = vmatprep.subr.mxu0 0.0
      %4812 = vmatpush1.msra.mxu0 0.0
      %4813 = vmatprep.subr.mxu0 0.0
      %4814 = vmatpush1.msra.mxu0 0.0
      %4815 = vmatprep.subr.mxu0 0.0
      %4816 = vmatpush1.msra.mxu0 0.0
      %4817 = vmatprep.subr.mxu0 0.0
      %4818 = vmatpush1.msra.mxu0 0.0
      %4819 = vmatprep.subr.mxu0 0.0
      %4820 = vmatpush1.msra.mxu0 0.0
      %4821 = vmatprep.subr.mxu0 0.0
      %4822 = vmatpush1.msra.mxu0 0.0
      %4823 = vmatprep.subr.mxu0 0.0
      %4824 = vmatpush1.msra.mxu0 0.0
      %4825 = vmatprep.mubr.f32.mxu0 0.0
      %4826 = vmatmul.mubr.f32.gmra.mrb[0].mxu0 %v4738
      %v4827 = vpop.f32.mrb[0].mxu0
      %v4828 = vadd.f32 0.0, %v4827
      %v4829 = vpop.f32.mrb[0].mxu0
      %4830 = vmatprep.mubr.f32.mxu0 0.0
      %4831 = vmatmul.mubr.f32.gmra.mrb[0].mxu0 %v4741
      %v4832 = vpop.f32.mrb[0].mxu0
      %v4833 = vadd.f32 0.0, %v4832
      %v4834 = vpop.f32.mrb[0].mxu0
      %4835 = vmatprep.mubr.f32.mxu0 0.0
      %4836 = vmatmul.mubr.f32.gmra.mrb[0].mxu0 %v4744
      %v4837 = vpop.f32.mrb[0].mxu0
      %v4838 = vadd.f32 0.0, %v4837
      %v4839 = vpop.f32.mrb[0].mxu0
      %4840 = vmatprep.mubr.f32.mxu0 0.0
      %4841 = vmatmul.mubr.f32.gmra.mrb[0].mxu0 %v4747
      %v4842 = vpop.f32.mrb[0].mxu0
      %v4843 = vadd.f32 0.0, %v4842
      %v4844 = vpop.f32.mrb[0].mxu0
      %4845 = vmatprep.mubr.f32.mxu0 0.0
      %4846 = vmatmul.mubr.f32.gmra.mrb[0].mxu0 %v4750
      %v4847 = vpop.f32.mrb[0].mxu0
      %v4848 = vadd.f32 0.0, %v4847
      %v4849 = vpop.f32.mrb[0].mxu0
      %4850 = vmatprep.mubr.f32.mxu0 0.0
      %4851 = vmatmul.mubr.f32.gmra.mrb[0].mxu0 %v4753
      %v4852 = vpop.f32.mrb[0].mxu0
      %v4853 = vadd.f32 0.0, %v4852
      %v4854 = vpop.f32.mrb[0].mxu0
      %4855 = vmatprep.mubr.f32.mxu0 0.0
      %4856 = vmatmul.mubr.f32.gmra.mrb[0].mxu0 %v4756
      %v4857 = vpop.f32.mrb[0].mxu0
      %v4858 = vadd.f32 0.0, %v4857
      %v4859 = vpop.f32.mrb[0].mxu0
      %4860 = vmatprep.mubr.f32.mxu0 0.0
      %4861 = vmatmul.mubr.f32.gmra.mrb[0].mxu0 %v4759
      %v4862 = vpop.f32.mrb[0].mxu0
      %v4863 = vadd.f32 0.0, %v4862
      %v4864 = vpop.f32.mrb[0].mxu0
      %4865 = vdwg.mxu0
      %v4866 = vadd.f32 %v4711, %v4828
      %v4867 = vadd.f32 %v4712, %v4833
      %v4868 = vadd.f32 %v4713, %v4838
      %v4869 = vadd.f32 %v4714, %v4843
      %v4870 = vadd.f32 %v4715, %v4848
      %v4871 = vadd.f32 %v4716, %v4853
      %v4872 = vadd.f32 %v4717, %v4858
      %v4873 = vadd.f32 %v4718, %v4863
      %v4874 = vld [vmem:[%s3946] ss:$2 sm:$0xff]
      %s4875 = scalar_lea.vmem %s3946, 24 [#allocation3]
      %v4876 = vld [vmem:[%s4875] ss:$2 sm:$0xff]
      %s4877 = scalar_lea.vmem %s3946, 48 [#allocation3]
      %v4878 = vld [vmem:[%s4877] ss:$2 sm:$0xff]
      %s4879 = scalar_lea.vmem %s3946, 72 [#allocation3]
      %v4880 = vld [vmem:[%s4879] ss:$2 sm:$0xff]
      %s4881 = scalar_lea.vmem %s3946, 96 [#allocation3]
      %v4882 = vld [vmem:[%s4881] ss:$2 sm:$0xff]
      %s4883 = scalar_lea.vmem %s3946, 120 [#allocation3]
      %v4884 = vld [vmem:[%s4883] ss:$2 sm:$0xff]
      %s4885 = scalar_lea.vmem %s3946, 144 [#allocation3]
      %v4886 = vld [vmem:[%s4885] ss:$2 sm:$0xff]
      %s4887 = scalar_lea.vmem %s3946, 168 [#allocation3]
      %v4888 = vld [vmem:[%s4887] ss:$2 sm:$0xff]
      %s4889 = scalar_lea.vmem %s2, 48
      %v4890 = vld [vmem:[%s4889] sm:$0xff]
      %v4892 = vsel %vm3884, %v4874, 0
      %v4895 = vsel %vm3884, %v4876, 0
      %v4898 = vsel %vm3884, %v4878, 0
      %v4901 = vsel %vm3884, %v4880, 0
      %v4904 = vsel %vm3884, %v4882, 0
      %v4907 = vsel %vm3884, %v4884, 0
      %v4910 = vsel %vm3884, %v4886, 0
      %v4913 = vsel %vm3884, %v4888, 0
      %4915 = vmatprep.subr.mxu0 0.0
      %4916 = vmatpush1.msra.mxu0 %v4890
      %4917 = vmatprep.subr.mxu0 0.0
      %4918 = vmatpush1.msra.mxu0 0.0
      %4919 = vmatprep.subr.mxu0 0.0
      %4920 = vmatpush1.msra.mxu0 0.0
      %4921 = vmatprep.subr.mxu0 0.0
      %4922 = vmatpush1.msra.mxu0 0.0
      %4923 = vmatprep.subr.mxu0 0.0
      %4924 = vmatpush1.msra.mxu0 0.0
      %4925 = vmatprep.subr.mxu0 0.0
      %4926 = vmatpush1.msra.mxu0 0.0
      %4927 = vmatprep.subr.mxu0 0.0
      %4928 = vmatpush1.msra.mxu0 0.0
      %4929 = vmatprep.subr.mxu0 0.0
      %4930 = vmatpush1.msra.mxu0 0.0
      %4931 = vmatprep.subr.mxu0 0.0
      %4932 = vmatpush1.msra.mxu0 0.0
      %4933 = vmatprep.subr.mxu0 0.0
      %4934 = vmatpush1.msra.mxu0 0.0
      %4935 = vmatprep.subr.mxu0 0.0
      %4936 = vmatpush1.msra.mxu0 0.0
      %4937 = vmatprep.subr.mxu0 0.0
      %4938 = vmatpush1.msra.mxu0 0.0
      %4939 = vmatprep.subr.mxu0 0.0
      %4940 = vmatpush1.msra.mxu0 0.0
      %4941 = vmatprep.subr.mxu0 0.0
      %4942 = vmatpush1.msra.mxu0 0.0
      %4943 = vmatprep.subr.mxu0 0.0
      %4944 = vmatpush1.msra.mxu0 0.0
      %4945 = vmatprep.subr.mxu0 0.0
      %4946 = vmatpush1.msra.mxu0 0.0
      %4947 = vmatprep.subr.mxu0 0.0
      %4948 = vmatpush1.msra.mxu0 0.0
      %4949 = vmatprep.subr.mxu0 0.0
      %4950 = vmatpush1.msra.mxu0 0.0
      %4951 = vmatprep.subr.mxu0 0.0
      %4952 = vmatpush1.msra.mxu0 0.0
      %4953 = vmatprep.subr.mxu0 0.0
      %4954 = vmatpush1.msra.mxu0 0.0
      %4955 = vmatprep.subr.mxu0 0.0
      %4956 = vmatpush1.msra.mxu0 0.0
      %4957 = vmatprep.subr.mxu0 0.0
      %4958 = vmatpush1.msra.mxu0 0.0
      %4959 = vmatprep.subr.mxu0 0.0
      %4960 = vmatpush1.msra.mxu0 0.0
      %4961 = vmatprep.subr.mxu0 0.0
      %4962 = vmatpush1.msra.mxu0 0.0
      %4963 = vmatprep.subr.mxu0 0.0
      %4964 = vmatpush1.msra.mxu0 0.0
      %4965 = vmatprep.subr.mxu0 0.0
      %4966 = vmatpush1.msra.mxu0 0.0
      %4967 = vmatprep.subr.mxu0 0.0
      %4968 = vmatpush1.msra.mxu0 0.0
      %4969 = vmatprep.subr.mxu0 0.0
      %4970 = vmatpush1.msra.mxu0 0.0
      %4971 = vmatprep.subr.mxu0 0.0
      %4972 = vmatpush1.msra.mxu0 0.0
      %4973 = vmatprep.subr.mxu0 0.0
      %4974 = vmatpush1.msra.mxu0 0.0
      %4975 = vmatprep.subr.mxu0 0.0
      %4976 = vmatpush1.msra.mxu0 0.0
      %4977 = vmatprep.subr.mxu0 0.0
      %4978 = vmatpush1.msra.mxu0 0.0
      %4979 = vmatprep.mubr.f32.mxu0 0.0
      %4980 = vmatmul.mubr.f32.gmra.mrb[0].mxu0 %v4892
      %v4981 = vpop.f32.mrb[0].mxu0
      %v4982 = vadd.f32 0.0, %v4981
      %v4983 = vpop.f32.mrb[0].mxu0
      %4984 = vmatprep.mubr.f32.mxu0 0.0
      %4985 = vmatmul.mubr.f32.gmra.mrb[0].mxu0 %v4895
      %v4986 = vpop.f32.mrb[0].mxu0
      %v4987 = vadd.f32 0.0, %v4986
      %v4988 = vpop.f32.mrb[0].mxu0
      %4989 = vmatprep.mubr.f32.mxu0 0.0
      %4990 = vmatmul.mubr.f32.gmra.mrb[0].mxu0 %v4898
      %v4991 = vpop.f32.mrb[0].mxu0
      %v4992 = vadd.f32 0.0, %v4991
      %v4993 = vpop.f32.mrb[0].mxu0
      %4994 = vmatprep.mubr.f32.mxu0 0.0
      %4995 = vmatmul.mubr.f32.gmra.mrb[0].mxu0 %v4901
      %v4996 = vpop.f32.mrb[0].mxu0
      %v4997 = vadd.f32 0.0, %v4996
      %v4998 = vpop.f32.mrb[0].mxu0
      %4999 = vmatprep.mubr.f32.mxu0 0.0
      %5000 = vmatmul.mubr.f32.gmra.mrb[0].mxu0 %v4904
      %v5001 = vpop.f32.mrb[0].mxu0
      %v5002 = vadd.f32 0.0, %v5001
      %v5003 = vpop.f32.mrb[0].mxu0
      %5004 = vmatprep.mubr.f32.mxu0 0.0
      %5005 = vmatmul.mubr.f32.gmra.mrb[0].mxu0 %v4907
      %v5006 = vpop.f32.mrb[0].mxu0
      %v5007 = vadd.f32 0.0, %v5006
      %v5008 = vpop.f32.mrb[0].mxu0
      %5009 = vmatprep.mubr.f32.mxu0 0.0
      %5010 = vmatmul.mubr.f32.gmra.mrb[0].mxu0 %v4910
      %v5011 = vpop.f32.mrb[0].mxu0
      %v5012 = vadd.f32 0.0, %v5011
      %v5013 = vpop.f32.mrb[0].mxu0
      %5014 = vmatprep.mubr.f32.mxu0 0.0
      %5015 = vmatmul.mubr.f32.gmra.mrb[0].mxu0 %v4913
      %v5016 = vpop.f32.mrb[0].mxu0
      %v5017 = vadd.f32 0.0, %v5016
      %v5018 = vpop.f32.mrb[0].mxu0
      %5019 = vdwg.mxu0
      %v5020 = vadd.f32 %v4866, %v4982
      %v5021 = vadd.f32 %v4867, %v4987
      %v5022 = vadd.f32 %v4868, %v4992
      %v5023 = vadd.f32 %v4869, %v4997
      %v5024 = vadd.f32 %v4870, %v5002
      %v5025 = vadd.f32 %v4871, %v5007
      %v5026 = vadd.f32 %v4872, %v5012
      %v5027 = vadd.f32 %v4873, %v5017
      %s5028 = scalar_lea.vmem %s3946, 1 [#allocation3]
      %v5029 = vld [vmem:[%s5028] ss:$2 sm:$0xff]
      %s5030 = scalar_lea.vmem %s3946, 25 [#allocation3]
      %v5031 = vld [vmem:[%s5030] ss:$2 sm:$0xff]
      %s5032 = scalar_lea.vmem %s3946, 49 [#allocation3]
      %v5033 = vld [vmem:[%s5032] ss:$2 sm:$0xff]
      %s5034 = scalar_lea.vmem %s3946, 73 [#allocation3]
      %v5035 = vld [vmem:[%s5034] ss:$2 sm:$0xff]
      %s5036 = scalar_lea.vmem %s3946, 97 [#allocation3]
      %v5037 = vld [vmem:[%s5036] ss:$2 sm:$0xff]
      %s5038 = scalar_lea.vmem %s3946, 121 [#allocation3]
      %v5039 = vld [vmem:[%s5038] ss:$2 sm:$0xff]
      %s5040 = scalar_lea.vmem %s3946, 145 [#allocation3]
      %v5041 = vld [vmem:[%s5040] ss:$2 sm:$0xff]
      %s5042 = scalar_lea.vmem %s3946, 169 [#allocation3]
      %v5043 = vld [vmem:[%s5042] ss:$2 sm:$0xff]
      %s5044 = scalar_lea.vmem %s2, 56
      %v5045 = vld [vmem:[%s5044] sm:$0xff]
      %v5047 = vsel %vm3884, %v5029, 0
      %v5050 = vsel %vm3884, %v5031, 0
      %v5053 = vsel %vm3884, %v5033, 0
      %v5056 = vsel %vm3884, %v5035, 0
      %v5059 = vsel %vm3884, %v5037, 0
      %v5062 = vsel %vm3884, %v5039, 0
      %v5065 = vsel %vm3884, %v5041, 0
      %v5068 = vsel %vm3884, %v5043, 0
      %5070 = vmatprep.subr.mxu0 0.0
      %5071 = vmatpush1.msra.mxu0 %v5045
      %5072 = vmatprep.subr.mxu0 0.0
      %5073 = vmatpush1.msra.mxu0 0.0
      %5074 = vmatprep.subr.mxu0 0.0
      %5075 = vmatpush1.msra.mxu0 0.0
      %5076 = vmatprep.subr.mxu0 0.0
      %5077 = vmatpush1.msra.mxu0 0.0
      %5078 = vmatprep.subr.mxu0 0.0
      %5079 = vmatpush1.msra.mxu0 0.0
      %5080 = vmatprep.subr.mxu0 0.0
      %5081 = vmatpush1.msra.mxu0 0.0
      %5082 = vmatprep.subr.mxu0 0.0
      %5083 = vmatpush1.msra.mxu0 0.0
      %5084 = vmatprep.subr.mxu0 0.0
      %5085 = vmatpush1.msra.mxu0 0.0
      %5086 = vmatprep.subr.mxu0 0.0
      %5087 = vmatpush1.msra.mxu0 0.0
      %5088 = vmatprep.subr.mxu0 0.0
      %5089 = vmatpush1.msra.mxu0 0.0
      %5090 = vmatprep.subr.mxu0 0.0
      %5091 = vmatpush1.msra.mxu0 0.0
      %5092 = vmatprep.subr.mxu0 0.0
      %5093 = vmatpush1.msra.mxu0 0.0
      %5094 = vmatprep.subr.mxu0 0.0
      %5095 = vmatpush1.msra.mxu0 0.0
      %5096 = vmatprep.subr.mxu0 0.0
      %5097 = vmatpush1.msra.mxu0 0.0
      %5098 = vmatprep.subr.mxu0 0.0
      %5099 = vmatpush1.msra.mxu0 0.0
      %5100 = vmatprep.subr.mxu0 0.0
      %5101 = vmatpush1.msra.mxu0 0.0
      %5102 = vmatprep.subr.mxu0 0.0
      %5103 = vmatpush1.msra.mxu0 0.0
      %5104 = vmatprep.subr.mxu0 0.0
      %5105 = vmatpush1.msra.mxu0 0.0
      %5106 = vmatprep.subr.mxu0 0.0
      %5107 = vmatpush1.msra.mxu0 0.0
      %5108 = vmatprep.subr.mxu0 0.0
      %5109 = vmatpush1.msra.mxu0 0.0
      %5110 = vmatprep.subr.mxu0 0.0
      %5111 = vmatpush1.msra.mxu0 0.0
      %5112 = vmatprep.subr.mxu0 0.0
      %5113 = vmatpush1.msra.mxu0 0.0
      %5114 = vmatprep.subr.mxu0 0.0
      %5115 = vmatpush1.msra.mxu0 0.0
      %5116 = vmatprep.subr.mxu0 0.0
      %5117 = vmatpush1.msra.mxu0 0.0
      %5118 = vmatprep.subr.mxu0 0.0
      %5119 = vmatpush1.msra.mxu0 0.0
      %5120 = vmatprep.subr.mxu0 0.0
      %5121 = vmatpush1.msra.mxu0 0.0
      %5122 = vmatprep.subr.mxu0 0.0
      %5123 = vmatpush1.msra.mxu0 0.0
      %5124 = vmatprep.subr.mxu0 0.0
      %5125 = vmatpush1.msra.mxu0 0.0
      %5126 = vmatprep.subr.mxu0 0.0
      %5127 = vmatpush1.msra.mxu0 0.0
      %5128 = vmatprep.subr.mxu0 0.0
      %5129 = vmatpush1.msra.mxu0 0.0
      %5130 = vmatprep.subr.mxu0 0.0
      %5131 = vmatpush1.msra.mxu0 0.0
      %5132 = vmatprep.subr.mxu0 0.0
      %5133 = vmatpush1.msra.mxu0 0.0
      %5134 = vmatprep.mubr.f32.mxu0 0.0
      %5135 = vmatmul.mubr.f32.gmra.mrb[0].mxu0 %v5047
      %v5136 = vpop.f32.mrb[0].mxu0
      %v5137 = vadd.f32 0.0, %v5136
      %v5138 = vpop.f32.mrb[0].mxu0
      %5139 = vmatprep.mubr.f32.mxu0 0.0
      %5140 = vmatmul.mubr.f32.gmra.mrb[0].mxu0 %v5050
      %v5141 = vpop.f32.mrb[0].mxu0
      %v5142 = vadd.f32 0.0, %v5141
      %v5143 = vpop.f32.mrb[0].mxu0
      %5144 = vmatprep.mubr.f32.mxu0 0.0
      %5145 = vmatmul.mubr.f32.gmra.mrb[0].mxu0 %v5053
      %v5146 = vpop.f32.mrb[0].mxu0
      %v5147 = vadd.f32 0.0, %v5146
      %v5148 = vpop.f32.mrb[0].mxu0
      %5149 = vmatprep.mubr.f32.mxu0 0.0
      %5150 = vmatmul.mubr.f32.gmra.mrb[0].mxu0 %v5056
      %v5151 = vpop.f32.mrb[0].mxu0
      %v5152 = vadd.f32 0.0, %v5151
      %v5153 = vpop.f32.mrb[0].mxu0
      %5154 = vmatprep.mubr.f32.mxu0 0.0
      %5155 = vmatmul.mubr.f32.gmra.mrb[0].mxu0 %v5059
      %v5156 = vpop.f32.mrb[0].mxu0
      %v5157 = vadd.f32 0.0, %v5156
      %v5158 = vpop.f32.mrb[0].mxu0
      %5159 = vmatprep.mubr.f32.mxu0 0.0
      %5160 = vmatmul.mubr.f32.gmra.mrb[0].mxu0 %v5062
      %v5161 = vpop.f32.mrb[0].mxu0
      %v5162 = vadd.f32 0.0, %v5161
      %v5163 = vpop.f32.mrb[0].mxu0
      %5164 = vmatprep.mubr.f32.mxu0 0.0
      %5165 = vmatmul.mubr.f32.gmra.mrb[0].mxu0 %v5065
      %v5166 = vpop.f32.mrb[0].mxu0
      %v5167 = vadd.f32 0.0, %v5166
      %v5168 = vpop.f32.mrb[0].mxu0
      %5169 = vmatprep.mubr.f32.mxu0 0.0
      %5170 = vmatmul.mubr.f32.gmra.mrb[0].mxu0 %v5068
      %v5171 = vpop.f32.mrb[0].mxu0
      %v5172 = vadd.f32 0.0, %v5171
      %v5173 = vpop.f32.mrb[0].mxu0
      %5174 = vdwg.mxu0
      %v5175 = vadd.f32 %v5020, %v5137
      %v5176 = vadd.f32 %v5021, %v5142
      %v5177 = vadd.f32 %v5022, %v5147
      %v5178 = vadd.f32 %v5023, %v5152
      %v5179 = vadd.f32 %v5024, %v5157
      %v5180 = vadd.f32 %v5025, %v5162
      %v5181 = vadd.f32 %v5026, %v5167
      %v5182 = vadd.f32 %v5027, %v5172
      %s5183 = scalar_lea.vmem %s3946, 2 [#allocation3]
      %v5184 = vld [vmem:[%s5183] ss:$2 sm:$0xff]
      %s5185 = scalar_lea.vmem %s3946, 26 [#allocation3]
      %v5186 = vld [vmem:[%s5185] ss:$2 sm:$0xff]
      %s5187 = scalar_lea.vmem %s3946, 50 [#allocation3]
      %v5188 = vld [vmem:[%s5187] ss:$2 sm:$0xff]
      %s5189 = scalar_lea.vmem %s3946, 74 [#allocation3]
      %v5190 = vld [vmem:[%s5189] ss:$2 sm:$0xff]
      %s5191 = scalar_lea.vmem %s3946, 98 [#allocation3]
      %v5192 = vld [vmem:[%s5191] ss:$2 sm:$0xff]
      %s5193 = scalar_lea.vmem %s3946, 122 [#allocation3]
      %v5194 = vld [vmem:[%s5193] ss:$2 sm:$0xff]
      %s5195 = scalar_lea.vmem %s3946, 146 [#allocation3]
      %v5196 = vld [vmem:[%s5195] ss:$2 sm:$0xff]
      %s5197 = scalar_lea.vmem %s3946, 170 [#allocation3]
      %v5198 = vld [vmem:[%s5197] ss:$2 sm:$0xff]
      %s5199 = scalar_lea.vmem %s2, 64
      %v5200 = vld [vmem:[%s5199] sm:$0xff]
      %v5202 = vsel %vm3884, %v5184, 0
      %v5205 = vsel %vm3884, %v5186, 0
      %v5208 = vsel %vm3884, %v5188, 0
      %v5211 = vsel %vm3884, %v5190, 0
      %v5214 = vsel %vm3884, %v5192, 0
      %v5217 = vsel %vm3884, %v5194, 0
      %v5220 = vsel %vm3884, %v5196, 0
      %v5223 = vsel %vm3884, %v5198, 0
      %5225 = vmatprep.subr.mxu0 0.0
      %5226 = vmatpush1.msra.mxu0 %v5200
      %5227 = vmatprep.subr.mxu0 0.0
      %5228 = vmatpush1.msra.mxu0 0.0
      %5229 = vmatprep.subr.mxu0 0.0
      %5230 = vmatpush1.msra.mxu0 0.0
      %5231 = vmatprep.subr.mxu0 0.0
      %5232 = vmatpush1.msra.mxu0 0.0
      %5233 = vmatprep.subr.mxu0 0.0
      %5234 = vmatpush1.msra.mxu0 0.0
      %5235 = vmatprep.subr.mxu0 0.0
      %5236 = vmatpush1.msra.mxu0 0.0
      %5237 = vmatprep.subr.mxu0 0.0
      %5238 = vmatpush1.msra.mxu0 0.0
      %5239 = vmatprep.subr.mxu0 0.0
      %5240 = vmatpush1.msra.mxu0 0.0
      %5241 = vmatprep.subr.mxu0 0.0
      %5242 = vmatpush1.msra.mxu0 0.0
      %5243 = vmatprep.subr.mxu0 0.0
      %5244 = vmatpush1.msra.mxu0 0.0
      %5245 = vmatprep.subr.mxu0 0.0
      %5246 = vmatpush1.msra.mxu0 0.0
      %5247 = vmatprep.subr.mxu0 0.0
      %5248 = vmatpush1.msra.mxu0 0.0
      %5249 = vmatprep.subr.mxu0 0.0
      %5250 = vmatpush1.msra.mxu0 0.0
      %5251 = vmatprep.subr.mxu0 0.0
      %5252 = vmatpush1.msra.mxu0 0.0
      %5253 = vmatprep.subr.mxu0 0.0
      %5254 = vmatpush1.msra.mxu0 0.0
      %5255 = vmatprep.subr.mxu0 0.0
      %5256 = vmatpush1.msra.mxu0 0.0
      %5257 = vmatprep.subr.mxu0 0.0
      %5258 = vmatpush1.msra.mxu0 0.0
      %5259 = vmatprep.subr.mxu0 0.0
      %5260 = vmatpush1.msra.mxu0 0.0
      %5261 = vmatprep.subr.mxu0 0.0
      %5262 = vmatpush1.msra.mxu0 0.0
      %5263 = vmatprep.subr.mxu0 0.0
      %5264 = vmatpush1.msra.mxu0 0.0
      %5265 = vmatprep.subr.mxu0 0.0
      %5266 = vmatpush1.msra.mxu0 0.0
      %5267 = vmatprep.subr.mxu0 0.0
      %5268 = vmatpush1.msra.mxu0 0.0
      %5269 = vmatprep.subr.mxu0 0.0
      %5270 = vmatpush1.msra.mxu0 0.0
      %5271 = vmatprep.subr.mxu0 0.0
      %5272 = vmatpush1.msra.mxu0 0.0
      %5273 = vmatprep.subr.mxu0 0.0
      %5274 = vmatpush1.msra.mxu0 0.0
      %5275 = vmatprep.subr.mxu0 0.0
      %5276 = vmatpush1.msra.mxu0 0.0
      %5277 = vmatprep.subr.mxu0 0.0
      %5278 = vmatpush1.msra.mxu0 0.0
      %5279 = vmatprep.subr.mxu0 0.0
      %5280 = vmatpush1.msra.mxu0 0.0
      %5281 = vmatprep.subr.mxu0 0.0
      %5282 = vmatpush1.msra.mxu0 0.0
      %5283 = vmatprep.subr.mxu0 0.0
      %5284 = vmatpush1.msra.mxu0 0.0
      %5285 = vmatprep.subr.mxu0 0.0
      %5286 = vmatpush1.msra.mxu0 0.0
      %5287 = vmatprep.subr.mxu0 0.0
      %5288 = vmatpush1.msra.mxu0 0.0
      %5289 = vmatprep.mubr.f32.mxu0 0.0
      %5290 = vmatmul.mubr.f32.gmra.mrb[0].mxu0 %v5202
      %v5291 = vpop.f32.mrb[0].mxu0
      %v5292 = vadd.f32 0.0, %v5291
      %v5293 = vpop.f32.mrb[0].mxu0
      %5294 = vmatprep.mubr.f32.mxu0 0.0
      %5295 = vmatmul.mubr.f32.gmra.mrb[0].mxu0 %v5205
      %v5296 = vpop.f32.mrb[0].mxu0
      %v5297 = vadd.f32 0.0, %v5296
      %v5298 = vpop.f32.mrb[0].mxu0
      %5299 = vmatprep.mubr.f32.mxu0 0.0
      %5300 = vmatmul.mubr.f32.gmra.mrb[0].mxu0 %v5208
      %v5301 = vpop.f32.mrb[0].mxu0
      %v5302 = vadd.f32 0.0, %v5301
      %v5303 = vpop.f32.mrb[0].mxu0
      %5304 = vmatprep.mubr.f32.mxu0 0.0
      %5305 = vmatmul.mubr.f32.gmra.mrb[0].mxu0 %v5211
      %v5306 = vpop.f32.mrb[0].mxu0
      %v5307 = vadd.f32 0.0, %v5306
      %v5308 = vpop.f32.mrb[0].mxu0
      %5309 = vmatprep.mubr.f32.mxu0 0.0
      %5310 = vmatmul.mubr.f32.gmra.mrb[0].mxu0 %v5214
      %v5311 = vpop.f32.mrb[0].mxu0
      %v5312 = vadd.f32 0.0, %v5311
      %v5313 = vpop.f32.mrb[0].mxu0
      %5314 = vmatprep.mubr.f32.mxu0 0.0
      %5315 = vmatmul.mubr.f32.gmra.mrb[0].mxu0 %v5217
      %v5316 = vpop.f32.mrb[0].mxu0
      %v5317 = vadd.f32 0.0, %v5316
      %v5318 = vpop.f32.mrb[0].mxu0
      %5319 = vmatprep.mubr.f32.mxu0 0.0
      %5320 = vmatmul.mubr.f32.gmra.mrb[0].mxu0 %v5220
      %v5321 = vpop.f32.mrb[0].mxu0
      %v5322 = vadd.f32 0.0, %v5321
      %v5323 = vpop.f32.mrb[0].mxu0
      %5324 = vmatprep.mubr.f32.mxu0 0.0
      %5325 = vmatmul.mubr.f32.gmra.mrb[0].mxu0 %v5223
      %v5326 = vpop.f32.mrb[0].mxu0
      %v5327 = vadd.f32 0.0, %v5326
      %v5328 = vpop.f32.mrb[0].mxu0
      %5329 = vdwg.mxu0
      %v5330 = vadd.f32 %v5175, %v5292
      %v5331 = vadd.f32 %v5176, %v5297
      %v5332 = vadd.f32 %v5177, %v5302
      %v5333 = vadd.f32 %v5178, %v5307
      %v5334 = vadd.f32 %v5179, %v5312
      %v5335 = vadd.f32 %v5180, %v5317
      %v5336 = vadd.f32 %v5181, %v5322
      %v5337 = vadd.f32 %v5182, %v5327
      %v5338 = vld [vmem:[%s4] sm:$0x1]
      %v5340 = vlaneseq
      %v5341 = vshrl.u32 %v5340, 7
      %v5342 = vsub.s32 0, %v5341
      %v5343 = vrot.slane %v5338, %v5342
      %v5345 = vadd.f32 %v5330, %v5343
      %v5346 = vadd.f32 %v5331, %v5343
      %v5347 = vadd.f32 %v5332, %v5343
      %v5348 = vadd.f32 %v5333, %v5343
      %v5349 = vadd.f32 %v5334, %v5343
      %v5350 = vadd.f32 %v5335, %v5343
      %v5351 = vadd.f32 %v5336, %v5343
      %v5352 = vadd.f32 %v5337, %v5343
      %v5361 = vrot.slane %v5346, 7
      %vm5362 = vcmask 1041409
      %v5363 = vsel %vm5362, %v5361, %v5345
      %v5364 = vrot.slane %v5347, 6
      %vm5365 = vcmask 1042434
      %v5366 = vsel %vm5365, %v5364, %v5363
      %v5367 = vrot.slane %v5348, 5
      %vm5368 = vcmask 1043459
      %v5369 = vsel %vm5368, %v5367, %v5366
      %v5370 = vrot.slane %v5349, 4
      %vm5371 = vcmask 1044484
      %v5372 = vsel %vm5371, %v5370, %v5369
      %v5373 = vrot.slane %v5350, 3
      %vm5374 = vcmask 1045509
      %v5375 = vsel %vm5374, %v5373, %v5372
      %v5376 = vrot.slane %v5351, 2
      %vm5377 = vcmask 1046534
      %v5378 = vsel %vm5377, %v5376, %v5375
      %v5379 = vrot.slane %v5352, 1
      %vm5380 = vcmask 1047559
      %v5381 = vsel %vm5380, %v5379, %v5378
      %v5383 = vrot.slane %v5345, 1
      %v5384 = vsel %vm5362, %v5346, %v5383
      %v5385 = vrot.slane %v5347, 7
      %v5386 = vsel %vm5365, %v5385, %v5384
      %v5387 = vrot.slane %v5348, 6
      %v5388 = vsel %vm5368, %v5387, %v5386
      %v5389 = vrot.slane %v5349, 5
      %v5390 = vsel %vm5371, %v5389, %v5388
      %v5391 = vrot.slane %v5350, 4
      %v5392 = vsel %vm5374, %v5391, %v5390
      %v5393 = vrot.slane %v5351, 3
      %v5394 = vsel %vm5377, %v5393, %v5392
      %v5395 = vrot.slane %v5352, 2
      %v5396 = vsel %vm5380, %v5395, %v5394
      %5397 = vrot.lane.b32.xlu0 %v5396, 8
      %v5398 = vpop.permute.xlu0 %5397
      %v5400 = vrot.slane %v5345, 2
      %v5401 = vrot.slane %v5346, 1
      %v5402 = vsel %vm5362, %v5401, %v5400
      %v5403 = vsel %vm5365, %v5347, %v5402
      %v5404 = vrot.slane %v5348, 7
      %v5405 = vsel %vm5368, %v5404, %v5403
      %v5406 = vrot.slane %v5349, 6
      %v5407 = vsel %vm5371, %v5406, %v5405
      %v5408 = vrot.slane %v5350, 5
      %v5409 = vsel %vm5374, %v5408, %v5407
      %v5410 = vrot.slane %v5351, 4
      %v5411 = vsel %vm5377, %v5410, %v5409
      %v5412 = vrot.slane %v5352, 3
      %v5413 = vsel %vm5380, %v5412, %v5411
      %5414 = vrot.lane.b32.xlu0 %v5413, 16
      %v5415 = vpop.permute.xlu0 %5414
      %v5417 = vrot.slane %v5345, 3
      %v5418 = vrot.slane %v5346, 2
      %v5419 = vsel %vm5362, %v5418, %v5417
      %v5420 = vrot.slane %v5347, 1
      %v5421 = vsel %vm5365, %v5420, %v5419
      %v5422 = vsel %vm5368, %v5348, %v5421
      %v5423 = vrot.slane %v5349, 7
      %v5424 = vsel %vm5371, %v5423, %v5422
      %v5425 = vrot.slane %v5350, 6
      %v5426 = vsel %vm5374, %v5425, %v5424
      %v5427 = vrot.slane %v5351, 5
      %v5428 = vsel %vm5377, %v5427, %v5426
      %v5429 = vrot.slane %v5352, 4
      %v5430 = vsel %vm5380, %v5429, %v5428
      %5431 = vrot.lane.b32.xlu0 %v5430, 24
      %v5432 = vpop.permute.xlu0 %5431
      %v5434 = vrot.slane %v5345, 4
      %v5435 = vrot.slane %v5346, 3
      %v5436 = vsel %vm5362, %v5435, %v5434
      %v5437 = vrot.slane %v5347, 2
      %v5438 = vsel %vm5365, %v5437, %v5436
      %v5439 = vrot.slane %v5348, 1
      %v5440 = vsel %vm5368, %v5439, %v5438
      %v5441 = vsel %vm5371, %v5349, %v5440
      %v5442 = vrot.slane %v5350, 7
      %v5443 = vsel %vm5374, %v5442, %v5441
      %v5444 = vrot.slane %v5351, 6
      %v5445 = vsel %vm5377, %v5444, %v5443
      %v5446 = vrot.slane %v5352, 5
      %v5447 = vsel %vm5380, %v5446, %v5445
      %5448 = vrot.lane.b32.xlu0 %v5447, 32
      %v5449 = vpop.permute.xlu0 %5448
      %v5451 = vrot.slane %v5345, 5
      %v5452 = vrot.slane %v5346, 4
      %v5453 = vsel %vm5362, %v5452, %v5451
      %v5454 = vrot.slane %v5347, 3
      %v5455 = vsel %vm5365, %v5454, %v5453
      %v5456 = vrot.slane %v5348, 2
      %v5457 = vsel %vm5368, %v5456, %v5455
      %v5458 = vrot.slane %v5349, 1
      %v5459 = vsel %vm5371, %v5458, %v5457
      %v5460 = vsel %vm5374, %v5350, %v5459
      %v5461 = vrot.slane %v5351, 7
      %v5462 = vsel %vm5377, %v5461, %v5460
      %v5463 = vrot.slane %v5352, 6
      %v5464 = vsel %vm5380, %v5463, %v5462
      %5465 = vrot.lane.b32.xlu0 %v5464, 40
      %v5466 = vpop.permute.xlu0 %5465
      %v5468 = vrot.slane %v5345, 6
      %v5469 = vrot.slane %v5346, 5
      %v5470 = vsel %vm5362, %v5469, %v5468
      %v5471 = vrot.slane %v5347, 4
      %v5472 = vsel %vm5365, %v5471, %v5470
      %v5473 = vrot.slane %v5348, 3
      %v5474 = vsel %vm5368, %v5473, %v5472
      %v5475 = vrot.slane %v5349, 2
      %v5476 = vsel %vm5371, %v5475, %v5474
      %v5477 = vrot.slane %v5350, 1
      %v5478 = vsel %vm5374, %v5477, %v5476
      %v5479 = vsel %vm5377, %v5351, %v5478
      %v5480 = vrot.slane %v5352, 7
      %v5481 = vsel %vm5380, %v5480, %v5479
      %5482 = vrot.lane.b32.xlu0 %v5481, 48
      %v5483 = vpop.permute.xlu0 %5482
      %v5485 = vrot.slane %v5345, 7
      %v5486 = vrot.slane %v5346, 6
      %v5487 = vsel %vm5362, %v5486, %v5485
      %v5488 = vrot.slane %v5347, 5
      %v5489 = vsel %vm5365, %v5488, %v5487
      %v5490 = vrot.slane %v5348, 4
      %v5491 = vsel %vm5368, %v5490, %v5489
      %v5492 = vrot.slane %v5349, 3
      %v5493 = vsel %vm5371, %v5492, %v5491
      %v5494 = vrot.slane %v5350, 2
      %v5495 = vsel %vm5374, %v5494, %v5493
      %v5496 = vrot.slane %v5351, 1
      %v5497 = vsel %vm5377, %v5496, %v5495
      %v5498 = vsel %vm5380, %v5352, %v5497
      %5499 = vrot.lane.b32.xlu0 %v5498, 56
      %v5500 = vpop.permute.xlu0 %5499
      %v5502 = vsel %vm3884, %v5381, %v5398
      %vm5503 = vcmask 130048
      %v5504 = vsel %vm5503, %v5502, %v5415
      %vm5505 = vcmask 195584
      %v5506 = vsel %vm5505, %v5504, %v5432
      %vm5507 = vcmask 261120
      %v5508 = vsel %vm5507, %v5506, %v5449
      %vm5509 = vcmask 326656
      %v5510 = vsel %vm5509, %v5508, %v5466
      %vm5511 = vcmask 392192
      %v5512 = vsel %vm5511, %v5510, %v5483
      %vm5513 = vcmask 457728
      %v5514 = vsel %vm5513, %v5512, %v5500
      %vm5515 = vcmask 523264
      %5516 = vst.msk [vmem:[%s222] sm:$0xff] %vm5515, %v5514
      %p5517 = scmp.lt.s32.totalorder %s16, 1
      %s5518 = scalar_select %p5517, %s16, 1
      %s5519 = smul.addr %s5518, 8
      %s5520 = scalar_lea.vmem %s5, %s5519
      // Predicated region
      $region41: #{double_conv_relu.1} parent=39 // pred_check
        %p5521 = pneg %p144
      $region42: #{double_conv_relu.1} parent=39 // pred_check_branch
        %5523 = sbr.rel (%p5521) target = $region44
      $region43: #{double_conv_relu.1} parent=39 // pred_region
        _
      $region44: #{double_conv_relu.1} parent=39 // pred_fallthru
        _
    $region40: #{double_conv_relu.1} parent=5 // pred_fallthru
      _
    %p5524 = scmp.le.s32.totalorder 2, %s11
    // Predicated region
    $region45: #{double_conv_relu.1} parent=5 // pred_check
      %p5525 = pneg %p5524
    $region46: #{double_conv_relu.1} parent=5 // pred_check_branch
      %5527 = sbr.rel (%p5525) target = $region48
    $region47: #{double_conv_relu.1} parent=5 // pred_region
      %s5528 = ssub.s32 %s11, 2
      // Predicated region
      $region49: #{double_conv_relu.1} parent=47 // pred_check
        %p5529 = pneg %p150
      $region50: #{double_conv_relu.1} parent=47 // pred_check_branch
        %5531 = sbr.rel (%p5529) target = $region52
      $region51: #{double_conv_relu.1} parent=47 // pred_region
        %p5532 = scmp.lt.s32.totalorder %s17, 1
        %s5533 = scalar_select %p5532, %s17, 1
        %s5534 = smul.addr %s5533, 8
        %s5535 = scalar_lea.vmem %s5, %s5534
      $region52: #{double_conv_relu.1} parent=47 // pred_fallthru
        _
    $region48: #{double_conv_relu.1} parent=5 // pred_fallthru
      _
  $region6: #{double_conv_relu.1} parent=0 // loop_footer
    %s15 = sadd.s32 1, %s11
  $region7: #{double_conv_relu.1} parent=0 // loop_footer_branch
    %10 = sbr.rel target = $region3
  $region8: #{double_conv_relu.1} parent=0 // loop_exit
    _

</llo_original>
